<compile_context>
chip_gen: v5e
topology: v5e:2x2
jax: 0.10.0
libtpu: 0.0.40
codegen_flags: <defaults>
</compile_context>

<pallas_src>
import jax
import jax.numpy as jnp
from jax.experimental import pallas as pl
from jax.experimental.pallas import tpu as pltpu

CONV_CH = 100      # real channel count of conv1/conv2
CPAD = 128         # lane-padded channel count used internally
NUM_CLASSES = 10


def _round_up(x, m):
    return (x + m - 1) // m * m


def _pad_rows(a, rows):
    if a.shape[0] == rows:
        return a
    return jnp.pad(a, ((0, rows - a.shape[0]), (0, 0)))


# --------------------------- Pallas kernels ---------------------------------

def _conv_relu_pool_kernel(a0_ref, a1_ref, a2_ref, a3_ref, w_ref, b_ref, o_ref):
    """Fused conv (as matmul) + bias + ReLU + 2x2 max-pool.

    a{0..3}: bf16 (TM, K) im2col patches for the four pooling quadrants.
    w:       bf16 (K, N) conv weight matrix.   b: f32 (1, N) bias.
    o:       f32 (TM, N) pooled activation (rows = pooled output pixels).
    """
    w = w_ref[...]
    y0 = jnp.dot(a0_ref[...], w, preferred_element_type=jnp.float32)
    y1 = jnp.dot(a1_ref[...], w, preferred_element_type=jnp.float32)
    y2 = jnp.dot(a2_ref[...], w, preferred_element_type=jnp.float32)
    y3 = jnp.dot(a3_ref[...], w, preferred_element_type=jnp.float32)
    y = jnp.maximum(jnp.maximum(y0, y1), jnp.maximum(y2, y3))
    o_ref[...] = jnp.maximum(y + b_ref[...], 0.0)


def _linear_kernel(a_ref, w_ref, b_ref, o_ref):
    o_ref[...] = (
        jnp.dot(a_ref[...], w_ref[...], preferred_element_type=jnp.float32)
        + b_ref[...]
    )


def conv_relu_pool(p0, p1, p2, p3, w, b):
    """maxpool2x2( relu( conv + b ) ) given the 4 quadrant im2col patch matrices."""
    M, K = p0.shape
    N = w.shape[1]
    TM = min(_round_up(M, 8), 256)
    Mp = _round_up(M, TM)
    patches = [_pad_rows(p, Mp) for p in (p0, p1, p2, p3)]
    out = pl.pallas_call(
        _conv_relu_pool_kernel,
        out_shape=jax.ShapeDtypeStruct((Mp, N), jnp.float32),
        grid=(Mp // TM,),
        in_specs=[pl.BlockSpec((TM, K), lambda i: (i, 0)) for _ in range(4)]
        + [
            pl.BlockSpec((K, N), lambda i: (0, 0)),
            pl.BlockSpec((1, N), lambda i: (0, 0)),
        ],
        out_specs=pl.BlockSpec((TM, N), lambda i: (i, 0)),
        compiler_params=pltpu.CompilerParams(dimension_semantics=("parallel",)),
    )(*patches, w, b.reshape(1, N))
    return out[:M]


def linear(a, w, b):
    M, K = a.shape
    N = w.shape[1]
    return pl.pallas_call(
        _linear_kernel,
        out_shape=jax.ShapeDtypeStruct((M, N), jnp.float32),
        grid=(1,),
        in_specs=[
            pl.BlockSpec((M, K), lambda i: (0, 0)),
            pl.BlockSpec((K, N), lambda i: (0, 0)),
            pl.BlockSpec((1, N), lambda i: (0, 0)),
        ],
        out_specs=pl.BlockSpec((M, N), lambda i: (0, 0)),
    )(a, w, b.reshape(1, N))


# --------------------------- glue: im2col for fused conv+pool ---------------

def _pool_quadrant_patches(x_nhwc, pad, hp, wp):
    """Four pooling-quadrant im2col patch matrices for a 3x3/stride-1 conv followed
    by a 2x2/stride-2 max pool.  Quadrant (dy,dx), row r=(n,yo,xo) holds the 3x3xCin
    patch of conv-output pixel (2*yo+dy, 2*xo+dx), tap-major (ky,kx,cin) order."""
    n = x_nhwc.shape[0]
    cin = x_nhwc.shape[-1]
    xp = x_nhwc
    if pad:
        xp = jnp.pad(x_nhwc, ((0, 0), (pad, pad), (pad, pad), (0, 0)))
    quads = []
    for dy in range(2):
        for dx in range(2):
            taps = []
            for ky in range(3):
                for kx in range(3):
                    ys = dy + ky
                    xs = dx + kx
                    taps.append(
                        xp[:, ys: ys + 2 * (hp - 1) + 1: 2,
                               xs: xs + 2 * (wp - 1) + 1: 2, :]
                    )
            quads.append(
                jnp.concatenate(taps, axis=-1)
                .reshape(n * hp * wp, 9 * cin)
                .astype(jnp.bfloat16)
            )
    return quads


# --------------------------- parameters -------------------------------------

def init_raw_params(key):
    ks = jax.random.split(key, 6)

    def nrm(k, shape, scale):
        return scale * jax.random.normal(k, shape, jnp.float32)

    return dict(
        w1=nrm(ks[0], (CONV_CH, 1, 3, 3), (2.0 / (1 * 9)) ** 0.5),
        b1=nrm(ks[1], (CONV_CH,), 0.05),
        w2=nrm(ks[2], (CONV_CH, CONV_CH, 3, 3), (2.0 / (CONV_CH * 9)) ** 0.5),
        b2=nrm(ks[3], (CONV_CH,), 0.05),
        wfc=nrm(ks[4], (NUM_CLASSES, 6 * 6 * CONV_CH), (1.0 / (6 * 6 * CONV_CH)) ** 0.5),
        bfc=nrm(ks[5], (NUM_CLASSES,), 0.05),
    )


def pack_params(raw):
    """PyTorch-layout (OIHW / (out,in)) weights -> lane-padded, matmul-ready layouts."""
    cextra = CPAD - CONV_CH
    # conv1: (100,1,3,3) -> (kh,kw,cin,cout) -> (9, 100) -> pad cout to 128, bf16
    w1 = jnp.transpose(raw["w1"], (2, 3, 1, 0)).reshape(9 * 1, CONV_CH)
    w1 = jnp.pad(w1, ((0, 0), (0, cextra))).astype(jnp.bfloat16)
    b1 = jnp.pad(raw["b1"], (0, cextra))
    # conv2: pad cin and cout to 128, then (kh,kw,cin,cout) -> (9*128, 128), bf16
    w2 = jnp.pad(raw["w2"], ((0, cextra), (0, cextra), (0, 0), (0, 0)))
    w2 = jnp.transpose(w2, (2, 3, 1, 0)).reshape(9 * CPAD, CPAD).astype(jnp.bfloat16)
    b2 = jnp.pad(raw["b2"], (0, cextra))
    # fc1: PyTorch flattens (c,h,w); our activations flatten as (h,w,c_padded)
    wf = raw["wfc"].reshape(NUM_CLASSES, CONV_CH, 6, 6)
    wf = jnp.transpose(wf, (0, 2, 3, 1))                        # (10, 6, 6, 100)
    wf = jnp.pad(wf, ((0, 0), (0, 0), (0, 0), (0, cextra)))     # (10, 6, 6, 128)
    wf = wf.reshape(NUM_CLASSES, 6 * 6 * CPAD).T.astype(jnp.bfloat16)
    return dict(w1=w1, b1=b1, w2=w2, b2=b2, wfc=wf, bfc=raw["bfc"])


# --------------------------- forward -----------------------------------------

def net_one_forward(x_nchw, params):
    n = x_nchw.shape[0]
    x = jnp.transpose(x_nchw, (0, 2, 3, 1)).astype(jnp.float32)     # (N, 28, 28, 1)

    # conv1(pad=1) + ReLU + maxpool2  -> (N, 14, 14, 128)
    hp1, wp1 = x.shape[1] // 2, x.shape[2] // 2
    q1 = _pool_quadrant_patches(x, pad=1, hp=hp1, wp=wp1)
    a1 = conv_relu_pool(*q1, params["w1"], params["b1"]).reshape(n, hp1, wp1, CPAD)

    # conv2(pad=0) + ReLU + maxpool2  -> (N, 6, 6, 128)
    hp2, wp2 = (hp1 - 2) // 2, (wp1 - 2) // 2
    q2 = _pool_quadrant_patches(a1, pad=0, hp=hp2, wp=wp2)
    a2 = conv_relu_pool(*q2, params["w2"], params["b2"]).reshape(n, hp2, wp2, CPAD)

    # fc1 on flattened act2 (weight pre-permuted to (h, w, c_padded) order)
    feat = a2.reshape(n, hp2 * wp2 * CPAD).astype(jnp.bfloat16)
    logits = linear(feat, params["wfc"], params["bfc"])

    act1 = jnp.transpose(a1[..., :CONV_CH], (0, 3, 1, 2))           # NCHW
    act2 = jnp.transpose(a2[..., :CONV_CH], (0, 3, 1, 2))           # NCHW
    return logits, (act1, act2)


# --------------------------- pure-XLA f32 reference ---------------------------

def reference_forward(x_nchw, raw):
    def conv(x, w, b, pad):
        y = jax.lax.conv_general_dilated(
            x, w, window_strides=(1, 1), padding=[(pad, pad), (pad, pad)],
            dimension_numbers=("NCHW", "OIHW", "NCHW"))
        return y + b[None, :, None, None]

    def maxpool2(x):
        return jax.lax.reduce_window(
            x, -jnp.inf, jax.lax.max, (1, 1, 2, 2), (1, 1, 2, 2), "VALID")

    y = maxpool2(jnp.maximum(conv(x_nchw, raw["w1"], raw["b1"], 1), 0.0))
    a1 = y
    y = maxpool2(jnp.maximum(conv(y, raw["w2"], raw["b2"], 0), 0.0))
    a2 = y
    logits = y.reshape(y.shape[0], -1) @ raw["wfc"].T + raw["bfc"]
    return logits, (a1, a2)


# --------------------------- main --------------------------------------------

if __name__ == "__main__":
    key = jax.random.PRNGKey(0)
    raw = init_raw_params(jax.random.fold_in(key, 1))
    params = pack_params(raw)
    x = jax.random.normal(jax.random.fold_in(key, 2), (2, 1, 28, 28), jnp.float32)

    fwd = jax.jit(net_one_forward)
    logits, (act1, act2) = fwd(x, params)
    jax.block_until_ready((logits, act1, act2))

    assert logits.shape == (2, NUM_CLASSES)
    assert act1.shape == (2, CONV_CH, 14, 14)
    assert act2.shape == (2, CONV_CH, 6, 6)
    assert bool(jnp.all(jnp.isfinite(logits)))

    # Numerical check vs. a pure-XLA float32 reference (loose tolerance because the
    # MXU inputs are bf16; accumulation is f32).
    ref_logits, (ref1, ref2) = jax.jit(reference_forward)(x, raw)
    assert float(jnp.max(jnp.abs(act1 - ref1))) < 0.2
    assert float(jnp.max(jnp.abs(act2 - ref2))) < 0.2
    assert float(jnp.max(jnp.abs(logits - ref_logits))) < 0.3

    print("KERNEL_OK")
</pallas_src>

<mosaic_0001>
module attributes {stable_mosaic.version = 11 : i64} {
  func.func @_conv_relu_pool_kernel(%arg0: i32, %arg1: memref<256x9xbf16, #tpu.memory_space<vmem>>, %arg2: memref<256x9xbf16, #tpu.memory_space<vmem>>, %arg3: memref<256x9xbf16, #tpu.memory_space<vmem>>, %arg4: memref<256x9xbf16, #tpu.memory_space<vmem>>, %arg5: memref<9x128xbf16, #tpu.memory_space<vmem>>, %arg6: memref<1x128xf32, #tpu.memory_space<vmem>>, %arg7: memref<256x128xf32, #tpu.memory_space<vmem>>) attributes {dimension_semantics = [#tpu.dimension_semantics<parallel>], iteration_bounds = array<i64: 2>, scalar_prefetch = 0 : i64, scratch_operands = 0 : i64, tpu.core_type = #tpu.core_type<tc>, window_params = [{transform_indices = @transform_0, window_bounds = array<i64: 256, 9>}, {transform_indices = @transform_1, window_bounds = array<i64: 256, 9>}, {transform_indices = @transform_2, window_bounds = array<i64: 256, 9>}, {transform_indices = @transform_3, window_bounds = array<i64: 256, 9>}, {pipeline_mode = #tpu.pipeline_mode<synchronous>, transform_indices = @transform_4, window_bounds = array<i64: 9, 128>}, {pipeline_mode = #tpu.pipeline_mode<synchronous>, transform_indices = @transform_5, window_bounds = array<i64: 1, 128>}, {transform_indices = @transform_6, window_bounds = array<i64: 256, 128>}]} {
    %c0 = arith.constant 0 : index
    %c0_0 = arith.constant 0 : index
    %0 = vector.load %arg5[%c0, %c0_0] : memref<9x128xbf16, #tpu.memory_space<vmem>>, vector<9x128xbf16>
    %c0_1 = arith.constant 0 : index
    %c0_2 = arith.constant 0 : index
    %1 = vector.load %arg1[%c0_1, %c0_2] : memref<256x9xbf16, #tpu.memory_space<vmem>>, vector<256x9xbf16>
    %cst = arith.constant dense<0.000000e+00> : vector<256x128xf32>
    %2 = tpu.matmul %1, %0, %cst {dimension_numbers = #tpu.dot_dimension_numbers<[1], [0], [0], [1], [0, 0, 1, 1], [], []>} : vector<256x9xbf16>, vector<9x128xbf16>, vector<256x128xf32> -> vector<256x128xf32>
    %c0_3 = arith.constant 0 : index
    %c0_4 = arith.constant 0 : index
    %3 = vector.load %arg2[%c0_3, %c0_4] : memref<256x9xbf16, #tpu.memory_space<vmem>>, vector<256x9xbf16>
    %cst_5 = arith.constant dense<0.000000e+00> : vector<256x128xf32>
    %4 = tpu.matmul %3, %0, %cst_5 {dimension_numbers = #tpu.dot_dimension_numbers<[1], [0], [0], [1], [0, 0, 1, 1], [], []>} : vector<256x9xbf16>, vector<9x128xbf16>, vector<256x128xf32> -> vector<256x128xf32>
    %c0_6 = arith.constant 0 : index
    %c0_7 = arith.constant 0 : index
    %5 = vector.load %arg3[%c0_6, %c0_7] : memref<256x9xbf16, #tpu.memory_space<vmem>>, vector<256x9xbf16>
    %cst_8 = arith.constant dense<0.000000e+00> : vector<256x128xf32>
    %6 = tpu.matmul %5, %0, %cst_8 {dimension_numbers = #tpu.dot_dimension_numbers<[1], [0], [0], [1], [0, 0, 1, 1], [], []>} : vector<256x9xbf16>, vector<9x128xbf16>, vector<256x128xf32> -> vector<256x128xf32>
    %c0_9 = arith.constant 0 : index
    %c0_10 = arith.constant 0 : index
    %7 = vector.load %arg4[%c0_9, %c0_10] : memref<256x9xbf16, #tpu.memory_space<vmem>>, vector<256x9xbf16>
    %cst_11 = arith.constant dense<0.000000e+00> : vector<256x128xf32>
    %8 = tpu.matmul %7, %0, %cst_11 {dimension_numbers = #tpu.dot_dimension_numbers<[1], [0], [0], [1], [0, 0, 1, 1], [], []>} : vector<256x9xbf16>, vector<9x128xbf16>, vector<256x128xf32> -> vector<256x128xf32>
    %9 = arith.maximumf %2, %4 : vector<256x128xf32>
    %10 = arith.maximumf %6, %8 : vector<256x128xf32>
    %11 = arith.maximumf %9, %10 : vector<256x128xf32>
    %c0_12 = arith.constant 0 : index
    %c0_13 = arith.constant 0 : index
    %12 = vector.load %arg6[%c0_12, %c0_13] : memref<1x128xf32, #tpu.memory_space<vmem>>, vector<1x128xf32>
    %13 = vector.broadcast %12 : vector<1x128xf32> to vector<256x128xf32>
    %14 = arith.addf %11, %13 : vector<256x128xf32>
    %cst_14 = arith.constant 0.000000e+00 : f32
    %15 = vector.broadcast %cst_14 : f32 to vector<256x128xf32>
    %16 = arith.maximumf %14, %15 : vector<256x128xf32>
    %c0_15 = arith.constant 0 : index
    %c0_16 = arith.constant 0 : index
    %17 = vector.load %arg7[%c0_15, %c0_16] : memref<256x128xf32, #tpu.memory_space<vmem>>, vector<256x128xf32>
    tpu.vector_store %arg7[%c0_15, %c0_16], %16 {strides = array<i32>} : memref<256x128xf32, #tpu.memory_space<vmem>>, vector<256x128xf32>,
    return
  }
  func.func @transform_0(%arg0: i32) -> (i32, i32) {
    %c0_i32 = arith.constant 0 : i32
    %c0_i32_0 = arith.constant 0 : i32
    return %arg0, %c0_i32 : i32, i32
  }
  func.func @transform_1(%arg0: i32) -> (i32, i32) {
    %c0_i32 = arith.constant 0 : i32
    %c0_i32_0 = arith.constant 0 : i32
    return %arg0, %c0_i32 : i32, i32
  }
  func.func @transform_2(%arg0: i32) -> (i32, i32) {
    %c0_i32 = arith.constant 0 : i32
    %c0_i32_0 = arith.constant 0 : i32
    return %arg0, %c0_i32 : i32, i32
  }
  func.func @transform_3(%arg0: i32) -> (i32, i32) {
    %c0_i32 = arith.constant 0 : i32
    %c0_i32_0 = arith.constant 0 : i32
    return %arg0, %c0_i32 : i32, i32
  }
  func.func @transform_4(%arg0: i32) -> (i32, i32) {
    %c0_i32 = arith.constant 0 : i32
    %c0_i32_0 = arith.constant 0 : i32
    %c0_i32_1 = arith.constant 0 : i32
    return %c0_i32, %c0_i32_0 : i32, i32
  }
  func.func @transform_5(%arg0: i32) -> (i32, i32) {
    %c0_i32 = arith.constant 0 : i32
    %c0_i32_0 = arith.constant 0 : i32
    %c0_i32_1 = arith.constant 0 : i32
    return %c0_i32, %c0_i32_0 : i32, i32
  }
  func.func @transform_6(%arg0: i32) -> (i32, i32) {
    %c0_i32 = arith.constant 0 : i32
    %c0_i32_0 = arith.constant 0 : i32
    return %arg0, %c0_i32 : i32, i32
  }
}

module attributes {stable_mosaic.version = 11 : i64} {
  func.func @_conv_relu_pool_kernel(%arg0: i32, %arg1: memref<72x1152xbf16, #tpu.memory_space<vmem>>, %arg2: memref<72x1152xbf16, #tpu.memory_space<vmem>>, %arg3: memref<72x1152xbf16, #tpu.memory_space<vmem>>, %arg4: memref<72x1152xbf16, #tpu.memory_space<vmem>>, %arg5: memref<1152x128xbf16, #tpu.memory_space<vmem>>, %arg6: memref<1x128xf32, #tpu.memory_space<vmem>>, %arg7: memref<72x128xf32, #tpu.memory_space<vmem>>) attributes {dimension_semantics = [#tpu.dimension_semantics<parallel>], iteration_bounds = array<i64: 1>, scalar_prefetch = 0 : i64, scratch_operands = 0 : i64, tpu.core_type = #tpu.core_type<tc>, window_params = [{transform_indices = @transform_0, window_bounds = array<i64: 72, 1152>}, {transform_indices = @transform_1, window_bounds = array<i64: 72, 1152>}, {transform_indices = @transform_2, window_bounds = array<i64: 72, 1152>}, {transform_indices = @transform_3, window_bounds = array<i64: 72, 1152>}, {pipeline_mode = #tpu.pipeline_mode<synchronous>, transform_indices = @transform_4, window_bounds = array<i64: 1152, 128>}, {pipeline_mode = #tpu.pipeline_mode<synchronous>, transform_indices = @transform_5, window_bounds = array<i64: 1, 128>}, {transform_indices = @transform_6, window_bounds = array<i64: 72, 128>}]} {
    %c0 = arith.constant 0 : index
    %c0_0 = arith.constant 0 : index
    %0 = vector.load %arg5[%c0, %c0_0] : memref<1152x128xbf16, #tpu.memory_space<vmem>>, vector<1152x128xbf16>
    %c0_1 = arith.constant 0 : index
    %c0_2 = arith.constant 0 : index
    %1 = vector.load %arg1[%c0_1, %c0_2] : memref<72x1152xbf16, #tpu.memory_space<vmem>>, vector<72x1152xbf16>
    %cst = arith.constant dense<0.000000e+00> : vector<72x128xf32>
    %2 = tpu.matmul %1, %0, %cst {dimension_numbers = #tpu.dot_dimension_numbers<[1], [0], [0], [1], [0, 0, 1, 1], [], []>} : vector<72x1152xbf16>, vector<1152x128xbf16>, vector<72x128xf32> -> vector<72x128xf32>
    %c0_3 = arith.constant 0 : index
    %c0_4 = arith.constant 0 : index
    %3 = vector.load %arg2[%c0_3, %c0_4] : memref<72x1152xbf16, #tpu.memory_space<vmem>>, vector<72x1152xbf16>
    %cst_5 = arith.constant dense<0.000000e+00> : vector<72x128xf32>
    %4 = tpu.matmul %3, %0, %cst_5 {dimension_numbers = #tpu.dot_dimension_numbers<[1], [0], [0], [1], [0, 0, 1, 1], [], []>} : vector<72x1152xbf16>, vector<1152x128xbf16>, vector<72x128xf32> -> vector<72x128xf32>
    %c0_6 = arith.constant 0 : index
    %c0_7 = arith.constant 0 : index
    %5 = vector.load %arg3[%c0_6, %c0_7] : memref<72x1152xbf16, #tpu.memory_space<vmem>>, vector<72x1152xbf16>
    %cst_8 = arith.constant dense<0.000000e+00> : vector<72x128xf32>
    %6 = tpu.matmul %5, %0, %cst_8 {dimension_numbers = #tpu.dot_dimension_numbers<[1], [0], [0], [1], [0, 0, 1, 1], [], []>} : vector<72x1152xbf16>, vector<1152x128xbf16>, vector<72x128xf32> -> vector<72x128xf32>
    %c0_9 = arith.constant 0 : index
    %c0_10 = arith.constant 0 : index
    %7 = vector.load %arg4[%c0_9, %c0_10] : memref<72x1152xbf16, #tpu.memory_space<vmem>>, vector<72x1152xbf16>
    %cst_11 = arith.constant dense<0.000000e+00> : vector<72x128xf32>
    %8 = tpu.matmul %7, %0, %cst_11 {dimension_numbers = #tpu.dot_dimension_numbers<[1], [0], [0], [1], [0, 0, 1, 1], [], []>} : vector<72x1152xbf16>, vector<1152x128xbf16>, vector<72x128xf32> -> vector<72x128xf32>
    %9 = arith.maximumf %2, %4 : vector<72x128xf32>
    %10 = arith.maximumf %6, %8 : vector<72x128xf32>
    %11 = arith.maximumf %9, %10 : vector<72x128xf32>
    %c0_12 = arith.constant 0 : index
    %c0_13 = arith.constant 0 : index
    %12 = vector.load %arg6[%c0_12, %c0_13] : memref<1x128xf32, #tpu.memory_space<vmem>>, vector<1x128xf32>
    %13 = vector.broadcast %12 : vector<1x128xf32> to vector<72x128xf32>
    %14 = arith.addf %11, %13 : vector<72x128xf32>
    %cst_14 = arith.constant 0.000000e+00 : f32
    %15 = vector.broadcast %cst_14 : f32 to vector<72x128xf32>
    %16 = arith.maximumf %14, %15 : vector<72x128xf32>
    %c0_15 = arith.constant 0 : index
    %c0_16 = arith.constant 0 : index
    %17 = vector.load %arg7[%c0_15, %c0_16] : memref<72x128xf32, #tpu.memory_space<vmem>>, vector<72x128xf32>
    tpu.vector_store %arg7[%c0_15, %c0_16], %16 {strides = array<i32>} : memref<72x128xf32, #tpu.memory_space<vmem>>, vector<72x128xf32>,
    return
  }
  func.func @transform_0(%arg0: i32) -> (i32, i32) {
    %c0_i32 = arith.constant 0 : i32
    %c0_i32_0 = arith.constant 0 : i32
    return %arg0, %c0_i32 : i32, i32
  }
  func.func @transform_1(%arg0: i32) -> (i32, i32) {
    %c0_i32 = arith.constant 0 : i32
    %c0_i32_0 = arith.constant 0 : i32
    return %arg0, %c0_i32 : i32, i32
  }
  func.func @transform_2(%arg0: i32) -> (i32, i32) {
    %c0_i32 = arith.constant 0 : i32
    %c0_i32_0 = arith.constant 0 : i32
    return %arg0, %c0_i32 : i32, i32
  }
  func.func @transform_3(%arg0: i32) -> (i32, i32) {
    %c0_i32 = arith.constant 0 : i32
    %c0_i32_0 = arith.constant 0 : i32
    return %arg0, %c0_i32 : i32, i32
  }
  func.func @transform_4(%arg0: i32) -> (i32, i32) {
    %c0_i32 = arith.constant 0 : i32
    %c0_i32_0 = arith.constant 0 : i32
    %c0_i32_1 = arith.constant 0 : i32
    return %c0_i32, %c0_i32_0 : i32, i32
  }
  func.func @transform_5(%arg0: i32) -> (i32, i32) {
    %c0_i32 = arith.constant 0 : i32
    %c0_i32_0 = arith.constant 0 : i32
    %c0_i32_1 = arith.constant 0 : i32
    return %c0_i32, %c0_i32_0 : i32, i32
  }
  func.func @transform_6(%arg0: i32) -> (i32, i32) {
    %c0_i32 = arith.constant 0 : i32
    %c0_i32_0 = arith.constant 0 : i32
    return %arg0, %c0_i32 : i32, i32
  }
}

module attributes {stable_mosaic.version = 11 : i64} {
  func.func @_linear_kernel(%arg0: i32, %arg1: memref<2x4608xbf16, #tpu.memory_space<vmem>>, %arg2: memref<4608x10xbf16, #tpu.memory_space<vmem>>, %arg3: memref<1x10xf32, #tpu.memory_space<vmem>>, %arg4: memref<2x10xf32, #tpu.memory_space<vmem>>) attributes {dimension_semantics = [#tpu.dimension_semantics<arbitrary>], iteration_bounds = array<i64: 1>, scalar_prefetch = 0 : i64, scratch_operands = 0 : i64, tpu.core_type = #tpu.core_type<tc>, window_params = [{pipeline_mode = #tpu.pipeline_mode<synchronous>, transform_indices = @transform_0, window_bounds = array<i64: 2, 4608>}, {pipeline_mode = #tpu.pipeline_mode<synchronous>, transform_indices = @transform_1, window_bounds = array<i64: 4608, 10>}, {pipeline_mode = #tpu.pipeline_mode<synchronous>, transform_indices = @transform_2, window_bounds = array<i64: 1, 10>}, {pipeline_mode = #tpu.pipeline_mode<synchronous>, transform_indices = @transform_3, window_bounds = array<i64: 2, 10>}]} {
    %c0 = arith.constant 0 : index
    %c0_0 = arith.constant 0 : index
    %0 = vector.load %arg1[%c0, %c0_0] : memref<2x4608xbf16, #tpu.memory_space<vmem>>, vector<2x4608xbf16>
    %c0_1 = arith.constant 0 : index
    %c0_2 = arith.constant 0 : index
    %1 = vector.load %arg2[%c0_1, %c0_2] : memref<4608x10xbf16, #tpu.memory_space<vmem>>, vector<4608x10xbf16>
    %cst = arith.constant dense<0.000000e+00> : vector<2x10xf32>
    %2 = tpu.matmul %0, %1, %cst {dimension_numbers = #tpu.dot_dimension_numbers<[1], [0], [0], [1], [0, 0, 1, 1], [], []>} : vector<2x4608xbf16>, vector<4608x10xbf16>, vector<2x10xf32> -> vector<2x10xf32>
    %c0_3 = arith.constant 0 : index
    %c0_4 = arith.constant 0 : index
    %3 = vector.load %arg3[%c0_3, %c0_4] : memref<1x10xf32, #tpu.memory_space<vmem>>, vector<1x10xf32>
    %4 = vector.broadcast %3 : vector<1x10xf32> to vector<2x10xf32>
    %5 = arith.addf %2, %4 : vector<2x10xf32>
    %c0_5 = arith.constant 0 : index
    %c0_6 = arith.constant 0 : index
    %6 = vector.load %arg4[%c0_5, %c0_6] : memref<2x10xf32, #tpu.memory_space<vmem>>, vector<2x10xf32>
    tpu.vector_store %arg4[%c0_5, %c0_6], %5 {strides = array<i32>} : memref<2x10xf32, #tpu.memory_space<vmem>>, vector<2x10xf32>,
    return
  }
  func.func @transform_0(%arg0: i32) -> (i32, i32) {
    %c0_i32 = arith.constant 0 : i32
    %c0_i32_0 = arith.constant 0 : i32
    %c0_i32_1 = arith.constant 0 : i32
    return %c0_i32, %c0_i32_0 : i32, i32
  }
  func.func @transform_1(%arg0: i32) -> (i32, i32) {
    %c0_i32 = arith.constant 0 : i32
    %c0_i32_0 = arith.constant 0 : i32
    %c0_i32_1 = arith.constant 0 : i32
    return %c0_i32, %c0_i32_0 : i32, i32
  }
  func.func @transform_2(%arg0: i32) -> (i32, i32) {
    %c0_i32 = arith.constant 0 : i32
    %c0_i32_0 = arith.constant 0 : i32
    %c0_i32_1 = arith.constant 0 : i32
    return %c0_i32, %c0_i32_0 : i32, i32
  }
  func.func @transform_3(%arg0: i32) -> (i32, i32) {
    %c0_i32 = arith.constant 0 : i32
    %c0_i32_0 = arith.constant 0 : i32
    %c0_i32_1 = arith.constant 0 : i32
    return %c0_i32, %c0_i32_0 : i32, i32
  }
}

</mosaic_0001>

<llo_original>
// kernel: net_one_forward.3
$region0: #{net_one_forward.3}
  #allocation0 [shape = 'u32[]', space=smem, size = 0x4, offset = 0x4, fixed_abs, tag = 'smem constant byte address 0x4 - core index']
  #allocation1 [shape = 'u32[72,128]{1,0:T(1,128)}', space=vmem, size = 0x9000, scoped, tag = 'internal scratch']
  %s0 = inlined_call_operand.vmem [shape: bf16[512,9], index: 0, kind: input, shape index: {}]
  %s1 = inlined_call_operand.vmem [shape: bf16[512,9], index: 1, kind: input, shape index: {}]
  %s2 = inlined_call_operand.vmem [shape: bf16[512,9], index: 2, kind: input, shape index: {}]
  %s3 = inlined_call_operand.vmem [shape: bf16[512,9], index: 3, kind: input, shape index: {}]
  %s4 = inlined_call_operand.vmem [shape: bf16[9,128], index: 4, kind: input, shape index: {}]
  %s5 = inlined_call_operand.vmem [shape: f32[1,128], index: 5, kind: input, shape index: {}]
  %s6 = inlined_call_operand.vmem [shape: f32[512,128], index: 6, kind: output, shape index: {}]
  %s7 = sld [smem:[#allocation0]]
  $region57: #{net_one_forward.3} parent=0
    _
  %s9 = ssub.s32 1, %s7
  %s10 = scalar_select 0, %s9, %s7
  loop: start=0, step=1, limit=4
  $region2: #{net_one_forward.3} parent=0 // loop_pre_header
    _
  $region3: #{net_one_forward.3} parent=0 // loop_header
    %s12 = sphi 0, %s16
    %p13 = scmp.ge.s32.totalorder %s12, 4
    %s22 = sphi 0, %s24
    %s25 = sphi 0, %s22
    %s26 = sphi 0, %s25
    %s42 = sphi 0, %s26
    %s48 = sphi 0, %s50
    %s51 = sphi 0, %s48
    %s52 = sphi 0, %s51
    %s68 = sphi 0, %s52
    %s74 = sphi 0, %s76
    %s77 = sphi 0, %s74
    %s78 = sphi 0, %s77
    %s94 = sphi 0, %s78
    %s100 = sphi 0, %s102
    %s103 = sphi 0, %s100
    %s104 = sphi 0, %s103
    %s120 = sphi 0, %s104
    %s124 = sphi 0, %s124
    %s126 = sphi 0, %s124
    %s127 = sphi 0, %s126
    %s141 = sphi 0, %s127
    %s145 = sphi 0, %s145
    %s147 = sphi 0, %s145
    %s148 = sphi 0, %s147
    %s162 = sphi 0, %s148
    %s168 = sphi 0, %s170
    %s171 = sphi 0, %s168
    %s172 = sphi 0, %s171
    %s188 = sphi 0, %s172
  $region4: #{net_one_forward.3} parent=0 // loop_header_branch
    %15 = sbr.rel (%p13) target = $region8
  $region5: #{net_one_forward.3} parent=0 // loop_body
    %s17 = ssub.s32 %s12, 1
    %s18 = ssub.s32 %s12, 2
    %s19 = sadd.s32 %s12, 1
    %s20 = ssub.s32 %s12, %s19
    %p21 = scmp.eq.s32.totalorder %s20, 0
    %s23 = sadd.s32 %s22, 1
    %s24 = scalar_select %p21, %s22, %s23
    %p27 = pneg %p21
    %p28 = scmp.eq.s32.totalorder %s12, 1
    %p29 = por %p27, %p28
    %p30 = scmp.ne.s32.totalorder %s22, %s25
    %p31 = scmp.eq.s32.totalorder %s12, 0
    %p32 = por %p30, %p31
    %p33 = scmp.ne.s32.totalorder %s22, %s25
    %p34 = scmp.eq.s32.totalorder %s17, 1
    %p35 = por %p33, %p34
    %p36 = scmp.ne.s32.totalorder %s25, %s26
    %p37 = scmp.eq.s32.totalorder %s17, 0
    %p38 = por %p36, %p37
    %p39 = scmp.ne.s32.totalorder %s25, %s26
    %p40 = scmp.eq.s32.totalorder %s18, 1
    %p41 = por %p39, %p40
    %p43 = scmp.ne.s32.totalorder %s26, %s42
    %p44 = scmp.eq.s32.totalorder %s18, 0
    %p45 = por %p43, %p44
    %s46 = ssub.s32 %s12, %s19
    %p47 = scmp.eq.s32.totalorder %s46, 0
    %s49 = sadd.s32 %s48, 1
    %s50 = scalar_select %p47, %s48, %s49
    %p53 = pneg %p47
    %p54 = scmp.eq.s32.totalorder %s12, 1
    %p55 = por %p53, %p54
    %p56 = scmp.ne.s32.totalorder %s48, %s51
    %p57 = scmp.eq.s32.totalorder %s12, 0
    %p58 = por %p56, %p57
    %p59 = scmp.ne.s32.totalorder %s48, %s51
    %p60 = scmp.eq.s32.totalorder %s17, 1
    %p61 = por %p59, %p60
    %p62 = scmp.ne.s32.totalorder %s51, %s52
    %p63 = scmp.eq.s32.totalorder %s17, 0
    %p64 = por %p62, %p63
    %p65 = scmp.ne.s32.totalorder %s51, %s52
    %p66 = scmp.eq.s32.totalorder %s18, 1
    %p67 = por %p65, %p66
    %p69 = scmp.ne.s32.totalorder %s52, %s68
    %p70 = scmp.eq.s32.totalorder %s18, 0
    %p71 = por %p69, %p70
    %s72 = ssub.s32 %s12, %s19
    %p73 = scmp.eq.s32.totalorder %s72, 0
    %s75 = sadd.s32 %s74, 1
    %s76 = scalar_select %p73, %s74, %s75
    %p79 = pneg %p73
    %p80 = scmp.eq.s32.totalorder %s12, 1
    %p81 = por %p79, %p80
    %p82 = scmp.ne.s32.totalorder %s74, %s77
    %p83 = scmp.eq.s32.totalorder %s12, 0
    %p84 = por %p82, %p83
    %p85 = scmp.ne.s32.totalorder %s74, %s77
    %p86 = scmp.eq.s32.totalorder %s17, 1
    %p87 = por %p85, %p86
    %p88 = scmp.ne.s32.totalorder %s77, %s78
    %p89 = scmp.eq.s32.totalorder %s17, 0
    %p90 = por %p88, %p89
    %p91 = scmp.ne.s32.totalorder %s77, %s78
    %p92 = scmp.eq.s32.totalorder %s18, 1
    %p93 = por %p91, %p92
    %p95 = scmp.ne.s32.totalorder %s78, %s94
    %p96 = scmp.eq.s32.totalorder %s18, 0
    %p97 = por %p95, %p96
    %s98 = ssub.s32 %s12, %s19
    %p99 = scmp.eq.s32.totalorder %s98, 0
    %s101 = sadd.s32 %s100, 1
    %s102 = scalar_select %p99, %s100, %s101
    %p105 = pneg %p99
    %p106 = scmp.eq.s32.totalorder %s12, 1
    %p107 = por %p105, %p106
    %p108 = scmp.ne.s32.totalorder %s100, %s103
    %p109 = scmp.eq.s32.totalorder %s12, 0
    %p110 = por %p108, %p109
    %p111 = scmp.ne.s32.totalorder %s100, %s103
    %p112 = scmp.eq.s32.totalorder %s17, 1
    %p113 = por %p111, %p112
    %p114 = scmp.ne.s32.totalorder %s103, %s104
    %p115 = scmp.eq.s32.totalorder %s17, 0
    %p116 = por %p114, %p115
    %p117 = scmp.ne.s32.totalorder %s103, %s104
    %p118 = scmp.eq.s32.totalorder %s18, 1
    %p119 = por %p117, %p118
    %p121 = scmp.ne.s32.totalorder %s104, %s120
    %p122 = scmp.eq.s32.totalorder %s18, 0
    %p123 = por %p121, %p122
    %s125 = sadd.s32 %s124, 1
    %p128 = scmp.eq.s32.totalorder %s12, 1
    %p129 = scmp.ne.s32.totalorder %s124, %s126
    %p130 = scmp.eq.s32.totalorder %s12, 0
    %p131 = por %p129, %p130
    %p132 = scmp.ne.s32.totalorder %s124, %s126
    %p133 = scmp.eq.s32.totalorder %s17, 1
    %p134 = por %p132, %p133
    %p135 = scmp.ne.s32.totalorder %s126, %s127
    %p136 = scmp.eq.s32.totalorder %s17, 0
    %p137 = por %p135, %p136
    %p138 = scmp.ne.s32.totalorder %s126, %s127
    %p139 = scmp.eq.s32.totalorder %s18, 1
    %p140 = por %p138, %p139
    %p142 = scmp.ne.s32.totalorder %s127, %s141
    %p143 = scmp.eq.s32.totalorder %s18, 0
    %p144 = por %p142, %p143
    %s146 = sadd.s32 %s145, 1
    %p149 = scmp.eq.s32.totalorder %s12, 1
    %p150 = scmp.ne.s32.totalorder %s145, %s147
    %p151 = scmp.eq.s32.totalorder %s12, 0
    %p152 = por %p150, %p151
    %p153 = scmp.ne.s32.totalorder %s145, %s147
    %p154 = scmp.eq.s32.totalorder %s17, 1
    %p155 = por %p153, %p154
    %p156 = scmp.ne.s32.totalorder %s147, %s148
    %p157 = scmp.eq.s32.totalorder %s17, 0
    %p158 = por %p156, %p157
    %p159 = scmp.ne.s32.totalorder %s147, %s148
    %p160 = scmp.eq.s32.totalorder %s18, 1
    %p161 = por %p159, %p160
    %p163 = scmp.ne.s32.totalorder %s148, %s162
    %p164 = scmp.eq.s32.totalorder %s18, 0
    %p165 = por %p163, %p164
    %s166 = ssub.s32 %s12, %s19
    %p167 = scmp.eq.s32.totalorder %s166, 0
    %s169 = sadd.s32 %s168, 1
    %s170 = scalar_select %p167, %s168, %s169
    %p173 = pneg %p167
    %p174 = scmp.eq.s32.totalorder %s12, 1
    %p175 = por %p173, %p174
    %p176 = scmp.ne.s32.totalorder %s168, %s171
    %p177 = scmp.eq.s32.totalorder %s12, 0
    %p178 = por %p176, %p177
    %p179 = scmp.ne.s32.totalorder %s168, %s171
    %p180 = scmp.eq.s32.totalorder %s17, 1
    %p181 = por %p179, %p180
    %p182 = scmp.ne.s32.totalorder %s171, %s172
    %p183 = scmp.eq.s32.totalorder %s17, 0
    %p184 = por %p182, %p183
    %p185 = scmp.ne.s32.totalorder %s171, %s172
    %p186 = scmp.eq.s32.totalorder %s18, 1
    %p187 = por %p185, %p186
    %p189 = scmp.ne.s32.totalorder %s172, %s188
    %p190 = scmp.eq.s32.totalorder %s18, 0
    %p191 = por %p189, %p190
    %p192 = scmp.le.s32.totalorder 1, %s12
    %p193 = scmp.lt.s32.totalorder %s12, 3
    %p194 = pnand %p192, %p193
    %p195 = pneg %p194
    // Predicated region
    $region9: #{net_one_forward.3} parent=5 // pred_check
      _
    $region10: #{net_one_forward.3} parent=5 // pred_check_branch
      %197 = sbr.rel (%p194) target = $region12
    $region11: #{net_one_forward.3} parent=5 // pred_region
      %s198 = ssub.s32 %s12, 1
      // Predicated region
      $region13: #{net_one_forward.3} parent=11 // pred_check
        %p199 = pneg %p137
      $region14: #{net_one_forward.3} parent=11 // pred_check_branch
        %201 = sbr.rel (%p199) target = $region16
      $region15: #{net_one_forward.3} parent=11 // pred_region
        _
      $region16: #{net_one_forward.3} parent=11 // pred_fallthru
        _
      // Predicated region
      $region17: #{net_one_forward.3} parent=11 // pred_check
        %p202 = pneg %p158
      $region18: #{net_one_forward.3} parent=11 // pred_check_branch
        %204 = sbr.rel (%p202) target = $region20
      $region19: #{net_one_forward.3} parent=11 // pred_region
        _
      $region20: #{net_one_forward.3} parent=11 // pred_fallthru
        _
    $region12: #{net_one_forward.3} parent=5 // pred_fallthru
      _
    %p205 = scmp.lt.s32.totalorder %s12, 2
    // Predicated region
    $region21: #{net_one_forward.3} parent=5 // pred_check
      %p206 = pneg %p205
    $region22: #{net_one_forward.3} parent=5 // pred_check_branch
      %208 = sbr.rel (%p206) target = $region24
    $region23: #{net_one_forward.3} parent=5 // pred_region
      // Predicated region
      $region25: #{net_one_forward.3} parent=23 // pred_check
        %p209 = pneg %p32
      $region26: #{net_one_forward.3} parent=23 // pred_check_branch
        %211 = sbr.rel (%p209) target = $region28
      $region27: #{net_one_forward.3} parent=23 // pred_region
        %s212 = smul.u32 32, %s12
        %p213 = scmp.lt.s32.totalorder %s212, 63
        %s214 = scalar_select %p213, %s212, 63
        %s215 = smul.addr %s214, 4
        %s216 = scalar_lea.vmem %s0, %s215
        %s217 = smul.u32 32, %s12
      $region28: #{net_one_forward.3} parent=23 // pred_fallthru
        _
      // Predicated region
      $region29: #{net_one_forward.3} parent=23 // pred_check
        %p218 = pneg %p58
      $region30: #{net_one_forward.3} parent=23 // pred_check_branch
        %220 = sbr.rel (%p218) target = $region32
      $region31: #{net_one_forward.3} parent=23 // pred_region
        %s221 = smul.u32 32, %s12
        %p222 = scmp.lt.s32.totalorder %s221, 63
        %s223 = scalar_select %p222, %s221, 63
        %s224 = smul.addr %s223, 4
        %s225 = scalar_lea.vmem %s1, %s224
        %s226 = smul.u32 32, %s12
      $region32: #{net_one_forward.3} parent=23 // pred_fallthru
        _
      // Predicated region
      $region33: #{net_one_forward.3} parent=23 // pred_check
        %p227 = pneg %p84
      $region34: #{net_one_forward.3} parent=23 // pred_check_branch
        %229 = sbr.rel (%p227) target = $region36
      $region35: #{net_one_forward.3} parent=23 // pred_region
        %s230 = smul.u32 32, %s12
        %p231 = scmp.lt.s32.totalorder %s230, 63
        %s232 = scalar_select %p231, %s230, 63
        %s233 = smul.addr %s232, 4
        %s234 = scalar_lea.vmem %s2, %s233
        %s235 = smul.u32 32, %s12
      $region36: #{net_one_forward.3} parent=23 // pred_fallthru
        _
      // Predicated region
      $region37: #{net_one_forward.3} parent=23 // pred_check
        %p236 = pneg %p110
      $region38: #{net_one_forward.3} parent=23 // pred_check_branch
        %238 = sbr.rel (%p236) target = $region40
      $region39: #{net_one_forward.3} parent=23 // pred_region
        %s239 = smul.u32 32, %s12
        %p240 = scmp.lt.s32.totalorder %s239, 63
        %s241 = scalar_select %p240, %s239, 63
        %s242 = smul.addr %s241, 4
        %s243 = scalar_lea.vmem %s3, %s242
        %s244 = smul.u32 32, %s12
      $region40: #{net_one_forward.3} parent=23 // pred_fallthru
        _
    $region24: #{net_one_forward.3} parent=5 // pred_fallthru
      _
    %p245 = scmp.le.s32.totalorder 1, %s12
    %p246 = scmp.lt.s32.totalorder %s12, 3
    %p247 = pnand %p245, %p246
    %p248 = pneg %p247
    // Predicated region
    $region41: #{net_one_forward.3} parent=5 // pred_check
      _
    $region42: #{net_one_forward.3} parent=5 // pred_check_branch
      %250 = sbr.rel (%p247) target = $region44
    $region43: #{net_one_forward.3} parent=5 // pred_region
      %s251 = ssub.s32 %s12, 1
      %s252 = smul.u32 32, %s17
      %p253 = scmp.lt.s32.totalorder %s252, 63
      %s254 = scalar_select %p253, %s252, 63
      %s255 = smul.addr %s254, 4
      %s256 = scalar_lea.vmem %s0, %s255
      %p257 = pneg %p38
      %p258 = pneg %p35
      %s259 = smul.u32 32, %s17
      %p260 = scmp.lt.s32.totalorder %s259, 63
      %s261 = scalar_select %p260, %s259, 63
      %s262 = smul.addr %s261, 4
      %s263 = scalar_lea.vmem %s1, %s262
      %p264 = pneg %p64
      %p265 = pneg %p61
      %s266 = smul.u32 32, %s17
      %p267 = scmp.lt.s32.totalorder %s266, 63
      %s268 = scalar_select %p267, %s266, 63
      %s269 = smul.addr %s268, 4
      %s270 = scalar_lea.vmem %s2, %s269
      %p271 = pneg %p90
      %p272 = pneg %p87
      %s273 = smul.u32 32, %s17
      %p274 = scmp.lt.s32.totalorder %s273, 63
      %s275 = scalar_select %p274, %s273, 63
      %s276 = smul.addr %s275, 4
      %s277 = scalar_lea.vmem %s3, %s276
      %p278 = pneg %p116
      %p279 = pneg %p113
      %p280 = pneg %p137
      %p281 = pneg %p134
      %p282 = pneg %p158
      %p283 = pneg %p155
      %p284 = pneg %p184
      %p285 = pneg %p181
      %s286 = smul.u32 32, %s17
      %p287 = scmp.lt.s32.totalorder %s286, 63
      %s288 = scalar_select %p287, %s286, 63
      %s289 = smul.addr %s288, 8
      %s290 = scalar_lea.vmem %s6, %s289
      %s291 = smul.u32 32, %s17
      %p292 = scmp.lt.s32.totalorder %s291, 63
      %s293 = scalar_select %p292, %s291, 63
      %s294 = smul.addr %s293, 4
      %s295 = scalar_lea.vmem %s0, %s294
      %s296 = smul.u32 32, %s17
      %s297 = smul.u32 32, %s17
      %p298 = scmp.lt.s32.totalorder %s297, 63
      %s299 = scalar_select %p298, %s297, 63
      %s300 = smul.addr %s299, 4
      %s301 = scalar_lea.vmem %s1, %s300
      %s302 = smul.u32 32, %s17
      %s303 = smul.u32 32, %s17
      %p304 = scmp.lt.s32.totalorder %s303, 63
      %s305 = scalar_select %p304, %s303, 63
      %s306 = smul.addr %s305, 4
      %s307 = scalar_lea.vmem %s2, %s306
      %s308 = smul.u32 32, %s17
      %s309 = smul.u32 32, %s17
      %p310 = scmp.lt.s32.totalorder %s309, 63
      %s311 = scalar_select %p310, %s309, 63
      %s312 = smul.addr %s311, 4
      %s313 = scalar_lea.vmem %s3, %s312
      %s314 = smul.u32 32, %s17
      %s315 = smul.u32 32, %s17
      %p316 = scmp.lt.s32.totalorder %s315, 63
      %s317 = scalar_select %p316, %s315, 63
      %s318 = smul.addr %s317, 8
      %s319 = scalar_lea.vmem %s6, %s318
      %s320 = smul.u32 32, %s17
      %v322 = vld [vmem:[%s4] sm:$0xf]
      %v323 = vld [vmem:[%s4 + $0x4] sm:$0x1]
      %v324 = vld [vmem:[%s295] sm:$0xf]
      %v325 = vld [vmem:[%s295 + $0x4] sm:$0xf]
      %v326 = vld [vmem:[%s295 + $0x8] sm:$0xf]
      %v327 = vld [vmem:[%s295 + $0xc] sm:$0xf]
      %v328 = vld [vmem:[%s295 + $0x10] sm:$0xf]
      %v329 = vld [vmem:[%s295 + $0x14] sm:$0xf]
      %v330 = vld [vmem:[%s295 + $0x18] sm:$0xf]
      %v331 = vld [vmem:[%s295 + $0x1c] sm:$0xf]
      %v332 = vld [vmem:[%s295 + $0x20] sm:$0xf]
      %v333 = vld [vmem:[%s295 + $0x24] sm:$0xf]
      %v334 = vld [vmem:[%s295 + $0x28] sm:$0xf]
      %v335 = vld [vmem:[%s295 + $0x2c] sm:$0xf]
      %v336 = vld [vmem:[%s295 + $0x30] sm:$0xf]
      %v337 = vld [vmem:[%s295 + $0x34] sm:$0xf]
      %v338 = vld [vmem:[%s295 + $0x38] sm:$0xf]
      %v339 = vld [vmem:[%s295 + $0x3c] sm:$0xf]
      %v340 = vld [vmem:[%s295 + $0x40] sm:$0xf]
      %v341 = vld [vmem:[%s295 + $0x44] sm:$0xf]
      %v342 = vld [vmem:[%s295 + $0x48] sm:$0xf]
      %v343 = vld [vmem:[%s295 + $0x4c] sm:$0xf]
      %v344 = vld [vmem:[%s295 + $0x50] sm:$0xf]
      %v345 = vld [vmem:[%s295 + $0x54] sm:$0xf]
      %v346 = vld [vmem:[%s295 + $0x58] sm:$0xf]
      %v347 = vld [vmem:[%s295 + $0x5c] sm:$0xf]
      %v348 = vld [vmem:[%s295 + $0x60] sm:$0xf]
      %v349 = vld [vmem:[%s295 + $0x64] sm:$0xf]
      %v350 = vld [vmem:[%s295 + $0x68] sm:$0xf]
      %v351 = vld [vmem:[%s295 + $0x6c] sm:$0xf]
      %v352 = vld [vmem:[%s295 + $0x70] sm:$0xf]
      %v353 = vld [vmem:[%s295 + $0x74] sm:$0xf]
      %v354 = vld [vmem:[%s295 + $0x78] sm:$0xf]
      %v355 = vld [vmem:[%s295 + $0x7c] sm:$0xf]
      %v388 = vunpack.c.l.b16 %v324
      %v389 = vunpack.c.l.b16 %v325
      %v390 = vunpack.c.l.b16 %v326
      %v391 = vunpack.c.l.b16 %v327
      %v392 = vunpack.c.l.b16 %v328
      %v393 = vunpack.c.l.b16 %v329
      %v394 = vunpack.c.l.b16 %v330
      %v395 = vunpack.c.l.b16 %v331
      %v396 = vunpack.c.l.b16 %v332
      %v397 = vunpack.c.l.b16 %v333
      %v398 = vunpack.c.l.b16 %v334
      %v399 = vunpack.c.l.b16 %v335
      %v400 = vunpack.c.l.b16 %v336
      %v401 = vunpack.c.l.b16 %v337
      %v402 = vunpack.c.l.b16 %v338
      %v403 = vunpack.c.l.b16 %v339
      %v404 = vunpack.c.l.b16 %v340
      %v405 = vunpack.c.l.b16 %v341
      %v406 = vunpack.c.l.b16 %v342
      %v407 = vunpack.c.l.b16 %v343
      %v408 = vunpack.c.l.b16 %v344
      %v409 = vunpack.c.l.b16 %v345
      %v410 = vunpack.c.l.b16 %v346
      %v411 = vunpack.c.l.b16 %v347
      %v412 = vunpack.c.l.b16 %v348
      %v413 = vunpack.c.l.b16 %v349
      %v414 = vunpack.c.l.b16 %v350
      %v415 = vunpack.c.l.b16 %v351
      %v416 = vunpack.c.l.b16 %v352
      %v417 = vunpack.c.l.b16 %v353
      %v418 = vunpack.c.l.b16 %v354
      %v419 = vunpack.c.l.b16 %v355
      %v420 = vpack.c.b16 %v389, %v388
      %v421 = vpack.c.b16 %v391, %v390
      %v422 = vpack.c.b16 %v393, %v392
      %v423 = vpack.c.b16 %v395, %v394
      %v424 = vpack.c.b16 %v397, %v396
      %v425 = vpack.c.b16 %v399, %v398
      %v426 = vpack.c.b16 %v401, %v400
      %v427 = vpack.c.b16 %v403, %v402
      %v428 = vpack.c.b16 %v405, %v404
      %v429 = vpack.c.b16 %v407, %v406
      %v430 = vpack.c.b16 %v409, %v408
      %v431 = vpack.c.b16 %v411, %v410
      %v432 = vpack.c.b16 %v413, %v412
      %v433 = vpack.c.b16 %v415, %v414
      %v434 = vpack.c.b16 %v417, %v416
      %v435 = vpack.c.b16 %v419, %v418
      %v438 = vunpack.c.l.b16 %v322
      %v439 = vunpack.c.l.b16 %v323
      %v440 = vpack.c.b16 %v439, %v438
      %vm441 = vcmask 72704
      %v443 = vsel %vm441, %v420, 0
      %v446 = vsel %vm441, %v421, 0
      %v449 = vsel %vm441, %v422, 0
      %v452 = vsel %vm441, %v423, 0
      %v455 = vsel %vm441, %v424, 0
      %v458 = vsel %vm441, %v425, 0
      %v461 = vsel %vm441, %v426, 0
      %v464 = vsel %vm441, %v427, 0
      %v467 = vsel %vm441, %v428, 0
      %v470 = vsel %vm441, %v429, 0
      %v473 = vsel %vm441, %v430, 0
      %v476 = vsel %vm441, %v431, 0
      %v479 = vsel %vm441, %v432, 0
      %v482 = vsel %vm441, %v433, 0
      %v485 = vsel %vm441, %v434, 0
      %v488 = vsel %vm441, %v435, 0
      %vm490 = vcmask 1043456
      %vm491 = vcmask 1044480
      %v492 = vsel %vm490, 4294967295, 65535
      %v493 = vsel %vm491, %v492, 0
      %v495 = vand.u32 %v440, %v493
      %497 = vmatpush.bf16.msra.mxu0 0
      %498 = vmatpush.bf16.msra.mxu0 0
      %499 = vmatpush.bf16.msra.mxu0 0
      %500 = vmatpush.bf16.msra.mxu0 0
      %501 = vmatpush.bf16.msra.mxu0 0
      %502 = vmatpush.bf16.msra.mxu0 0
      %503 = vmatpush.bf16.msra.mxu0 0
      %504 = vmatpush.bf16.msra.mxu0 %v495
      %505 = vmatmul.bf16.gmra.mxu0 %v443
      %v506 = vpop.f32.mrf.mxu0
      %v507 = vadd.f32 0.0, %v506
      %v508 = vpop.f32.mrf.mxu0
      %v509 = vadd.f32 0.0, %v508
      %510 = vmatmul.bf16.gmra.mxu0 %v446
      %v511 = vpop.f32.mrf.mxu0
      %v512 = vadd.f32 0.0, %v511
      %v513 = vpop.f32.mrf.mxu0
      %v514 = vadd.f32 0.0, %v513
      %515 = vmatmul.bf16.gmra.mxu0 %v449
      %v516 = vpop.f32.mrf.mxu0
      %v517 = vadd.f32 0.0, %v516
      %v518 = vpop.f32.mrf.mxu0
      %v519 = vadd.f32 0.0, %v518
      %520 = vmatmul.bf16.gmra.mxu0 %v452
      %v521 = vpop.f32.mrf.mxu0
      %v522 = vadd.f32 0.0, %v521
      %v523 = vpop.f32.mrf.mxu0
      %v524 = vadd.f32 0.0, %v523
      %525 = vmatmul.bf16.gmra.mxu0 %v455
      %v526 = vpop.f32.mrf.mxu0
      %v527 = vadd.f32 0.0, %v526
      %v528 = vpop.f32.mrf.mxu0
      %v529 = vadd.f32 0.0, %v528
      %530 = vmatmul.bf16.gmra.mxu0 %v458
      %v531 = vpop.f32.mrf.mxu0
      %v532 = vadd.f32 0.0, %v531
      %v533 = vpop.f32.mrf.mxu0
      %v534 = vadd.f32 0.0, %v533
      %535 = vmatmul.bf16.gmra.mxu0 %v461
      %v536 = vpop.f32.mrf.mxu0
      %v537 = vadd.f32 0.0, %v536
      %v538 = vpop.f32.mrf.mxu0
      %v539 = vadd.f32 0.0, %v538
      %540 = vmatmul.bf16.gmra.mxu0 %v464
      %v541 = vpop.f32.mrf.mxu0
      %v542 = vadd.f32 0.0, %v541
      %v543 = vpop.f32.mrf.mxu0
      %v544 = vadd.f32 0.0, %v543
      %545 = vmatmul.bf16.gmra.mxu0 %v467
      %v546 = vpop.f32.mrf.mxu0
      %v547 = vadd.f32 0.0, %v546
      %v548 = vpop.f32.mrf.mxu0
      %v549 = vadd.f32 0.0, %v548
      %550 = vmatmul.bf16.gmra.mxu0 %v470
      %v551 = vpop.f32.mrf.mxu0
      %v552 = vadd.f32 0.0, %v551
      %v553 = vpop.f32.mrf.mxu0
      %v554 = vadd.f32 0.0, %v553
      %555 = vmatmul.bf16.gmra.mxu0 %v473
      %v556 = vpop.f32.mrf.mxu0
      %v557 = vadd.f32 0.0, %v556
      %v558 = vpop.f32.mrf.mxu0
      %v559 = vadd.f32 0.0, %v558
      %560 = vmatmul.bf16.gmra.mxu0 %v476
      %v561 = vpop.f32.mrf.mxu0
      %v562 = vadd.f32 0.0, %v561
      %v563 = vpop.f32.mrf.mxu0
      %v564 = vadd.f32 0.0, %v563
      %565 = vmatmul.bf16.gmra.mxu0 %v479
      %v566 = vpop.f32.mrf.mxu0
      %v567 = vadd.f32 0.0, %v566
      %v568 = vpop.f32.mrf.mxu0
      %v569 = vadd.f32 0.0, %v568
      %570 = vmatmul.bf16.gmra.mxu0 %v482
      %v571 = vpop.f32.mrf.mxu0
      %v572 = vadd.f32 0.0, %v571
      %v573 = vpop.f32.mrf.mxu0
      %v574 = vadd.f32 0.0, %v573
      %575 = vmatmul.bf16.gmra.mxu0 %v485
      %v576 = vpop.f32.mrf.mxu0
      %v577 = vadd.f32 0.0, %v576
      %v578 = vpop.f32.mrf.mxu0
      %v579 = vadd.f32 0.0, %v578
      %580 = vmatmul.bf16.gmra.mxu0 %v488
      %v581 = vpop.f32.mrf.mxu0
      %v582 = vadd.f32 0.0, %v581
      %v583 = vpop.f32.mrf.mxu0
      %v584 = vadd.f32 0.0, %v583
      %585 = vdwg.mxu0
      %v586 = vld [vmem:[%s301] sm:$0xf]
      %v587 = vld [vmem:[%s301 + $0x4] sm:$0xf]
      %v588 = vld [vmem:[%s301 + $0x8] sm:$0xf]
      %v589 = vld [vmem:[%s301 + $0xc] sm:$0xf]
      %v590 = vld [vmem:[%s301 + $0x10] sm:$0xf]
      %v591 = vld [vmem:[%s301 + $0x14] sm:$0xf]
      %v592 = vld [vmem:[%s301 + $0x18] sm:$0xf]
      %v593 = vld [vmem:[%s301 + $0x1c] sm:$0xf]
      %v594 = vld [vmem:[%s301 + $0x20] sm:$0xf]
      %v595 = vld [vmem:[%s301 + $0x24] sm:$0xf]
      %v596 = vld [vmem:[%s301 + $0x28] sm:$0xf]
      %v597 = vld [vmem:[%s301 + $0x2c] sm:$0xf]
      %v598 = vld [vmem:[%s301 + $0x30] sm:$0xf]
      %v599 = vld [vmem:[%s301 + $0x34] sm:$0xf]
      %v600 = vld [vmem:[%s301 + $0x38] sm:$0xf]
      %v601 = vld [vmem:[%s301 + $0x3c] sm:$0xf]
      %v602 = vld [vmem:[%s301 + $0x40] sm:$0xf]
      %v603 = vld [vmem:[%s301 + $0x44] sm:$0xf]
      %v604 = vld [vmem:[%s301 + $0x48] sm:$0xf]
      %v605 = vld [vmem:[%s301 + $0x4c] sm:$0xf]
      %v606 = vld [vmem:[%s301 + $0x50] sm:$0xf]
      %v607 = vld [vmem:[%s301 + $0x54] sm:$0xf]
      %v608 = vld [vmem:[%s301 + $0x58] sm:$0xf]
      %v609 = vld [vmem:[%s301 + $0x5c] sm:$0xf]
      %v610 = vld [vmem:[%s301 + $0x60] sm:$0xf]
      %v611 = vld [vmem:[%s301 + $0x64] sm:$0xf]
      %v612 = vld [vmem:[%s301 + $0x68] sm:$0xf]
      %v613 = vld [vmem:[%s301 + $0x6c] sm:$0xf]
      %v614 = vld [vmem:[%s301 + $0x70] sm:$0xf]
      %v615 = vld [vmem:[%s301 + $0x74] sm:$0xf]
      %v616 = vld [vmem:[%s301 + $0x78] sm:$0xf]
      %v617 = vld [vmem:[%s301 + $0x7c] sm:$0xf]
      %v650 = vunpack.c.l.b16 %v586
      %v651 = vunpack.c.l.b16 %v587
      %v652 = vunpack.c.l.b16 %v588
      %v653 = vunpack.c.l.b16 %v589
      %v654 = vunpack.c.l.b16 %v590
      %v655 = vunpack.c.l.b16 %v591
      %v656 = vunpack.c.l.b16 %v592
      %v657 = vunpack.c.l.b16 %v593
      %v658 = vunpack.c.l.b16 %v594
      %v659 = vunpack.c.l.b16 %v595
      %v660 = vunpack.c.l.b16 %v596
      %v661 = vunpack.c.l.b16 %v597
      %v662 = vunpack.c.l.b16 %v598
      %v663 = vunpack.c.l.b16 %v599
      %v664 = vunpack.c.l.b16 %v600
      %v665 = vunpack.c.l.b16 %v601
      %v666 = vunpack.c.l.b16 %v602
      %v667 = vunpack.c.l.b16 %v603
      %v668 = vunpack.c.l.b16 %v604
      %v669 = vunpack.c.l.b16 %v605
      %v670 = vunpack.c.l.b16 %v606
      %v671 = vunpack.c.l.b16 %v607
      %v672 = vunpack.c.l.b16 %v608
      %v673 = vunpack.c.l.b16 %v609
      %v674 = vunpack.c.l.b16 %v610
      %v675 = vunpack.c.l.b16 %v611
      %v676 = vunpack.c.l.b16 %v612
      %v677 = vunpack.c.l.b16 %v613
      %v678 = vunpack.c.l.b16 %v614
      %v679 = vunpack.c.l.b16 %v615
      %v680 = vunpack.c.l.b16 %v616
      %v681 = vunpack.c.l.b16 %v617
      %v682 = vpack.c.b16 %v651, %v650
      %v683 = vpack.c.b16 %v653, %v652
      %v684 = vpack.c.b16 %v655, %v654
      %v685 = vpack.c.b16 %v657, %v656
      %v686 = vpack.c.b16 %v659, %v658
      %v687 = vpack.c.b16 %v661, %v660
      %v688 = vpack.c.b16 %v663, %v662
      %v689 = vpack.c.b16 %v665, %v664
      %v690 = vpack.c.b16 %v667, %v666
      %v691 = vpack.c.b16 %v669, %v668
      %v692 = vpack.c.b16 %v671, %v670
      %v693 = vpack.c.b16 %v673, %v672
      %v694 = vpack.c.b16 %v675, %v674
      %v695 = vpack.c.b16 %v677, %v676
      %v696 = vpack.c.b16 %v679, %v678
      %v697 = vpack.c.b16 %v681, %v680
      %v699 = vsel %vm441, %v682, 0
      %v702 = vsel %vm441, %v683, 0
      %v705 = vsel %vm441, %v684, 0
      %v708 = vsel %vm441, %v685, 0
      %v711 = vsel %vm441, %v686, 0
      %v714 = vsel %vm441, %v687, 0
      %v717 = vsel %vm441, %v688, 0
      %v720 = vsel %vm441, %v689, 0
      %v723 = vsel %vm441, %v690, 0
      %v726 = vsel %vm441, %v691, 0
      %v729 = vsel %vm441, %v692, 0
      %v732 = vsel %vm441, %v693, 0
      %v735 = vsel %vm441, %v694, 0
      %v738 = vsel %vm441, %v695, 0
      %v741 = vsel %vm441, %v696, 0
      %v744 = vsel %vm441, %v697, 0
      %746 = vmatpush.bf16.msra.mxu0 0
      %747 = vmatpush.bf16.msra.mxu0 0
      %748 = vmatpush.bf16.msra.mxu0 0
      %749 = vmatpush.bf16.msra.mxu0 0
      %750 = vmatpush.bf16.msra.mxu0 0
      %751 = vmatpush.bf16.msra.mxu0 0
      %752 = vmatpush.bf16.msra.mxu0 0
      %753 = vmatpush.bf16.msra.mxu0 %v495
      %754 = vmatmul.bf16.gmra.mxu0 %v699
      %v755 = vpop.f32.mrf.mxu0
      %v756 = vadd.f32 0.0, %v755
      %v757 = vpop.f32.mrf.mxu0
      %v758 = vadd.f32 0.0, %v757
      %759 = vmatmul.bf16.gmra.mxu0 %v702
      %v760 = vpop.f32.mrf.mxu0
      %v761 = vadd.f32 0.0, %v760
      %v762 = vpop.f32.mrf.mxu0
      %v763 = vadd.f32 0.0, %v762
      %764 = vmatmul.bf16.gmra.mxu0 %v705
      %v765 = vpop.f32.mrf.mxu0
      %v766 = vadd.f32 0.0, %v765
      %v767 = vpop.f32.mrf.mxu0
      %v768 = vadd.f32 0.0, %v767
      %769 = vmatmul.bf16.gmra.mxu0 %v708
      %v770 = vpop.f32.mrf.mxu0
      %v771 = vadd.f32 0.0, %v770
      %v772 = vpop.f32.mrf.mxu0
      %v773 = vadd.f32 0.0, %v772
      %774 = vmatmul.bf16.gmra.mxu0 %v711
      %v775 = vpop.f32.mrf.mxu0
      %v776 = vadd.f32 0.0, %v775
      %v777 = vpop.f32.mrf.mxu0
      %v778 = vadd.f32 0.0, %v777
      %779 = vmatmul.bf16.gmra.mxu0 %v714
      %v780 = vpop.f32.mrf.mxu0
      %v781 = vadd.f32 0.0, %v780
      %v782 = vpop.f32.mrf.mxu0
      %v783 = vadd.f32 0.0, %v782
      %784 = vmatmul.bf16.gmra.mxu0 %v717
      %v785 = vpop.f32.mrf.mxu0
      %v786 = vadd.f32 0.0, %v785
      %v787 = vpop.f32.mrf.mxu0
      %v788 = vadd.f32 0.0, %v787
      %789 = vmatmul.bf16.gmra.mxu0 %v720
      %v790 = vpop.f32.mrf.mxu0
      %v791 = vadd.f32 0.0, %v790
      %v792 = vpop.f32.mrf.mxu0
      %v793 = vadd.f32 0.0, %v792
      %794 = vmatmul.bf16.gmra.mxu0 %v723
      %v795 = vpop.f32.mrf.mxu0
      %v796 = vadd.f32 0.0, %v795
      %v797 = vpop.f32.mrf.mxu0
      %v798 = vadd.f32 0.0, %v797
      %799 = vmatmul.bf16.gmra.mxu0 %v726
      %v800 = vpop.f32.mrf.mxu0
      %v801 = vadd.f32 0.0, %v800
      %v802 = vpop.f32.mrf.mxu0
      %v803 = vadd.f32 0.0, %v802
      %804 = vmatmul.bf16.gmra.mxu0 %v729
      %v805 = vpop.f32.mrf.mxu0
      %v806 = vadd.f32 0.0, %v805
      %v807 = vpop.f32.mrf.mxu0
      %v808 = vadd.f32 0.0, %v807
      %809 = vmatmul.bf16.gmra.mxu0 %v732
      %v810 = vpop.f32.mrf.mxu0
      %v811 = vadd.f32 0.0, %v810
      %v812 = vpop.f32.mrf.mxu0
      %v813 = vadd.f32 0.0, %v812
      %814 = vmatmul.bf16.gmra.mxu0 %v735
      %v815 = vpop.f32.mrf.mxu0
      %v816 = vadd.f32 0.0, %v815
      %v817 = vpop.f32.mrf.mxu0
      %v818 = vadd.f32 0.0, %v817
      %819 = vmatmul.bf16.gmra.mxu0 %v738
      %v820 = vpop.f32.mrf.mxu0
      %v821 = vadd.f32 0.0, %v820
      %v822 = vpop.f32.mrf.mxu0
      %v823 = vadd.f32 0.0, %v822
      %824 = vmatmul.bf16.gmra.mxu0 %v741
      %v825 = vpop.f32.mrf.mxu0
      %v826 = vadd.f32 0.0, %v825
      %v827 = vpop.f32.mrf.mxu0
      %v828 = vadd.f32 0.0, %v827
      %829 = vmatmul.bf16.gmra.mxu0 %v744
      %v830 = vpop.f32.mrf.mxu0
      %v831 = vadd.f32 0.0, %v830
      %v832 = vpop.f32.mrf.mxu0
      %v833 = vadd.f32 0.0, %v832
      %834 = vdwg.mxu0
      %v835 = vld [vmem:[%s307] sm:$0xf]
      %v836 = vld [vmem:[%s307 + $0x4] sm:$0xf]
      %v837 = vld [vmem:[%s307 + $0x8] sm:$0xf]
      %v838 = vld [vmem:[%s307 + $0xc] sm:$0xf]
      %v839 = vld [vmem:[%s307 + $0x10] sm:$0xf]
      %v840 = vld [vmem:[%s307 + $0x14] sm:$0xf]
      %v841 = vld [vmem:[%s307 + $0x18] sm:$0xf]
      %v842 = vld [vmem:[%s307 + $0x1c] sm:$0xf]
      %v843 = vld [vmem:[%s307 + $0x20] sm:$0xf]
      %v844 = vld [vmem:[%s307 + $0x24] sm:$0xf]
      %v845 = vld [vmem:[%s307 + $0x28] sm:$0xf]
      %v846 = vld [vmem:[%s307 + $0x2c] sm:$0xf]
      %v847 = vld [vmem:[%s307 + $0x30] sm:$0xf]
      %v848 = vld [vmem:[%s307 + $0x34] sm:$0xf]
      %v849 = vld [vmem:[%s307 + $0x38] sm:$0xf]
      %v850 = vld [vmem:[%s307 + $0x3c] sm:$0xf]
      %v851 = vld [vmem:[%s307 + $0x40] sm:$0xf]
      %v852 = vld [vmem:[%s307 + $0x44] sm:$0xf]
      %v853 = vld [vmem:[%s307 + $0x48] sm:$0xf]
      %v854 = vld [vmem:[%s307 + $0x4c] sm:$0xf]
      %v855 = vld [vmem:[%s307 + $0x50] sm:$0xf]
      %v856 = vld [vmem:[%s307 + $0x54] sm:$0xf]
      %v857 = vld [vmem:[%s307 + $0x58] sm:$0xf]
      %v858 = vld [vmem:[%s307 + $0x5c] sm:$0xf]
      %v859 = vld [vmem:[%s307 + $0x60] sm:$0xf]
      %v860 = vld [vmem:[%s307 + $0x64] sm:$0xf]
      %v861 = vld [vmem:[%s307 + $0x68] sm:$0xf]
      %v862 = vld [vmem:[%s307 + $0x6c] sm:$0xf]
      %v863 = vld [vmem:[%s307 + $0x70] sm:$0xf]
      %v864 = vld [vmem:[%s307 + $0x74] sm:$0xf]
      %v865 = vld [vmem:[%s307 + $0x78] sm:$0xf]
      %v866 = vld [vmem:[%s307 + $0x7c] sm:$0xf]
      %v899 = vunpack.c.l.b16 %v835
      %v900 = vunpack.c.l.b16 %v836
      %v901 = vunpack.c.l.b16 %v837
      %v902 = vunpack.c.l.b16 %v838
      %v903 = vunpack.c.l.b16 %v839
      %v904 = vunpack.c.l.b16 %v840
      %v905 = vunpack.c.l.b16 %v841
      %v906 = vunpack.c.l.b16 %v842
      %v907 = vunpack.c.l.b16 %v843
      %v908 = vunpack.c.l.b16 %v844
      %v909 = vunpack.c.l.b16 %v845
      %v910 = vunpack.c.l.b16 %v846
      %v911 = vunpack.c.l.b16 %v847
      %v912 = vunpack.c.l.b16 %v848
      %v913 = vunpack.c.l.b16 %v849
      %v914 = vunpack.c.l.b16 %v850
      %v915 = vunpack.c.l.b16 %v851
      %v916 = vunpack.c.l.b16 %v852
      %v917 = vunpack.c.l.b16 %v853
      %v918 = vunpack.c.l.b16 %v854
      %v919 = vunpack.c.l.b16 %v855
      %v920 = vunpack.c.l.b16 %v856
      %v921 = vunpack.c.l.b16 %v857
      %v922 = vunpack.c.l.b16 %v858
      %v923 = vunpack.c.l.b16 %v859
      %v924 = vunpack.c.l.b16 %v860
      %v925 = vunpack.c.l.b16 %v861
      %v926 = vunpack.c.l.b16 %v862
      %v927 = vunpack.c.l.b16 %v863
      %v928 = vunpack.c.l.b16 %v864
      %v929 = vunpack.c.l.b16 %v865
      %v930 = vunpack.c.l.b16 %v866
      %v931 = vpack.c.b16 %v900, %v899
      %v932 = vpack.c.b16 %v902, %v901
      %v933 = vpack.c.b16 %v904, %v903
      %v934 = vpack.c.b16 %v906, %v905
      %v935 = vpack.c.b16 %v908, %v907
      %v936 = vpack.c.b16 %v910, %v909
      %v937 = vpack.c.b16 %v912, %v911
      %v938 = vpack.c.b16 %v914, %v913
      %v939 = vpack.c.b16 %v916, %v915
      %v940 = vpack.c.b16 %v918, %v917
      %v941 = vpack.c.b16 %v920, %v919
      %v942 = vpack.c.b16 %v922, %v921
      %v943 = vpack.c.b16 %v924, %v923
      %v944 = vpack.c.b16 %v926, %v925
      %v945 = vpack.c.b16 %v928, %v927
      %v946 = vpack.c.b16 %v930, %v929
      %v948 = vsel %vm441, %v931, 0
      %v951 = vsel %vm441, %v932, 0
      %v954 = vsel %vm441, %v933, 0
      %v957 = vsel %vm441, %v934, 0
      %v960 = vsel %vm441, %v935, 0
      %v963 = vsel %vm441, %v936, 0
      %v966 = vsel %vm441, %v937, 0
      %v969 = vsel %vm441, %v938, 0
      %v972 = vsel %vm441, %v939, 0
      %v975 = vsel %vm441, %v940, 0
      %v978 = vsel %vm441, %v941, 0
      %v981 = vsel %vm441, %v942, 0
      %v984 = vsel %vm441, %v943, 0
      %v987 = vsel %vm441, %v944, 0
      %v990 = vsel %vm441, %v945, 0
      %v993 = vsel %vm441, %v946, 0
      %995 = vmatpush.bf16.msra.mxu0 0
      %996 = vmatpush.bf16.msra.mxu0 0
      %997 = vmatpush.bf16.msra.mxu0 0
      %998 = vmatpush.bf16.msra.mxu0 0
      %999 = vmatpush.bf16.msra.mxu0 0
      %1000 = vmatpush.bf16.msra.mxu0 0
      %1001 = vmatpush.bf16.msra.mxu0 0
      %1002 = vmatpush.bf16.msra.mxu0 %v495
      %1003 = vmatmul.bf16.gmra.mxu0 %v948
      %v1004 = vpop.f32.mrf.mxu0
      %v1005 = vadd.f32 0.0, %v1004
      %v1006 = vpop.f32.mrf.mxu0
      %v1007 = vadd.f32 0.0, %v1006
      %1008 = vmatmul.bf16.gmra.mxu0 %v951
      %v1009 = vpop.f32.mrf.mxu0
      %v1010 = vadd.f32 0.0, %v1009
      %v1011 = vpop.f32.mrf.mxu0
      %v1012 = vadd.f32 0.0, %v1011
      %1013 = vmatmul.bf16.gmra.mxu0 %v954
      %v1014 = vpop.f32.mrf.mxu0
      %v1015 = vadd.f32 0.0, %v1014
      %v1016 = vpop.f32.mrf.mxu0
      %v1017 = vadd.f32 0.0, %v1016
      %1018 = vmatmul.bf16.gmra.mxu0 %v957
      %v1019 = vpop.f32.mrf.mxu0
      %v1020 = vadd.f32 0.0, %v1019
      %v1021 = vpop.f32.mrf.mxu0
      %v1022 = vadd.f32 0.0, %v1021
      %1023 = vmatmul.bf16.gmra.mxu0 %v960
      %v1024 = vpop.f32.mrf.mxu0
      %v1025 = vadd.f32 0.0, %v1024
      %v1026 = vpop.f32.mrf.mxu0
      %v1027 = vadd.f32 0.0, %v1026
      %1028 = vmatmul.bf16.gmra.mxu0 %v963
      %v1029 = vpop.f32.mrf.mxu0
      %v1030 = vadd.f32 0.0, %v1029
      %v1031 = vpop.f32.mrf.mxu0
      %v1032 = vadd.f32 0.0, %v1031
      %1033 = vmatmul.bf16.gmra.mxu0 %v966
      %v1034 = vpop.f32.mrf.mxu0
      %v1035 = vadd.f32 0.0, %v1034
      %v1036 = vpop.f32.mrf.mxu0
      %v1037 = vadd.f32 0.0, %v1036
      %1038 = vmatmul.bf16.gmra.mxu0 %v969
      %v1039 = vpop.f32.mrf.mxu0
      %v1040 = vadd.f32 0.0, %v1039
      %v1041 = vpop.f32.mrf.mxu0
      %v1042 = vadd.f32 0.0, %v1041
      %1043 = vmatmul.bf16.gmra.mxu0 %v972
      %v1044 = vpop.f32.mrf.mxu0
      %v1045 = vadd.f32 0.0, %v1044
      %v1046 = vpop.f32.mrf.mxu0
      %v1047 = vadd.f32 0.0, %v1046
      %1048 = vmatmul.bf16.gmra.mxu0 %v975
      %v1049 = vpop.f32.mrf.mxu0
      %v1050 = vadd.f32 0.0, %v1049
      %v1051 = vpop.f32.mrf.mxu0
      %v1052 = vadd.f32 0.0, %v1051
      %1053 = vmatmul.bf16.gmra.mxu0 %v978
      %v1054 = vpop.f32.mrf.mxu0
      %v1055 = vadd.f32 0.0, %v1054
      %v1056 = vpop.f32.mrf.mxu0
      %v1057 = vadd.f32 0.0, %v1056
      %1058 = vmatmul.bf16.gmra.mxu0 %v981
      %v1059 = vpop.f32.mrf.mxu0
      %v1060 = vadd.f32 0.0, %v1059
      %v1061 = vpop.f32.mrf.mxu0
      %v1062 = vadd.f32 0.0, %v1061
      %1063 = vmatmul.bf16.gmra.mxu0 %v984
      %v1064 = vpop.f32.mrf.mxu0
      %v1065 = vadd.f32 0.0, %v1064
      %v1066 = vpop.f32.mrf.mxu0
      %v1067 = vadd.f32 0.0, %v1066
      %1068 = vmatmul.bf16.gmra.mxu0 %v987
      %v1069 = vpop.f32.mrf.mxu0
      %v1070 = vadd.f32 0.0, %v1069
      %v1071 = vpop.f32.mrf.mxu0
      %v1072 = vadd.f32 0.0, %v1071
      %1073 = vmatmul.bf16.gmra.mxu0 %v990
      %v1074 = vpop.f32.mrf.mxu0
      %v1075 = vadd.f32 0.0, %v1074
      %v1076 = vpop.f32.mrf.mxu0
      %v1077 = vadd.f32 0.0, %v1076
      %1078 = vmatmul.bf16.gmra.mxu0 %v993
      %v1079 = vpop.f32.mrf.mxu0
      %v1080 = vadd.f32 0.0, %v1079
      %v1081 = vpop.f32.mrf.mxu0
      %v1082 = vadd.f32 0.0, %v1081
      %1083 = vdwg.mxu0
      %v1084 = vld [vmem:[%s313] sm:$0xf]
      %v1085 = vld [vmem:[%s313 + $0x4] sm:$0xf]
      %v1086 = vld [vmem:[%s313 + $0x8] sm:$0xf]
      %v1087 = vld [vmem:[%s313 + $0xc] sm:$0xf]
      %v1088 = vld [vmem:[%s313 + $0x10] sm:$0xf]
      %v1089 = vld [vmem:[%s313 + $0x14] sm:$0xf]
      %v1090 = vld [vmem:[%s313 + $0x18] sm:$0xf]
      %v1091 = vld [vmem:[%s313 + $0x1c] sm:$0xf]
      %v1092 = vld [vmem:[%s313 + $0x20] sm:$0xf]
      %v1093 = vld [vmem:[%s313 + $0x24] sm:$0xf]
      %v1094 = vld [vmem:[%s313 + $0x28] sm:$0xf]
      %v1095 = vld [vmem:[%s313 + $0x2c] sm:$0xf]
      %v1096 = vld [vmem:[%s313 + $0x30] sm:$0xf]
      %v1097 = vld [vmem:[%s313 + $0x34] sm:$0xf]
      %v1098 = vld [vmem:[%s313 + $0x38] sm:$0xf]
      %v1099 = vld [vmem:[%s313 + $0x3c] sm:$0xf]
      %v1100 = vld [vmem:[%s313 + $0x40] sm:$0xf]
      %v1101 = vld [vmem:[%s313 + $0x44] sm:$0xf]
      %v1102 = vld [vmem:[%s313 + $0x48] sm:$0xf]
      %v1103 = vld [vmem:[%s313 + $0x4c] sm:$0xf]
      %v1104 = vld [vmem:[%s313 + $0x50] sm:$0xf]
      %v1105 = vld [vmem:[%s313 + $0x54] sm:$0xf]
      %v1106 = vld [vmem:[%s313 + $0x58] sm:$0xf]
      %v1107 = vld [vmem:[%s313 + $0x5c] sm:$0xf]
      %v1108 = vld [vmem:[%s313 + $0x60] sm:$0xf]
      %v1109 = vld [vmem:[%s313 + $0x64] sm:$0xf]
      %v1110 = vld [vmem:[%s313 + $0x68] sm:$0xf]
      %v1111 = vld [vmem:[%s313 + $0x6c] sm:$0xf]
      %v1112 = vld [vmem:[%s313 + $0x70] sm:$0xf]
      %v1113 = vld [vmem:[%s313 + $0x74] sm:$0xf]
      %v1114 = vld [vmem:[%s313 + $0x78] sm:$0xf]
      %v1115 = vld [vmem:[%s313 + $0x7c] sm:$0xf]
      %v1148 = vunpack.c.l.b16 %v1084
      %v1149 = vunpack.c.l.b16 %v1085
      %v1150 = vunpack.c.l.b16 %v1086
      %v1151 = vunpack.c.l.b16 %v1087
      %v1152 = vunpack.c.l.b16 %v1088
      %v1153 = vunpack.c.l.b16 %v1089
      %v1154 = vunpack.c.l.b16 %v1090
      %v1155 = vunpack.c.l.b16 %v1091
      %v1156 = vunpack.c.l.b16 %v1092
      %v1157 = vunpack.c.l.b16 %v1093
      %v1158 = vunpack.c.l.b16 %v1094
      %v1159 = vunpack.c.l.b16 %v1095
      %v1160 = vunpack.c.l.b16 %v1096
      %v1161 = vunpack.c.l.b16 %v1097
      %v1162 = vunpack.c.l.b16 %v1098
      %v1163 = vunpack.c.l.b16 %v1099
      %v1164 = vunpack.c.l.b16 %v1100
      %v1165 = vunpack.c.l.b16 %v1101
      %v1166 = vunpack.c.l.b16 %v1102
      %v1167 = vunpack.c.l.b16 %v1103
      %v1168 = vunpack.c.l.b16 %v1104
      %v1169 = vunpack.c.l.b16 %v1105
      %v1170 = vunpack.c.l.b16 %v1106
      %v1171 = vunpack.c.l.b16 %v1107
      %v1172 = vunpack.c.l.b16 %v1108
      %v1173 = vunpack.c.l.b16 %v1109
      %v1174 = vunpack.c.l.b16 %v1110
      %v1175 = vunpack.c.l.b16 %v1111
      %v1176 = vunpack.c.l.b16 %v1112
      %v1177 = vunpack.c.l.b16 %v1113
      %v1178 = vunpack.c.l.b16 %v1114
      %v1179 = vunpack.c.l.b16 %v1115
      %v1180 = vpack.c.b16 %v1149, %v1148
      %v1181 = vpack.c.b16 %v1151, %v1150
      %v1182 = vpack.c.b16 %v1153, %v1152
      %v1183 = vpack.c.b16 %v1155, %v1154
      %v1184 = vpack.c.b16 %v1157, %v1156
      %v1185 = vpack.c.b16 %v1159, %v1158
      %v1186 = vpack.c.b16 %v1161, %v1160
      %v1187 = vpack.c.b16 %v1163, %v1162
      %v1188 = vpack.c.b16 %v1165, %v1164
      %v1189 = vpack.c.b16 %v1167, %v1166
      %v1190 = vpack.c.b16 %v1169, %v1168
      %v1191 = vpack.c.b16 %v1171, %v1170
      %v1192 = vpack.c.b16 %v1173, %v1172
      %v1193 = vpack.c.b16 %v1175, %v1174
      %v1194 = vpack.c.b16 %v1177, %v1176
      %v1195 = vpack.c.b16 %v1179, %v1178
      %v1197 = vsel %vm441, %v1180, 0
      %v1200 = vsel %vm441, %v1181, 0
      %v1203 = vsel %vm441, %v1182, 0
      %v1206 = vsel %vm441, %v1183, 0
      %v1209 = vsel %vm441, %v1184, 0
      %v1212 = vsel %vm441, %v1185, 0
      %v1215 = vsel %vm441, %v1186, 0
      %v1218 = vsel %vm441, %v1187, 0
      %v1221 = vsel %vm441, %v1188, 0
      %v1224 = vsel %vm441, %v1189, 0
      %v1227 = vsel %vm441, %v1190, 0
      %v1230 = vsel %vm441, %v1191, 0
      %v1233 = vsel %vm441, %v1192, 0
      %v1236 = vsel %vm441, %v1193, 0
      %v1239 = vsel %vm441, %v1194, 0
      %v1242 = vsel %vm441, %v1195, 0
      %1244 = vmatpush.bf16.msra.mxu0 0
      %1245 = vmatpush.bf16.msra.mxu0 0
      %1246 = vmatpush.bf16.msra.mxu0 0
      %1247 = vmatpush.bf16.msra.mxu0 0
      %1248 = vmatpush.bf16.msra.mxu0 0
      %1249 = vmatpush.bf16.msra.mxu0 0
      %1250 = vmatpush.bf16.msra.mxu0 0
      %1251 = vmatpush.bf16.msra.mxu0 %v495
      %1252 = vmatmul.bf16.gmra.mxu0 %v1197
      %v1253 = vpop.f32.mrf.mxu0
      %v1254 = vadd.f32 0.0, %v1253
      %v1255 = vpop.f32.mrf.mxu0
      %v1256 = vadd.f32 0.0, %v1255
      %1257 = vmatmul.bf16.gmra.mxu0 %v1200
      %v1258 = vpop.f32.mrf.mxu0
      %v1259 = vadd.f32 0.0, %v1258
      %v1260 = vpop.f32.mrf.mxu0
      %v1261 = vadd.f32 0.0, %v1260
      %1262 = vmatmul.bf16.gmra.mxu0 %v1203
      %v1263 = vpop.f32.mrf.mxu0
      %v1264 = vadd.f32 0.0, %v1263
      %v1265 = vpop.f32.mrf.mxu0
      %v1266 = vadd.f32 0.0, %v1265
      %1267 = vmatmul.bf16.gmra.mxu0 %v1206
      %v1268 = vpop.f32.mrf.mxu0
      %v1269 = vadd.f32 0.0, %v1268
      %v1270 = vpop.f32.mrf.mxu0
      %v1271 = vadd.f32 0.0, %v1270
      %1272 = vmatmul.bf16.gmra.mxu0 %v1209
      %v1273 = vpop.f32.mrf.mxu0
      %v1274 = vadd.f32 0.0, %v1273
      %v1275 = vpop.f32.mrf.mxu0
      %v1276 = vadd.f32 0.0, %v1275
      %1277 = vmatmul.bf16.gmra.mxu0 %v1212
      %v1278 = vpop.f32.mrf.mxu0
      %v1279 = vadd.f32 0.0, %v1278
      %v1280 = vpop.f32.mrf.mxu0
      %v1281 = vadd.f32 0.0, %v1280
      %1282 = vmatmul.bf16.gmra.mxu0 %v1215
      %v1283 = vpop.f32.mrf.mxu0
      %v1284 = vadd.f32 0.0, %v1283
      %v1285 = vpop.f32.mrf.mxu0
      %v1286 = vadd.f32 0.0, %v1285
      %1287 = vmatmul.bf16.gmra.mxu0 %v1218
      %v1288 = vpop.f32.mrf.mxu0
      %v1289 = vadd.f32 0.0, %v1288
      %v1290 = vpop.f32.mrf.mxu0
      %v1291 = vadd.f32 0.0, %v1290
      %1292 = vmatmul.bf16.gmra.mxu0 %v1221
      %v1293 = vpop.f32.mrf.mxu0
      %v1294 = vadd.f32 0.0, %v1293
      %v1295 = vpop.f32.mrf.mxu0
      %v1296 = vadd.f32 0.0, %v1295
      %1297 = vmatmul.bf16.gmra.mxu0 %v1224
      %v1298 = vpop.f32.mrf.mxu0
      %v1299 = vadd.f32 0.0, %v1298
      %v1300 = vpop.f32.mrf.mxu0
      %v1301 = vadd.f32 0.0, %v1300
      %1302 = vmatmul.bf16.gmra.mxu0 %v1227
      %v1303 = vpop.f32.mrf.mxu0
      %v1304 = vadd.f32 0.0, %v1303
      %v1305 = vpop.f32.mrf.mxu0
      %v1306 = vadd.f32 0.0, %v1305
      %1307 = vmatmul.bf16.gmra.mxu0 %v1230
      %v1308 = vpop.f32.mrf.mxu0
      %v1309 = vadd.f32 0.0, %v1308
      %v1310 = vpop.f32.mrf.mxu0
      %v1311 = vadd.f32 0.0, %v1310
      %1312 = vmatmul.bf16.gmra.mxu0 %v1233
      %v1313 = vpop.f32.mrf.mxu0
      %v1314 = vadd.f32 0.0, %v1313
      %v1315 = vpop.f32.mrf.mxu0
      %v1316 = vadd.f32 0.0, %v1315
      %1317 = vmatmul.bf16.gmra.mxu0 %v1236
      %v1318 = vpop.f32.mrf.mxu0
      %v1319 = vadd.f32 0.0, %v1318
      %v1320 = vpop.f32.mrf.mxu0
      %v1321 = vadd.f32 0.0, %v1320
      %1322 = vmatmul.bf16.gmra.mxu0 %v1239
      %v1323 = vpop.f32.mrf.mxu0
      %v1324 = vadd.f32 0.0, %v1323
      %v1325 = vpop.f32.mrf.mxu0
      %v1326 = vadd.f32 0.0, %v1325
      %1327 = vmatmul.bf16.gmra.mxu0 %v1242
      %v1328 = vpop.f32.mrf.mxu0
      %v1329 = vadd.f32 0.0, %v1328
      %v1330 = vpop.f32.mrf.mxu0
      %v1331 = vadd.f32 0.0, %v1330
      %1332 = vdwg.mxu0
      %v1333 = vmax.f32 %v507, %v756
      %v1334 = vmax.f32 %v509, %v758
      %v1335 = vmax.f32 %v512, %v761
      %v1336 = vmax.f32 %v514, %v763
      %v1337 = vmax.f32 %v517, %v766
      %v1338 = vmax.f32 %v519, %v768
      %v1339 = vmax.f32 %v522, %v771
      %v1340 = vmax.f32 %v524, %v773
      %v1341 = vmax.f32 %v527, %v776
      %v1342 = vmax.f32 %v529, %v778
      %v1343 = vmax.f32 %v532, %v781
      %v1344 = vmax.f32 %v534, %v783
      %v1345 = vmax.f32 %v537, %v786
      %v1346 = vmax.f32 %v539, %v788
      %v1347 = vmax.f32 %v542, %v791
      %v1348 = vmax.f32 %v544, %v793
      %v1349 = vmax.f32 %v547, %v796
      %v1350 = vmax.f32 %v549, %v798
      %v1351 = vmax.f32 %v552, %v801
      %v1352 = vmax.f32 %v554, %v803
      %v1353 = vmax.f32 %v557, %v806
      %v1354 = vmax.f32 %v559, %v808
      %v1355 = vmax.f32 %v562, %v811
      %v1356 = vmax.f32 %v564, %v813
      %v1357 = vmax.f32 %v567, %v816
      %v1358 = vmax.f32 %v569, %v818
      %v1359 = vmax.f32 %v572, %v821
      %v1360 = vmax.f32 %v574, %v823
      %v1361 = vmax.f32 %v577, %v826
      %v1362 = vmax.f32 %v579, %v828
      %v1363 = vmax.f32 %v582, %v831
      %v1364 = vmax.f32 %v584, %v833
      %v1365 = vmax.f32 %v1005, %v1254
      %v1366 = vmax.f32 %v1007, %v1256
      %v1367 = vmax.f32 %v1010, %v1259
      %v1368 = vmax.f32 %v1012, %v1261
      %v1369 = vmax.f32 %v1015, %v1264
      %v1370 = vmax.f32 %v1017, %v1266
      %v1371 = vmax.f32 %v1020, %v1269
      %v1372 = vmax.f32 %v1022, %v1271
      %v1373 = vmax.f32 %v1025, %v1274
      %v1374 = vmax.f32 %v1027, %v1276
      %v1375 = vmax.f32 %v1030, %v1279
      %v1376 = vmax.f32 %v1032, %v1281
      %v1377 = vmax.f32 %v1035, %v1284
      %v1378 = vmax.f32 %v1037, %v1286
      %v1379 = vmax.f32 %v1040, %v1289
      %v1380 = vmax.f32 %v1042, %v1291
      %v1381 = vmax.f32 %v1045, %v1294
      %v1382 = vmax.f32 %v1047, %v1296
      %v1383 = vmax.f32 %v1050, %v1299
      %v1384 = vmax.f32 %v1052, %v1301
      %v1385 = vmax.f32 %v1055, %v1304
      %v1386 = vmax.f32 %v1057, %v1306
      %v1387 = vmax.f32 %v1060, %v1309
      %v1388 = vmax.f32 %v1062, %v1311
      %v1389 = vmax.f32 %v1065, %v1314
      %v1390 = vmax.f32 %v1067, %v1316
      %v1391 = vmax.f32 %v1070, %v1319
      %v1392 = vmax.f32 %v1072, %v1321
      %v1393 = vmax.f32 %v1075, %v1324
      %v1394 = vmax.f32 %v1077, %v1326
      %v1395 = vmax.f32 %v1080, %v1329
      %v1396 = vmax.f32 %v1082, %v1331
      %v1397 = vmax.f32 %v1333, %v1365
      %v1398 = vmax.f32 %v1334, %v1366
      %v1399 = vmax.f32 %v1335, %v1367
      %v1400 = vmax.f32 %v1336, %v1368
      %v1401 = vmax.f32 %v1337, %v1369
      %v1402 = vmax.f32 %v1338, %v1370
      %v1403 = vmax.f32 %v1339, %v1371
      %v1404 = vmax.f32 %v1340, %v1372
      %v1405 = vmax.f32 %v1341, %v1373
      %v1406 = vmax.f32 %v1342, %v1374
      %v1407 = vmax.f32 %v1343, %v1375
      %v1408 = vmax.f32 %v1344, %v1376
      %v1409 = vmax.f32 %v1345, %v1377
      %v1410 = vmax.f32 %v1346, %v1378
      %v1411 = vmax.f32 %v1347, %v1379
      %v1412 = vmax.f32 %v1348, %v1380
      %v1413 = vmax.f32 %v1349, %v1381
      %v1414 = vmax.f32 %v1350, %v1382
      %v1415 = vmax.f32 %v1351, %v1383
      %v1416 = vmax.f32 %v1352, %v1384
      %v1417 = vmax.f32 %v1353, %v1385
      %v1418 = vmax.f32 %v1354, %v1386
      %v1419 = vmax.f32 %v1355, %v1387
      %v1420 = vmax.f32 %v1356, %v1388
      %v1421 = vmax.f32 %v1357, %v1389
      %v1422 = vmax.f32 %v1358, %v1390
      %v1423 = vmax.f32 %v1359, %v1391
      %v1424 = vmax.f32 %v1360, %v1392
      %v1425 = vmax.f32 %v1361, %v1393
      %v1426 = vmax.f32 %v1362, %v1394
      %v1427 = vmax.f32 %v1363, %v1395
      %v1428 = vmax.f32 %v1364, %v1396
      %v1429 = vld [vmem:[%s5] sm:$0x1]
      %v1431 = vperm.slane %v1429, 0
      %v1433 = vadd.f32 %v1397, %v1431
      %v1434 = vadd.f32 %v1398, %v1431
      %v1435 = vadd.f32 %v1399, %v1431
      %v1436 = vadd.f32 %v1400, %v1431
      %v1437 = vadd.f32 %v1401, %v1431
      %v1438 = vadd.f32 %v1402, %v1431
      %v1439 = vadd.f32 %v1403, %v1431
      %v1440 = vadd.f32 %v1404, %v1431
      %v1441 = vadd.f32 %v1405, %v1431
      %v1442 = vadd.f32 %v1406, %v1431
      %v1443 = vadd.f32 %v1407, %v1431
      %v1444 = vadd.f32 %v1408, %v1431
      %v1445 = vadd.f32 %v1409, %v1431
      %v1446 = vadd.f32 %v1410, %v1431
      %v1447 = vadd.f32 %v1411, %v1431
      %v1448 = vadd.f32 %v1412, %v1431
      %v1449 = vadd.f32 %v1413, %v1431
      %v1450 = vadd.f32 %v1414, %v1431
      %v1451 = vadd.f32 %v1415, %v1431
      %v1452 = vadd.f32 %v1416, %v1431
      %v1453 = vadd.f32 %v1417, %v1431
      %v1454 = vadd.f32 %v1418, %v1431
      %v1455 = vadd.f32 %v1419, %v1431
      %v1456 = vadd.f32 %v1420, %v1431
      %v1457 = vadd.f32 %v1421, %v1431
      %v1458 = vadd.f32 %v1422, %v1431
      %v1459 = vadd.f32 %v1423, %v1431
      %v1460 = vadd.f32 %v1424, %v1431
      %v1461 = vadd.f32 %v1425, %v1431
      %v1462 = vadd.f32 %v1426, %v1431
      %v1463 = vadd.f32 %v1427, %v1431
      %v1464 = vadd.f32 %v1428, %v1431
      %v1465 = vmax.f32 %v1433, 0.0
      %v1466 = vmax.f32 %v1434, 0.0
      %v1467 = vmax.f32 %v1435, 0.0
      %v1468 = vmax.f32 %v1436, 0.0
      %v1469 = vmax.f32 %v1437, 0.0
      %v1470 = vmax.f32 %v1438, 0.0
      %v1471 = vmax.f32 %v1439, 0.0
      %v1472 = vmax.f32 %v1440, 0.0
      %v1473 = vmax.f32 %v1441, 0.0
      %v1474 = vmax.f32 %v1442, 0.0
      %v1475 = vmax.f32 %v1443, 0.0
      %v1476 = vmax.f32 %v1444, 0.0
      %v1477 = vmax.f32 %v1445, 0.0
      %v1478 = vmax.f32 %v1446, 0.0
      %v1479 = vmax.f32 %v1447, 0.0
      %v1480 = vmax.f32 %v1448, 0.0
      %v1481 = vmax.f32 %v1449, 0.0
      %v1482 = vmax.f32 %v1450, 0.0
      %v1483 = vmax.f32 %v1451, 0.0
      %v1484 = vmax.f32 %v1452, 0.0
      %v1485 = vmax.f32 %v1453, 0.0
      %v1486 = vmax.f32 %v1454, 0.0
      %v1487 = vmax.f32 %v1455, 0.0
      %v1488 = vmax.f32 %v1456, 0.0
      %v1489 = vmax.f32 %v1457, 0.0
      %v1490 = vmax.f32 %v1458, 0.0
      %v1491 = vmax.f32 %v1459, 0.0
      %v1492 = vmax.f32 %v1460, 0.0
      %v1493 = vmax.f32 %v1461, 0.0
      %v1494 = vmax.f32 %v1462, 0.0
      %v1495 = vmax.f32 %v1463, 0.0
      %v1496 = vmax.f32 %v1464, 0.0
      %1497 = vst [vmem:[%s319] sm:$0xff] %v1465
      %1498 = vst [vmem:[%s319 + $0x8] sm:$0xff] %v1466
      %1499 = vst [vmem:[%s319 + $0x10] sm:$0xff] %v1467
      %1500 = vst [vmem:[%s319 + $0x18] sm:$0xff] %v1468
      %1501 = vst [vmem:[%s319 + $0x20] sm:$0xff] %v1469
      %1502 = vst [vmem:[%s319 + $0x28] sm:$0xff] %v1470
      %1503 = vst [vmem:[%s319 + $0x30] sm:$0xff] %v1471
      %1504 = vst [vmem:[%s319 + $0x38] sm:$0xff] %v1472
      %1505 = vst [vmem:[%s319 + $0x40] sm:$0xff] %v1473
      %1506 = vst [vmem:[%s319 + $0x48] sm:$0xff] %v1474
      %1507 = vst [vmem:[%s319 + $0x50] sm:$0xff] %v1475
      %1508 = vst [vmem:[%s319 + $0x58] sm:$0xff] %v1476
      %1509 = vst [vmem:[%s319 + $0x60] sm:$0xff] %v1477
      %1510 = vst [vmem:[%s319 + $0x68] sm:$0xff] %v1478
      %1511 = vst [vmem:[%s319 + $0x70] sm:$0xff] %v1479
      %1512 = vst [vmem:[%s319 + $0x78] sm:$0xff] %v1480
      %1513 = vst [vmem:[%s319 + $0x80] sm:$0xff] %v1481
      %1514 = vst [vmem:[%s319 + $0x88] sm:$0xff] %v1482
      %1515 = vst [vmem:[%s319 + $0x90] sm:$0xff] %v1483
      %1516 = vst [vmem:[%s319 + $0x98] sm:$0xff] %v1484
      %1517 = vst [vmem:[%s319 + $0xa0] sm:$0xff] %v1485
      %1518 = vst [vmem:[%s319 + $0xa8] sm:$0xff] %v1486
      %1519 = vst [vmem:[%s319 + $0xb0] sm:$0xff] %v1487
      %1520 = vst [vmem:[%s319 + $0xb8] sm:$0xff] %v1488
      %1521 = vst [vmem:[%s319 + $0xc0] sm:$0xff] %v1489
      %1522 = vst [vmem:[%s319 + $0xc8] sm:$0xff] %v1490
      %1523 = vst [vmem:[%s319 + $0xd0] sm:$0xff] %v1491
      %1524 = vst [vmem:[%s319 + $0xd8] sm:$0xff] %v1492
      %1525 = vst [vmem:[%s319 + $0xe0] sm:$0xff] %v1493
      %1526 = vst [vmem:[%s319 + $0xe8] sm:$0xff] %v1494
      %1527 = vst [vmem:[%s319 + $0xf0] sm:$0xff] %v1495
      %1528 = vst [vmem:[%s319 + $0xf8] sm:$0xff] %v1496
      %s1529 = smul.u32 32, %s17
      %p1530 = scmp.lt.s32.totalorder %s1529, 63
      %s1531 = scalar_select %p1530, %s1529, 63
      %s1532 = smul.addr %s1531, 8
      %s1533 = scalar_lea.vmem %s6, %s1532
      // Predicated region
      $region45: #{net_one_forward.3} parent=43 // pred_check
        %p1534 = pneg %p181
      $region46: #{net_one_forward.3} parent=43 // pred_check_branch
        %1536 = sbr.rel (%p1534) target = $region48
      $region47: #{net_one_forward.3} parent=43 // pred_region
        %s1537 = smul.u32 32, %s17
      $region48: #{net_one_forward.3} parent=43 // pred_fallthru
        _
    $region44: #{net_one_forward.3} parent=5 // pred_fallthru
      _
    %p1538 = scmp.le.s32.totalorder 2, %s12
    // Predicated region
    $region49: #{net_one_forward.3} parent=5 // pred_check
      %p1539 = pneg %p1538
    $region50: #{net_one_forward.3} parent=5 // pred_check_branch
      %1541 = sbr.rel (%p1539) target = $region52
    $region51: #{net_one_forward.3} parent=5 // pred_region
      %s1542 = ssub.s32 %s12, 2
      // Predicated region
      $region53: #{net_one_forward.3} parent=51 // pred_check
        %p1543 = pneg %p187
      $region54: #{net_one_forward.3} parent=51 // pred_check_branch
        %1545 = sbr.rel (%p1543) target = $region56
      $region55: #{net_one_forward.3} parent=51 // pred_region
        %s1546 = smul.u32 32, %s18
        %p1547 = scmp.lt.s32.totalorder %s1546, 63
        %s1548 = scalar_select %p1547, %s1546, 63
        %s1549 = smul.addr %s1548, 8
        %s1550 = scalar_lea.vmem %s6, %s1549
      $region56: #{net_one_forward.3} parent=51 // pred_fallthru
        _
    $region52: #{net_one_forward.3} parent=5 // pred_fallthru
      _
  $region6: #{net_one_forward.3} parent=0 // loop_footer
    %s16 = sadd.s32 1, %s12
  $region7: #{net_one_forward.3} parent=0 // loop_footer_branch
    %11 = sbr.rel target = $region3
  $region8: #{net_one_forward.3} parent=0 // loop_exit
    _

// kernel: net_one_forward.4
$region0: #{net_one_forward.4}
  #allocation0 [shape = 'u32[]', space=smem, size = 0x4, offset = 0x4, fixed_abs, tag = 'smem constant byte address 0x4 - core index']
  #allocation1 [shape = 'u32[72,128]{1,0:T(1,128)}', space=vmem, size = 0x9000, scoped, tag = 'internal scratch']
  %s0 = inlined_call_operand.vmem [shape: bf16[72,1152], index: 0, kind: input, shape index: {}]
  %s1 = inlined_call_operand.vmem [shape: bf16[72,1152], index: 1, kind: input, shape index: {}]
  %s2 = inlined_call_operand.vmem [shape: bf16[72,1152], index: 2, kind: input, shape index: {}]
  %s3 = inlined_call_operand.vmem [shape: bf16[72,1152], index: 3, kind: input, shape index: {}]
  %s4 = inlined_call_operand.vmem [shape: bf16[1152,128], index: 4, kind: input, shape index: {}]
  %s5 = inlined_call_operand.vmem [shape: f32[1,128], index: 5, kind: input, shape index: {}]
  %s6 = inlined_call_operand.vmem [shape: f32[72,128], index: 6, kind: output, shape index: {}]
  %s7 = sld [smem:[#allocation0]]
  $region34: #{net_one_forward.4} parent=0
    _
  %s9 = ssub.s32 1, %s7
  %s10 = scalar_select 0, %s9, %s7
  // Predicated region
  $region2: #{net_one_forward.4} parent=0 // pred_check
    _
  $region3: #{net_one_forward.4} parent=0 // pred_check_branch
    %12 = sbr.rel (0) target = $region5
  $region4: #{net_one_forward.4} parent=0 // pred_region
    _
  $region5: #{net_one_forward.4} parent=0 // pred_fallthru
    _
  // Predicated region
  $region6: #{net_one_forward.4} parent=0 // pred_check
    _
  $region7: #{net_one_forward.4} parent=0 // pred_check_branch
    %14 = sbr.rel (0) target = $region9
  $region8: #{net_one_forward.4} parent=0 // pred_region
    _
  $region9: #{net_one_forward.4} parent=0 // pred_fallthru
    _
  // Predicated region
  $region10: #{net_one_forward.4} parent=0 // pred_check
    _
  $region11: #{net_one_forward.4} parent=0 // pred_check_branch
    %16 = sbr.rel (0) target = $region13
  $region12: #{net_one_forward.4} parent=0 // pred_region
    _
  $region13: #{net_one_forward.4} parent=0 // pred_fallthru
    _
  // Predicated region
  $region14: #{net_one_forward.4} parent=0 // pred_check
    _
  $region15: #{net_one_forward.4} parent=0 // pred_check_branch
    %18 = sbr.rel (0) target = $region17
  $region16: #{net_one_forward.4} parent=0 // pred_region
    _
  $region17: #{net_one_forward.4} parent=0 // pred_fallthru
    _
  // Predicated region
  $region18: #{net_one_forward.4} parent=0 // pred_check
    _
  $region19: #{net_one_forward.4} parent=0 // pred_check_branch
    %20 = sbr.rel (0) target = $region21
  $region20: #{net_one_forward.4} parent=0 // pred_region
    _
  $region21: #{net_one_forward.4} parent=0 // pred_fallthru
    _
  // Predicated region
  $region22: #{net_one_forward.4} parent=0 // pred_check
    _
  $region23: #{net_one_forward.4} parent=0 // pred_check_branch
    %22 = sbr.rel (0) target = $region25
  $region24: #{net_one_forward.4} parent=0 // pred_region
    _
  $region25: #{net_one_forward.4} parent=0 // pred_fallthru
    _
  %v23 = vld [vmem:[%s4] sm:$0xf]
  %v24 = vld [vmem:[%s4 + $0x4] sm:$0xf]
  %v25 = vld [vmem:[%s4 + $0x8] sm:$0xf]
  %v26 = vld [vmem:[%s4 + $0xc] sm:$0xf]
  %v27 = vld [vmem:[%s4 + $0x10] sm:$0xf]
  %v28 = vld [vmem:[%s4 + $0x14] sm:$0xf]
  %v29 = vld [vmem:[%s4 + $0x18] sm:$0xf]
  %v30 = vld [vmem:[%s4 + $0x1c] sm:$0xf]
  %v31 = vld [vmem:[%s4 + $0x20] sm:$0xf]
  %v32 = vld [vmem:[%s4 + $0x24] sm:$0xf]
  %v33 = vld [vmem:[%s4 + $0x28] sm:$0xf]
  %v34 = vld [vmem:[%s4 + $0x2c] sm:$0xf]
  %v35 = vld [vmem:[%s4 + $0x30] sm:$0xf]
  %v36 = vld [vmem:[%s4 + $0x34] sm:$0xf]
  %v37 = vld [vmem:[%s4 + $0x38] sm:$0xf]
  %v38 = vld [vmem:[%s4 + $0x3c] sm:$0xf]
  %v39 = vld [vmem:[%s4 + $0x40] sm:$0xf]
  %v40 = vld [vmem:[%s4 + $0x44] sm:$0xf]
  %v41 = vld [vmem:[%s4 + $0x48] sm:$0xf]
  %v42 = vld [vmem:[%s4 + $0x4c] sm:$0xf]
  %v43 = vld [vmem:[%s4 + $0x50] sm:$0xf]
  %v44 = vld [vmem:[%s4 + $0x54] sm:$0xf]
  %v45 = vld [vmem:[%s4 + $0x58] sm:$0xf]
  %v46 = vld [vmem:[%s4 + $0x5c] sm:$0xf]
  %v47 = vld [vmem:[%s4 + $0x60] sm:$0xf]
  %v48 = vld [vmem:[%s4 + $0x64] sm:$0xf]
  %v49 = vld [vmem:[%s4 + $0x68] sm:$0xf]
  %v50 = vld [vmem:[%s4 + $0x6c] sm:$0xf]
  %v51 = vld [vmem:[%s4 + $0x70] sm:$0xf]
  %v52 = vld [vmem:[%s4 + $0x74] sm:$0xf]
  %v53 = vld [vmem:[%s4 + $0x78] sm:$0xf]
  %v54 = vld [vmem:[%s4 + $0x7c] sm:$0xf]
  %v55 = vld [vmem:[%s4 + $0x80] sm:$0xf]
  %v56 = vld [vmem:[%s4 + $0x84] sm:$0xf]
  %v57 = vld [vmem:[%s4 + $0x88] sm:$0xf]
  %v58 = vld [vmem:[%s4 + $0x8c] sm:$0xf]
  %v59 = vld [vmem:[%s4 + $0x90] sm:$0xf]
  %v60 = vld [vmem:[%s4 + $0x94] sm:$0xf]
  %v61 = vld [vmem:[%s4 + $0x98] sm:$0xf]
  %v62 = vld [vmem:[%s4 + $0x9c] sm:$0xf]
  %v63 = vld [vmem:[%s4 + $0xa0] sm:$0xf]
  %v64 = vld [vmem:[%s4 + $0xa4] sm:$0xf]
  %v65 = vld [vmem:[%s4 + $0xa8] sm:$0xf]
  %v66 = vld [vmem:[%s4 + $0xac] sm:$0xf]
  %v67 = vld [vmem:[%s4 + $0xb0] sm:$0xf]
  %v68 = vld [vmem:[%s4 + $0xb4] sm:$0xf]
  %v69 = vld [vmem:[%s4 + $0xb8] sm:$0xf]
  %v70 = vld [vmem:[%s4 + $0xbc] sm:$0xf]
  %v71 = vld [vmem:[%s4 + $0xc0] sm:$0xf]
  %v72 = vld [vmem:[%s4 + $0xc4] sm:$0xf]
  %v73 = vld [vmem:[%s4 + $0xc8] sm:$0xf]
  %v74 = vld [vmem:[%s4 + $0xcc] sm:$0xf]
  %v75 = vld [vmem:[%s4 + $0xd0] sm:$0xf]
  %v76 = vld [vmem:[%s4 + $0xd4] sm:$0xf]
  %v77 = vld [vmem:[%s4 + $0xd8] sm:$0xf]
  %v78 = vld [vmem:[%s4 + $0xdc] sm:$0xf]
  %v79 = vld [vmem:[%s4 + $0xe0] sm:$0xf]
  %v80 = vld [vmem:[%s4 + $0xe4] sm:$0xf]
  %v81 = vld [vmem:[%s4 + $0xe8] sm:$0xf]
  %v82 = vld [vmem:[%s4 + $0xec] sm:$0xf]
  %v83 = vld [vmem:[%s4 + $0xf0] sm:$0xf]
  %v84 = vld [vmem:[%s4 + $0xf4] sm:$0xf]
  %v85 = vld [vmem:[%s4 + $0xf8] sm:$0xf]
  %v86 = vld [vmem:[%s4 + $0xfc] sm:$0xf]
  %v87 = vld [vmem:[%s4 + $0x100] sm:$0xf]
  %v88 = vld [vmem:[%s4 + $0x104] sm:$0xf]
  %v89 = vld [vmem:[%s4 + $0x108] sm:$0xf]
  %v90 = vld [vmem:[%s4 + $0x10c] sm:$0xf]
  %v91 = vld [vmem:[%s4 + $0x110] sm:$0xf]
  %v92 = vld [vmem:[%s4 + $0x114] sm:$0xf]
  %v93 = vld [vmem:[%s4 + $0x118] sm:$0xf]
  %v94 = vld [vmem:[%s4 + $0x11c] sm:$0xf]
  %v95 = vld [vmem:[%s4 + $0x120] sm:$0xf]
  %v96 = vld [vmem:[%s4 + $0x124] sm:$0xf]
  %v97 = vld [vmem:[%s4 + $0x128] sm:$0xf]
  %v98 = vld [vmem:[%s4 + $0x12c] sm:$0xf]
  %v99 = vld [vmem:[%s4 + $0x130] sm:$0xf]
  %v100 = vld [vmem:[%s4 + $0x134] sm:$0xf]
  %v101 = vld [vmem:[%s4 + $0x138] sm:$0xf]
  %v102 = vld [vmem:[%s4 + $0x13c] sm:$0xf]
  %v103 = vld [vmem:[%s4 + $0x140] sm:$0xf]
  %v104 = vld [vmem:[%s4 + $0x144] sm:$0xf]
  %v105 = vld [vmem:[%s4 + $0x148] sm:$0xf]
  %v106 = vld [vmem:[%s4 + $0x14c] sm:$0xf]
  %v107 = vld [vmem:[%s4 + $0x150] sm:$0xf]
  %v108 = vld [vmem:[%s4 + $0x154] sm:$0xf]
  %v109 = vld [vmem:[%s4 + $0x158] sm:$0xf]
  %v110 = vld [vmem:[%s4 + $0x15c] sm:$0xf]
  %v111 = vld [vmem:[%s4 + $0x160] sm:$0xf]
  %v112 = vld [vmem:[%s4 + $0x164] sm:$0xf]
  %v113 = vld [vmem:[%s4 + $0x168] sm:$0xf]
  %v114 = vld [vmem:[%s4 + $0x16c] sm:$0xf]
  %v115 = vld [vmem:[%s4 + $0x170] sm:$0xf]
  %v116 = vld [vmem:[%s4 + $0x174] sm:$0xf]
  %v117 = vld [vmem:[%s4 + $0x178] sm:$0xf]
  %v118 = vld [vmem:[%s4 + $0x17c] sm:$0xf]
  %v119 = vld [vmem:[%s4 + $0x180] sm:$0xf]
  %v120 = vld [vmem:[%s4 + $0x184] sm:$0xf]
  %v121 = vld [vmem:[%s4 + $0x188] sm:$0xf]
  %v122 = vld [vmem:[%s4 + $0x18c] sm:$0xf]
  %v123 = vld [vmem:[%s4 + $0x190] sm:$0xf]
  %v124 = vld [vmem:[%s4 + $0x194] sm:$0xf]
  %v125 = vld [vmem:[%s4 + $0x198] sm:$0xf]
  %v126 = vld [vmem:[%s4 + $0x19c] sm:$0xf]
  %v127 = vld [vmem:[%s4 + $0x1a0] sm:$0xf]
  %v128 = vld [vmem:[%s4 + $0x1a4] sm:$0xf]
  %v129 = vld [vmem:[%s4 + $0x1a8] sm:$0xf]
  %v130 = vld [vmem:[%s4 + $0x1ac] sm:$0xf]
  %v131 = vld [vmem:[%s4 + $0x1b0] sm:$0xf]
  %v132 = vld [vmem:[%s4 + $0x1b4] sm:$0xf]
  %v133 = vld [vmem:[%s4 + $0x1b8] sm:$0xf]
  %v134 = vld [vmem:[%s4 + $0x1bc] sm:$0xf]
  %v135 = vld [vmem:[%s4 + $0x1c0] sm:$0xf]
  %v136 = vld [vmem:[%s4 + $0x1c4] sm:$0xf]
  %v137 = vld [vmem:[%s4 + $0x1c8] sm:$0xf]
  %v138 = vld [vmem:[%s4 + $0x1cc] sm:$0xf]
  %v139 = vld [vmem:[%s4 + $0x1d0] sm:$0xf]
  %v140 = vld [vmem:[%s4 + $0x1d4] sm:$0xf]
  %v141 = vld [vmem:[%s4 + $0x1d8] sm:$0xf]
  %v142 = vld [vmem:[%s4 + $0x1dc] sm:$0xf]
  %v143 = vld [vmem:[%s4 + $0x1e0] sm:$0xf]
  %v144 = vld [vmem:[%s4 + $0x1e4] sm:$0xf]
  %v145 = vld [vmem:[%s4 + $0x1e8] sm:$0xf]
  %v146 = vld [vmem:[%s4 + $0x1ec] sm:$0xf]
  %v147 = vld [vmem:[%s4 + $0x1f0] sm:$0xf]
  %v148 = vld [vmem:[%s4 + $0x1f4] sm:$0xf]
  %v149 = vld [vmem:[%s4 + $0x1f8] sm:$0xf]
  %v150 = vld [vmem:[%s4 + $0x1fc] sm:$0xf]
  %v151 = vld [vmem:[%s4 + $0x200] sm:$0xf]
  %v152 = vld [vmem:[%s4 + $0x204] sm:$0xf]
  %v153 = vld [vmem:[%s4 + $0x208] sm:$0xf]
  %v154 = vld [vmem:[%s4 + $0x20c] sm:$0xf]
  %v155 = vld [vmem:[%s4 + $0x210] sm:$0xf]
  %v156 = vld [vmem:[%s4 + $0x214] sm:$0xf]
  %v157 = vld [vmem:[%s4 + $0x218] sm:$0xf]
  %v158 = vld [vmem:[%s4 + $0x21c] sm:$0xf]
  %v159 = vld [vmem:[%s4 + $0x220] sm:$0xf]
  %v160 = vld [vmem:[%s4 + $0x224] sm:$0xf]
  %v161 = vld [vmem:[%s4 + $0x228] sm:$0xf]
  %v162 = vld [vmem:[%s4 + $0x22c] sm:$0xf]
  %v163 = vld [vmem:[%s4 + $0x230] sm:$0xf]
  %v164 = vld [vmem:[%s4 + $0x234] sm:$0xf]
  %v165 = vld [vmem:[%s4 + $0x238] sm:$0xf]
  %v166 = vld [vmem:[%s4 + $0x23c] sm:$0xf]
  %v167 = vld [vmem:[%s0] sm:$0xff]
  %v168 = vld [vmem:[%s0 + $0x8] sm:$0xff]
  %v169 = vld [vmem:[%s0 + $0x10] sm:$0xff]
  %v170 = vld [vmem:[%s0 + $0x18] sm:$0xff]
  %v171 = vld [vmem:[%s0 + $0x20] sm:$0xf]
  %v172 = vld [vmem:[%s0 + $0x24] sm:$0xff]
  %v173 = vld [vmem:[%s0 + $0x2c] sm:$0xff]
  %v174 = vld [vmem:[%s0 + $0x34] sm:$0xff]
  %v175 = vld [vmem:[%s0 + $0x3c] sm:$0xff]
  %v176 = vld [vmem:[%s0 + $0x44] sm:$0xf]
  %v177 = vld [vmem:[%s0 + $0x48] sm:$0xff]
  %v178 = vld [vmem:[%s0 + $0x50] sm:$0xff]
  %v179 = vld [vmem:[%s0 + $0x58] sm:$0xff]
  %v180 = vld [vmem:[%s0 + $0x60] sm:$0xff]
  %v181 = vld [vmem:[%s0 + $0x68] sm:$0xf]
  %v182 = vld [vmem:[%s0 + $0x6c] sm:$0xff]
  %v183 = vld [vmem:[%s0 + $0x74] sm:$0xff]
  %v184 = vld [vmem:[%s0 + $0x7c] sm:$0xff]
  %v185 = vld [vmem:[%s0 + $0x84] sm:$0xff]
  %v186 = vld [vmem:[%s0 + $0x8c] sm:$0xf]
  %v187 = vld [vmem:[%s0 + $0x90] sm:$0xff]
  %v188 = vld [vmem:[%s0 + $0x98] sm:$0xff]
  %v189 = vld [vmem:[%s0 + $0xa0] sm:$0xff]
  %v190 = vld [vmem:[%s0 + $0xa8] sm:$0xff]
  %v191 = vld [vmem:[%s0 + $0xb0] sm:$0xf]
  %v192 = vld [vmem:[%s0 + $0xb4] sm:$0xff]
  %v193 = vld [vmem:[%s0 + $0xbc] sm:$0xff]
  %v194 = vld [vmem:[%s0 + $0xc4] sm:$0xff]
  %v195 = vld [vmem:[%s0 + $0xcc] sm:$0xff]
  %v196 = vld [vmem:[%s0 + $0xd4] sm:$0xf]
  %v197 = vld [vmem:[%s0 + $0xd8] sm:$0xff]
  %v198 = vld [vmem:[%s0 + $0xe0] sm:$0xff]
  %v199 = vld [vmem:[%s0 + $0xe8] sm:$0xff]
  %v200 = vld [vmem:[%s0 + $0xf0] sm:$0xff]
  %v201 = vld [vmem:[%s0 + $0xf8] sm:$0xf]
  %v202 = vld [vmem:[%s0 + $0xfc] sm:$0xff]
  %v203 = vld [vmem:[%s0 + $0x104] sm:$0xff]
  %v204 = vld [vmem:[%s0 + $0x10c] sm:$0xff]
  %v205 = vld [vmem:[%s0 + $0x114] sm:$0xff]
  %v206 = vld [vmem:[%s0 + $0x11c] sm:$0xf]
  %v207 = vld [vmem:[%s0 + $0x120] sm:$0xff]
  %v208 = vld [vmem:[%s0 + $0x128] sm:$0xff]
  %v209 = vld [vmem:[%s0 + $0x130] sm:$0xff]
  %v210 = vld [vmem:[%s0 + $0x138] sm:$0xff]
  %v211 = vld [vmem:[%s0 + $0x140] sm:$0xf]
  %v257 = vunpack.c.l.b16 %v167
  %v258 = vunpack.c.h.b16 %v167
  %v259 = vunpack.c.l.b16 %v168
  %v260 = vunpack.c.h.b16 %v168
  %v261 = vunpack.c.l.b16 %v169
  %v262 = vunpack.c.h.b16 %v169
  %v263 = vunpack.c.l.b16 %v170
  %v264 = vunpack.c.h.b16 %v170
  %v265 = vunpack.c.l.b16 %v171
  %v266 = vunpack.c.l.b16 %v172
  %v267 = vunpack.c.h.b16 %v172
  %v268 = vunpack.c.l.b16 %v173
  %v269 = vunpack.c.h.b16 %v173
  %v270 = vunpack.c.l.b16 %v174
  %v271 = vunpack.c.h.b16 %v174
  %v272 = vunpack.c.l.b16 %v175
  %v273 = vunpack.c.h.b16 %v175
  %v274 = vunpack.c.l.b16 %v176
  %v275 = vunpack.c.l.b16 %v177
  %v276 = vunpack.c.h.b16 %v177
  %v277 = vunpack.c.l.b16 %v178
  %v278 = vunpack.c.h.b16 %v178
  %v279 = vunpack.c.l.b16 %v179
  %v280 = vunpack.c.h.b16 %v179
  %v281 = vunpack.c.l.b16 %v180
  %v282 = vunpack.c.h.b16 %v180
  %v283 = vunpack.c.l.b16 %v181
  %v284 = vunpack.c.l.b16 %v182
  %v285 = vunpack.c.h.b16 %v182
  %v286 = vunpack.c.l.b16 %v183
  %v287 = vunpack.c.h.b16 %v183
  %v288 = vunpack.c.l.b16 %v184
  %v289 = vunpack.c.h.b16 %v184
  %v290 = vunpack.c.l.b16 %v185
  %v291 = vunpack.c.h.b16 %v185
  %v292 = vunpack.c.l.b16 %v186
  %v293 = vunpack.c.l.b16 %v187
  %v294 = vunpack.c.h.b16 %v187
  %v295 = vunpack.c.l.b16 %v188
  %v296 = vunpack.c.h.b16 %v188
  %v297 = vunpack.c.l.b16 %v189
  %v298 = vunpack.c.h.b16 %v189
  %v299 = vunpack.c.l.b16 %v190
  %v300 = vunpack.c.h.b16 %v190
  %v301 = vunpack.c.l.b16 %v191
  %v302 = vunpack.c.l.b16 %v192
  %v303 = vunpack.c.h.b16 %v192
  %v304 = vunpack.c.l.b16 %v193
  %v305 = vunpack.c.h.b16 %v193
  %v306 = vunpack.c.l.b16 %v194
  %v307 = vunpack.c.h.b16 %v194
  %v308 = vunpack.c.l.b16 %v195
  %v309 = vunpack.c.h.b16 %v195
  %v310 = vunpack.c.l.b16 %v196
  %v311 = vunpack.c.l.b16 %v197
  %v312 = vunpack.c.h.b16 %v197
  %v313 = vunpack.c.l.b16 %v198
  %v314 = vunpack.c.h.b16 %v198
  %v315 = vunpack.c.l.b16 %v199
  %v316 = vunpack.c.h.b16 %v199
  %v317 = vunpack.c.l.b16 %v200
  %v318 = vunpack.c.h.b16 %v200
  %v319 = vunpack.c.l.b16 %v201
  %v320 = vunpack.c.l.b16 %v202
  %v321 = vunpack.c.h.b16 %v202
  %v322 = vunpack.c.l.b16 %v203
  %v323 = vunpack.c.h.b16 %v203
  %v324 = vunpack.c.l.b16 %v204
  %v325 = vunpack.c.h.b16 %v204
  %v326 = vunpack.c.l.b16 %v205
  %v327 = vunpack.c.h.b16 %v205
  %v328 = vunpack.c.l.b16 %v206
  %v329 = vunpack.c.l.b16 %v207
  %v330 = vunpack.c.h.b16 %v207
  %v331 = vunpack.c.l.b16 %v208
  %v332 = vunpack.c.h.b16 %v208
  %v333 = vunpack.c.l.b16 %v209
  %v334 = vunpack.c.h.b16 %v209
  %v335 = vunpack.c.l.b16 %v210
  %v336 = vunpack.c.h.b16 %v210
  %v337 = vunpack.c.l.b16 %v211
  %v338 = vpack.c.b16 %v266, %v257
  %v339 = vpack.c.b16 %v267, %v258
  %v340 = vpack.c.b16 %v268, %v259
  %v341 = vpack.c.b16 %v269, %v260
  %v342 = vpack.c.b16 %v270, %v261
  %v343 = vpack.c.b16 %v271, %v262
  %v344 = vpack.c.b16 %v272, %v263
  %v345 = vpack.c.b16 %v273, %v264
  %v346 = vpack.c.b16 %v274, %v265
  %v347 = vpack.c.b16 %v284, %v275
  %v348 = vpack.c.b16 %v285, %v276
  %v349 = vpack.c.b16 %v286, %v277
  %v350 = vpack.c.b16 %v287, %v278
  %v351 = vpack.c.b16 %v288, %v279
  %v352 = vpack.c.b16 %v289, %v280
  %v353 = vpack.c.b16 %v290, %v281
  %v354 = vpack.c.b16 %v291, %v282
  %v355 = vpack.c.b16 %v292, %v283
  %v356 = vpack.c.b16 %v302, %v293
  %v357 = vpack.c.b16 %v303, %v294
  %v358 = vpack.c.b16 %v304, %v295
  %v359 = vpack.c.b16 %v305, %v296
  %v360 = vpack.c.b16 %v306, %v297
  %v361 = vpack.c.b16 %v307, %v298
  %v362 = vpack.c.b16 %v308, %v299
  %v363 = vpack.c.b16 %v309, %v300
  %v364 = vpack.c.b16 %v310, %v301
  %v365 = vpack.c.b16 %v320, %v311
  %v366 = vpack.c.b16 %v321, %v312
  %v367 = vpack.c.b16 %v322, %v313
  %v368 = vpack.c.b16 %v323, %v314
  %v369 = vpack.c.b16 %v324, %v315
  %v370 = vpack.c.b16 %v325, %v316
  %v371 = vpack.c.b16 %v326, %v317
  %v372 = vpack.c.b16 %v327, %v318
  %v373 = vpack.c.b16 %v328, %v319
  %v374 = vpack.c.b16 %v329, %v329
  %v375 = vpack.c.b16 %v330, %v330
  %v376 = vpack.c.b16 %v331, %v331
  %v377 = vpack.c.b16 %v332, %v332
  %v378 = vpack.c.b16 %v333, %v333
  %v379 = vpack.c.b16 %v334, %v334
  %v380 = vpack.c.b16 %v335, %v335
  %v381 = vpack.c.b16 %v336, %v336
  %v382 = vpack.c.b16 %v337, %v337
  %v572 = vunpack.c.l.b16 %v23
  %v573 = vunpack.c.l.b16 %v24
  %v574 = vunpack.c.l.b16 %v25
  %v575 = vunpack.c.l.b16 %v26
  %v576 = vunpack.c.l.b16 %v27
  %v577 = vunpack.c.l.b16 %v28
  %v578 = vunpack.c.l.b16 %v29
  %v579 = vunpack.c.l.b16 %v30
  %v580 = vunpack.c.l.b16 %v31
  %v581 = vunpack.c.l.b16 %v32
  %v582 = vunpack.c.l.b16 %v33
  %v583 = vunpack.c.l.b16 %v34
  %v584 = vunpack.c.l.b16 %v35
  %v585 = vunpack.c.l.b16 %v36
  %v586 = vunpack.c.l.b16 %v37
  %v587 = vunpack.c.l.b16 %v38
  %v588 = vunpack.c.l.b16 %v39
  %v589 = vunpack.c.l.b16 %v40
  %v590 = vunpack.c.l.b16 %v41
  %v591 = vunpack.c.l.b16 %v42
  %v592 = vunpack.c.l.b16 %v43
  %v593 = vunpack.c.l.b16 %v44
  %v594 = vunpack.c.l.b16 %v45
  %v595 = vunpack.c.l.b16 %v46
  %v596 = vunpack.c.l.b16 %v47
  %v597 = vunpack.c.l.b16 %v48
  %v598 = vunpack.c.l.b16 %v49
  %v599 = vunpack.c.l.b16 %v50
  %v600 = vunpack.c.l.b16 %v51
  %v601 = vunpack.c.l.b16 %v52
  %v602 = vunpack.c.l.b16 %v53
  %v603 = vunpack.c.l.b16 %v54
  %v604 = vunpack.c.l.b16 %v55
  %v605 = vunpack.c.l.b16 %v56
  %v606 = vunpack.c.l.b16 %v57
  %v607 = vunpack.c.l.b16 %v58
  %v608 = vunpack.c.l.b16 %v59
  %v609 = vunpack.c.l.b16 %v60
  %v610 = vunpack.c.l.b16 %v61
  %v611 = vunpack.c.l.b16 %v62
  %v612 = vunpack.c.l.b16 %v63
  %v613 = vunpack.c.l.b16 %v64
  %v614 = vunpack.c.l.b16 %v65
  %v615 = vunpack.c.l.b16 %v66
  %v616 = vunpack.c.l.b16 %v67
  %v617 = vunpack.c.l.b16 %v68
  %v618 = vunpack.c.l.b16 %v69
  %v619 = vunpack.c.l.b16 %v70
  %v620 = vunpack.c.l.b16 %v71
  %v621 = vunpack.c.l.b16 %v72
  %v622 = vunpack.c.l.b16 %v73
  %v623 = vunpack.c.l.b16 %v74
  %v624 = vunpack.c.l.b16 %v75
  %v625 = vunpack.c.l.b16 %v76
  %v626 = vunpack.c.l.b16 %v77
  %v627 = vunpack.c.l.b16 %v78
  %v628 = vunpack.c.l.b16 %v79
  %v629 = vunpack.c.l.b16 %v80
  %v630 = vunpack.c.l.b16 %v81
  %v631 = vunpack.c.l.b16 %v82
  %v632 = vunpack.c.l.b16 %v83
  %v633 = vunpack.c.l.b16 %v84
  %v634 = vunpack.c.l.b16 %v85
  %v635 = vunpack.c.l.b16 %v86
  %v636 = vunpack.c.l.b16 %v87
  %v637 = vunpack.c.l.b16 %v88
  %v638 = vunpack.c.l.b16 %v89
  %v639 = vunpack.c.l.b16 %v90
  %v640 = vunpack.c.l.b16 %v91
  %v641 = vunpack.c.l.b16 %v92
  %v642 = vunpack.c.l.b16 %v93
  %v643 = vunpack.c.l.b16 %v94
  %v644 = vunpack.c.l.b16 %v95
  %v645 = vunpack.c.l.b16 %v96
  %v646 = vunpack.c.l.b16 %v97
  %v647 = vunpack.c.l.b16 %v98
  %v648 = vunpack.c.l.b16 %v99
  %v649 = vunpack.c.l.b16 %v100
  %v650 = vunpack.c.l.b16 %v101
  %v651 = vunpack.c.l.b16 %v102
  %v652 = vunpack.c.l.b16 %v103
  %v653 = vunpack.c.l.b16 %v104
  %v654 = vunpack.c.l.b16 %v105
  %v655 = vunpack.c.l.b16 %v106
  %v656 = vunpack.c.l.b16 %v107
  %v657 = vunpack.c.l.b16 %v108
  %v658 = vunpack.c.l.b16 %v109
  %v659 = vunpack.c.l.b16 %v110
  %v660 = vunpack.c.l.b16 %v111
  %v661 = vunpack.c.l.b16 %v112
  %v662 = vunpack.c.l.b16 %v113
  %v663 = vunpack.c.l.b16 %v114
  %v664 = vunpack.c.l.b16 %v115
  %v665 = vunpack.c.l.b16 %v116
  %v666 = vunpack.c.l.b16 %v117
  %v667 = vunpack.c.l.b16 %v118
  %v668 = vunpack.c.l.b16 %v119
  %v669 = vunpack.c.l.b16 %v120
  %v670 = vunpack.c.l.b16 %v121
  %v671 = vunpack.c.l.b16 %v122
  %v672 = vunpack.c.l.b16 %v123
  %v673 = vunpack.c.l.b16 %v124
  %v674 = vunpack.c.l.b16 %v125
  %v675 = vunpack.c.l.b16 %v126
  %v676 = vunpack.c.l.b16 %v127
  %v677 = vunpack.c.l.b16 %v128
  %v678 = vunpack.c.l.b16 %v129
  %v679 = vunpack.c.l.b16 %v130
  %v680 = vunpack.c.l.b16 %v131
  %v681 = vunpack.c.l.b16 %v132
  %v682 = vunpack.c.l.b16 %v133
  %v683 = vunpack.c.l.b16 %v134
  %v684 = vunpack.c.l.b16 %v135
  %v685 = vunpack.c.l.b16 %v136
  %v686 = vunpack.c.l.b16 %v137
  %v687 = vunpack.c.l.b16 %v138
  %v688 = vunpack.c.l.b16 %v139
  %v689 = vunpack.c.l.b16 %v140
  %v690 = vunpack.c.l.b16 %v141
  %v691 = vunpack.c.l.b16 %v142
  %v692 = vunpack.c.l.b16 %v143
  %v693 = vunpack.c.l.b16 %v144
  %v694 = vunpack.c.l.b16 %v145
  %v695 = vunpack.c.l.b16 %v146
  %v696 = vunpack.c.l.b16 %v147
  %v697 = vunpack.c.l.b16 %v148
  %v698 = vunpack.c.l.b16 %v149
  %v699 = vunpack.c.l.b16 %v150
  %v700 = vunpack.c.l.b16 %v151
  %v701 = vunpack.c.l.b16 %v152
  %v702 = vunpack.c.l.b16 %v153
  %v703 = vunpack.c.l.b16 %v154
  %v704 = vunpack.c.l.b16 %v155
  %v705 = vunpack.c.l.b16 %v156
  %v706 = vunpack.c.l.b16 %v157
  %v707 = vunpack.c.l.b16 %v158
  %v708 = vunpack.c.l.b16 %v159
  %v709 = vunpack.c.l.b16 %v160
  %v710 = vunpack.c.l.b16 %v161
  %v711 = vunpack.c.l.b16 %v162
  %v712 = vunpack.c.l.b16 %v163
  %v713 = vunpack.c.l.b16 %v164
  %v714 = vunpack.c.l.b16 %v165
  %v715 = vunpack.c.l.b16 %v166
  %v716 = vpack.c.b16 %v573, %v572
  %v717 = vpack.c.b16 %v575, %v574
  %v718 = vpack.c.b16 %v577, %v576
  %v719 = vpack.c.b16 %v579, %v578
  %v720 = vpack.c.b16 %v581, %v580
  %v721 = vpack.c.b16 %v583, %v582
  %v722 = vpack.c.b16 %v585, %v584
  %v723 = vpack.c.b16 %v587, %v586
  %v724 = vpack.c.b16 %v589, %v588
  %v725 = vpack.c.b16 %v591, %v590
  %v726 = vpack.c.b16 %v593, %v592
  %v727 = vpack.c.b16 %v595, %v594
  %v728 = vpack.c.b16 %v597, %v596
  %v729 = vpack.c.b16 %v599, %v598
  %v730 = vpack.c.b16 %v601, %v600
  %v731 = vpack.c.b16 %v603, %v602
  %v732 = vpack.c.b16 %v605, %v604
  %v733 = vpack.c.b16 %v607, %v606
  %v734 = vpack.c.b16 %v609, %v608
  %v735 = vpack.c.b16 %v611, %v610
  %v736 = vpack.c.b16 %v613, %v612
  %v737 = vpack.c.b16 %v615, %v614
  %v738 = vpack.c.b16 %v617, %v616
  %v739 = vpack.c.b16 %v619, %v618
  %v740 = vpack.c.b16 %v621, %v620
  %v741 = vpack.c.b16 %v623, %v622
  %v742 = vpack.c.b16 %v625, %v624
  %v743 = vpack.c.b16 %v627, %v626
  %v744 = vpack.c.b16 %v629, %v628
  %v745 = vpack.c.b16 %v631, %v630
  %v746 = vpack.c.b16 %v633, %v632
  %v747 = vpack.c.b16 %v635, %v634
  %v748 = vpack.c.b16 %v637, %v636
  %v749 = vpack.c.b16 %v639, %v638
  %v750 = vpack.c.b16 %v641, %v640
  %v751 = vpack.c.b16 %v643, %v642
  %v752 = vpack.c.b16 %v645, %v644
  %v753 = vpack.c.b16 %v647, %v646
  %v754 = vpack.c.b16 %v649, %v648
  %v755 = vpack.c.b16 %v651, %v650
  %v756 = vpack.c.b16 %v653, %v652
  %v757 = vpack.c.b16 %v655, %v654
  %v758 = vpack.c.b16 %v657, %v656
  %v759 = vpack.c.b16 %v659, %v658
  %v760 = vpack.c.b16 %v661, %v660
  %v761 = vpack.c.b16 %v663, %v662
  %v762 = vpack.c.b16 %v665, %v664
  %v763 = vpack.c.b16 %v667, %v666
  %v764 = vpack.c.b16 %v669, %v668
  %v765 = vpack.c.b16 %v671, %v670
  %v766 = vpack.c.b16 %v673, %v672
  %v767 = vpack.c.b16 %v675, %v674
  %v768 = vpack.c.b16 %v677, %v676
  %v769 = vpack.c.b16 %v679, %v678
  %v770 = vpack.c.b16 %v681, %v680
  %v771 = vpack.c.b16 %v683, %v682
  %v772 = vpack.c.b16 %v685, %v684
  %v773 = vpack.c.b16 %v687, %v686
  %v774 = vpack.c.b16 %v689, %v688
  %v775 = vpack.c.b16 %v691, %v690
  %v776 = vpack.c.b16 %v693, %v692
  %v777 = vpack.c.b16 %v695, %v694
  %v778 = vpack.c.b16 %v697, %v696
  %v779 = vpack.c.b16 %v699, %v698
  %v780 = vpack.c.b16 %v701, %v700
  %v781 = vpack.c.b16 %v703, %v702
  %v782 = vpack.c.b16 %v705, %v704
  %v783 = vpack.c.b16 %v707, %v706
  %v784 = vpack.c.b16 %v709, %v708
  %v785 = vpack.c.b16 %v711, %v710
  %v786 = vpack.c.b16 %v713, %v712
  %v787 = vpack.c.b16 %v715, %v714
  %860 = vmatpush.bf16.msra.mxu0 %v723
  %861 = vmatpush.bf16.msra.mxu0 %v722
  %862 = vmatpush.bf16.msra.mxu0 %v721
  %863 = vmatpush.bf16.msra.mxu0 %v720
  %864 = vmatpush.bf16.msra.mxu0 %v719
  %865 = vmatpush.bf16.msra.mxu0 %v718
  %866 = vmatpush.bf16.msra.mxu0 %v717
  %867 = vmatpush.bf16.msra.mxu0 %v716
  %868 = vmatmul.bf16.gmra.mxu0 %v338
  %v869 = vpop.f32.mrf.mxu0
  %v870 = vadd.f32 0.0, %v869
  %v871 = vpop.f32.mrf.mxu0
  %v872 = vadd.f32 0.0, %v871
  %873 = vmatmul.bf16.gmra.mxu0 %v347
  %v874 = vpop.f32.mrf.mxu0
  %v875 = vadd.f32 0.0, %v874
  %v876 = vpop.f32.mrf.mxu0
  %v877 = vadd.f32 0.0, %v876
  %878 = vmatmul.bf16.gmra.mxu0 %v356
  %v879 = vpop.f32.mrf.mxu0
  %v880 = vadd.f32 0.0, %v879
  %v881 = vpop.f32.mrf.mxu0
  %v882 = vadd.f32 0.0, %v881
  %883 = vmatmul.bf16.gmra.mxu0 %v365
  %v884 = vpop.f32.mrf.mxu0
  %v885 = vadd.f32 0.0, %v884
  %v886 = vpop.f32.mrf.mxu0
  %v887 = vadd.f32 0.0, %v886
  %888 = vmatmul.bf16.gmra.mxu0 %v374
  %v889 = vpop.f32.mrf.mxu0
  %v890 = vadd.f32 0.0, %v889
  %v891 = vpop.f32.mrf.mxu0
  %892 = vdwg.mxu0
  %893 = vmatpush.bf16.msra.mxu0 %v731
  %894 = vmatpush.bf16.msra.mxu0 %v730
  %895 = vmatpush.bf16.msra.mxu0 %v729
  %896 = vmatpush.bf16.msra.mxu0 %v728
  %897 = vmatpush.bf16.msra.mxu0 %v727
  %898 = vmatpush.bf16.msra.mxu0 %v726
  %899 = vmatpush.bf16.msra.mxu0 %v725
  %900 = vmatpush.bf16.msra.mxu0 %v724
  %901 = vmatmul.bf16.gmra.mxu0 %v339
  %v902 = vpop.f32.mrf.mxu0
  %v903 = vadd.f32 %v870, %v902
  %v904 = vpop.f32.mrf.mxu0
  %v905 = vadd.f32 %v872, %v904
  %906 = vmatmul.bf16.gmra.mxu0 %v348
  %v907 = vpop.f32.mrf.mxu0
  %v908 = vadd.f32 %v875, %v907
  %v909 = vpop.f32.mrf.mxu0
  %v910 = vadd.f32 %v877, %v909
  %911 = vmatmul.bf16.gmra.mxu0 %v357
  %v912 = vpop.f32.mrf.mxu0
  %v913 = vadd.f32 %v880, %v912
  %v914 = vpop.f32.mrf.mxu0
  %v915 = vadd.f32 %v882, %v914
  %916 = vmatmul.bf16.gmra.mxu0 %v366
  %v917 = vpop.f32.mrf.mxu0
  %v918 = vadd.f32 %v885, %v917
  %v919 = vpop.f32.mrf.mxu0
  %v920 = vadd.f32 %v887, %v919
  %921 = vmatmul.bf16.gmra.mxu0 %v375
  %v922 = vpop.f32.mrf.mxu0
  %v923 = vadd.f32 %v890, %v922
  %v924 = vpop.f32.mrf.mxu0
  %925 = vdwg.mxu0
  %926 = vmatpush.bf16.msra.mxu0 %v739
  %927 = vmatpush.bf16.msra.mxu0 %v738
  %928 = vmatpush.bf16.msra.mxu0 %v737
  %929 = vmatpush.bf16.msra.mxu0 %v736
  %930 = vmatpush.bf16.msra.mxu0 %v735
  %931 = vmatpush.bf16.msra.mxu0 %v734
  %932 = vmatpush.bf16.msra.mxu0 %v733
  %933 = vmatpush.bf16.msra.mxu0 %v732
  %934 = vmatmul.bf16.gmra.mxu0 %v340
  %v935 = vpop.f32.mrf.mxu0
  %v936 = vadd.f32 %v903, %v935
  %v937 = vpop.f32.mrf.mxu0
  %v938 = vadd.f32 %v905, %v937
  %939 = vmatmul.bf16.gmra.mxu0 %v349
  %v940 = vpop.f32.mrf.mxu0
  %v941 = vadd.f32 %v908, %v940
  %v942 = vpop.f32.mrf.mxu0
  %v943 = vadd.f32 %v910, %v942
  %944 = vmatmul.bf16.gmra.mxu0 %v358
  %v945 = vpop.f32.mrf.mxu0
  %v946 = vadd.f32 %v913, %v945
  %v947 = vpop.f32.mrf.mxu0
  %v948 = vadd.f32 %v915, %v947
  %949 = vmatmul.bf16.gmra.mxu0 %v367
  %v950 = vpop.f32.mrf.mxu0
  %v951 = vadd.f32 %v918, %v950
  %v952 = vpop.f32.mrf.mxu0
  %v953 = vadd.f32 %v920, %v952
  %954 = vmatmul.bf16.gmra.mxu0 %v376
  %v955 = vpop.f32.mrf.mxu0
  %v956 = vadd.f32 %v923, %v955
  %v957 = vpop.f32.mrf.mxu0
  %958 = vdwg.mxu0
  %959 = vmatpush.bf16.msra.mxu0 %v747
  %960 = vmatpush.bf16.msra.mxu0 %v746
  %961 = vmatpush.bf16.msra.mxu0 %v745
  %962 = vmatpush.bf16.msra.mxu0 %v744
  %963 = vmatpush.bf16.msra.mxu0 %v743
  %964 = vmatpush.bf16.msra.mxu0 %v742
  %965 = vmatpush.bf16.msra.mxu0 %v741
  %966 = vmatpush.bf16.msra.mxu0 %v740
  %967 = vmatmul.bf16.gmra.mxu0 %v341
  %v968 = vpop.f32.mrf.mxu0
  %v969 = vadd.f32 %v936, %v968
  %v970 = vpop.f32.mrf.mxu0
  %v971 = vadd.f32 %v938, %v970
  %972 = vmatmul.bf16.gmra.mxu0 %v350
  %v973 = vpop.f32.mrf.mxu0
  %v974 = vadd.f32 %v941, %v973
  %v975 = vpop.f32.mrf.mxu0
  %v976 = vadd.f32 %v943, %v975
  %977 = vmatmul.bf16.gmra.mxu0 %v359
  %v978 = vpop.f32.mrf.mxu0
  %v979 = vadd.f32 %v946, %v978
  %v980 = vpop.f32.mrf.mxu0
  %v981 = vadd.f32 %v948, %v980
  %982 = vmatmul.bf16.gmra.mxu0 %v368
  %v983 = vpop.f32.mrf.mxu0
  %v984 = vadd.f32 %v951, %v983
  %v985 = vpop.f32.mrf.mxu0
  %v986 = vadd.f32 %v953, %v985
  %987 = vmatmul.bf16.gmra.mxu0 %v377
  %v988 = vpop.f32.mrf.mxu0
  %v989 = vadd.f32 %v956, %v988
  %v990 = vpop.f32.mrf.mxu0
  %991 = vdwg.mxu0
  %992 = vmatpush.bf16.msra.mxu0 %v755
  %993 = vmatpush.bf16.msra.mxu0 %v754
  %994 = vmatpush.bf16.msra.mxu0 %v753
  %995 = vmatpush.bf16.msra.mxu0 %v752
  %996 = vmatpush.bf16.msra.mxu0 %v751
  %997 = vmatpush.bf16.msra.mxu0 %v750
  %998 = vmatpush.bf16.msra.mxu0 %v749
  %999 = vmatpush.bf16.msra.mxu0 %v748
  %1000 = vmatmul.bf16.gmra.mxu0 %v342
  %v1001 = vpop.f32.mrf.mxu0
  %v1002 = vadd.f32 %v969, %v1001
  %v1003 = vpop.f32.mrf.mxu0
  %v1004 = vadd.f32 %v971, %v1003
  %1005 = vmatmul.bf16.gmra.mxu0 %v351
  %v1006 = vpop.f32.mrf.mxu0
  %v1007 = vadd.f32 %v974, %v1006
  %v1008 = vpop.f32.mrf.mxu0
  %v1009 = vadd.f32 %v976, %v1008
  %1010 = vmatmul.bf16.gmra.mxu0 %v360
  %v1011 = vpop.f32.mrf.mxu0
  %v1012 = vadd.f32 %v979, %v1011
  %v1013 = vpop.f32.mrf.mxu0
  %v1014 = vadd.f32 %v981, %v1013
  %1015 = vmatmul.bf16.gmra.mxu0 %v369
  %v1016 = vpop.f32.mrf.mxu0
  %v1017 = vadd.f32 %v984, %v1016
  %v1018 = vpop.f32.mrf.mxu0
  %v1019 = vadd.f32 %v986, %v1018
  %1020 = vmatmul.bf16.gmra.mxu0 %v378
  %v1021 = vpop.f32.mrf.mxu0
  %v1022 = vadd.f32 %v989, %v1021
  %v1023 = vpop.f32.mrf.mxu0
  %1024 = vdwg.mxu0
  %1025 = vmatpush.bf16.msra.mxu0 %v763
  %1026 = vmatpush.bf16.msra.mxu0 %v762
  %1027 = vmatpush.bf16.msra.mxu0 %v761
  %1028 = vmatpush.bf16.msra.mxu0 %v760
  %1029 = vmatpush.bf16.msra.mxu0 %v759
  %1030 = vmatpush.bf16.msra.mxu0 %v758
  %1031 = vmatpush.bf16.msra.mxu0 %v757
  %1032 = vmatpush.bf16.msra.mxu0 %v756
  %1033 = vmatmul.bf16.gmra.mxu0 %v343
  %v1034 = vpop.f32.mrf.mxu0
  %v1035 = vadd.f32 %v1002, %v1034
  %v1036 = vpop.f32.mrf.mxu0
  %v1037 = vadd.f32 %v1004, %v1036
  %1038 = vmatmul.bf16.gmra.mxu0 %v352
  %v1039 = vpop.f32.mrf.mxu0
  %v1040 = vadd.f32 %v1007, %v1039
  %v1041 = vpop.f32.mrf.mxu0
  %v1042 = vadd.f32 %v1009, %v1041
  %1043 = vmatmul.bf16.gmra.mxu0 %v361
  %v1044 = vpop.f32.mrf.mxu0
  %v1045 = vadd.f32 %v1012, %v1044
  %v1046 = vpop.f32.mrf.mxu0
  %v1047 = vadd.f32 %v1014, %v1046
  %1048 = vmatmul.bf16.gmra.mxu0 %v370
  %v1049 = vpop.f32.mrf.mxu0
  %v1050 = vadd.f32 %v1017, %v1049
  %v1051 = vpop.f32.mrf.mxu0
  %v1052 = vadd.f32 %v1019, %v1051
  %1053 = vmatmul.bf16.gmra.mxu0 %v379
  %v1054 = vpop.f32.mrf.mxu0
  %v1055 = vadd.f32 %v1022, %v1054
  %v1056 = vpop.f32.mrf.mxu0
  %1057 = vdwg.mxu0
  %1058 = vmatpush.bf16.msra.mxu0 %v771
  %1059 = vmatpush.bf16.msra.mxu0 %v770
  %1060 = vmatpush.bf16.msra.mxu0 %v769
  %1061 = vmatpush.bf16.msra.mxu0 %v768
  %1062 = vmatpush.bf16.msra.mxu0 %v767
  %1063 = vmatpush.bf16.msra.mxu0 %v766
  %1064 = vmatpush.bf16.msra.mxu0 %v765
  %1065 = vmatpush.bf16.msra.mxu0 %v764
  %1066 = vmatmul.bf16.gmra.mxu0 %v344
  %v1067 = vpop.f32.mrf.mxu0
  %v1068 = vadd.f32 %v1035, %v1067
  %v1069 = vpop.f32.mrf.mxu0
  %v1070 = vadd.f32 %v1037, %v1069
  %1071 = vmatmul.bf16.gmra.mxu0 %v353
  %v1072 = vpop.f32.mrf.mxu0
  %v1073 = vadd.f32 %v1040, %v1072
  %v1074 = vpop.f32.mrf.mxu0
  %v1075 = vadd.f32 %v1042, %v1074
  %1076 = vmatmul.bf16.gmra.mxu0 %v362
  %v1077 = vpop.f32.mrf.mxu0
  %v1078 = vadd.f32 %v1045, %v1077
  %v1079 = vpop.f32.mrf.mxu0
  %v1080 = vadd.f32 %v1047, %v1079
  %1081 = vmatmul.bf16.gmra.mxu0 %v371
  %v1082 = vpop.f32.mrf.mxu0
  %v1083 = vadd.f32 %v1050, %v1082
  %v1084 = vpop.f32.mrf.mxu0
  %v1085 = vadd.f32 %v1052, %v1084
  %1086 = vmatmul.bf16.gmra.mxu0 %v380
  %v1087 = vpop.f32.mrf.mxu0
  %v1088 = vadd.f32 %v1055, %v1087
  %v1089 = vpop.f32.mrf.mxu0
  %1090 = vdwg.mxu0
  %1091 = vmatpush.bf16.msra.mxu0 %v779
  %1092 = vmatpush.bf16.msra.mxu0 %v778
  %1093 = vmatpush.bf16.msra.mxu0 %v777
  %1094 = vmatpush.bf16.msra.mxu0 %v776
  %1095 = vmatpush.bf16.msra.mxu0 %v775
  %1096 = vmatpush.bf16.msra.mxu0 %v774
  %1097 = vmatpush.bf16.msra.mxu0 %v773
  %1098 = vmatpush.bf16.msra.mxu0 %v772
  %1099 = vmatmul.bf16.gmra.mxu0 %v345
  %v1100 = vpop.f32.mrf.mxu0
  %v1101 = vadd.f32 %v1068, %v1100
  %v1102 = vpop.f32.mrf.mxu0
  %v1103 = vadd.f32 %v1070, %v1102
  %1104 = vmatmul.bf16.gmra.mxu0 %v354
  %v1105 = vpop.f32.mrf.mxu0
  %v1106 = vadd.f32 %v1073, %v1105
  %v1107 = vpop.f32.mrf.mxu0
  %v1108 = vadd.f32 %v1075, %v1107
  %1109 = vmatmul.bf16.gmra.mxu0 %v363
  %v1110 = vpop.f32.mrf.mxu0
  %v1111 = vadd.f32 %v1078, %v1110
  %v1112 = vpop.f32.mrf.mxu0
  %v1113 = vadd.f32 %v1080, %v1112
  %1114 = vmatmul.bf16.gmra.mxu0 %v372
  %v1115 = vpop.f32.mrf.mxu0
  %v1116 = vadd.f32 %v1083, %v1115
  %v1117 = vpop.f32.mrf.mxu0
  %v1118 = vadd.f32 %v1085, %v1117
  %1119 = vmatmul.bf16.gmra.mxu0 %v381
  %v1120 = vpop.f32.mrf.mxu0
  %v1121 = vadd.f32 %v1088, %v1120
  %v1122 = vpop.f32.mrf.mxu0
  %1123 = vdwg.mxu0
  %1124 = vmatpush.bf16.msra.mxu0 %v787
  %1125 = vmatpush.bf16.msra.mxu0 %v786
  %1126 = vmatpush.bf16.msra.mxu0 %v785
  %1127 = vmatpush.bf16.msra.mxu0 %v784
  %1128 = vmatpush.bf16.msra.mxu0 %v783
  %1129 = vmatpush.bf16.msra.mxu0 %v782
  %1130 = vmatpush.bf16.msra.mxu0 %v781
  %1131 = vmatpush.bf16.msra.mxu0 %v780
  %1132 = vmatmul.bf16.gmra.mxu0 %v346
  %v1133 = vpop.f32.mrf.mxu0
  %v1134 = vadd.f32 %v1101, %v1133
  %v1135 = vpop.f32.mrf.mxu0
  %v1136 = vadd.f32 %v1103, %v1135
  %1137 = vmatmul.bf16.gmra.mxu0 %v355
  %v1138 = vpop.f32.mrf.mxu0
  %v1139 = vadd.f32 %v1106, %v1138
  %v1140 = vpop.f32.mrf.mxu0
  %v1141 = vadd.f32 %v1108, %v1140
  %1142 = vmatmul.bf16.gmra.mxu0 %v364
  %v1143 = vpop.f32.mrf.mxu0
  %v1144 = vadd.f32 %v1111, %v1143
  %v1145 = vpop.f32.mrf.mxu0
  %v1146 = vadd.f32 %v1113, %v1145
  %1147 = vmatmul.bf16.gmra.mxu0 %v373
  %v1148 = vpop.f32.mrf.mxu0
  %v1149 = vadd.f32 %v1116, %v1148
  %v1150 = vpop.f32.mrf.mxu0
  %v1151 = vadd.f32 %v1118, %v1150
  %1152 = vmatmul.bf16.gmra.mxu0 %v382
  %v1153 = vpop.f32.mrf.mxu0
  %v1154 = vadd.f32 %v1121, %v1153
  %v1155 = vpop.f32.mrf.mxu0
  %1156 = vdwg.mxu0
  %v1157 = vld [vmem:[%s1] sm:$0xff]
  %v1158 = vld [vmem:[%s1 + $0x8] sm:$0xff]
  %v1159 = vld [vmem:[%s1 + $0x10] sm:$0xff]
  %v1160 = vld [vmem:[%s1 + $0x18] sm:$0xff]
  %v1161 = vld [vmem:[%s1 + $0x20] sm:$0xf]
  %v1162 = vld [vmem:[%s1 + $0x24] sm:$0xff]
  %v1163 = vld [vmem:[%s1 + $0x2c] sm:$0xff]
  %v1164 = vld [vmem:[%s1 + $0x34] sm:$0xff]
  %v1165 = vld [vmem:[%s1 + $0x3c] sm:$0xff]
  %v1166 = vld [vmem:[%s1 + $0x44] sm:$0xf]
  %v1167 = vld [vmem:[%s1 + $0x48] sm:$0xff]
  %v1168 = vld [vmem:[%s1 + $0x50] sm:$0xff]
  %v1169 = vld [vmem:[%s1 + $0x58] sm:$0xff]
  %v1170 = vld [vmem:[%s1 + $0x60] sm:$0xff]
  %v1171 = vld [vmem:[%s1 + $0x68] sm:$0xf]
  %v1172 = vld [vmem:[%s1 + $0x6c] sm:$0xff]
  %v1173 = vld [vmem:[%s1 + $0x74] sm:$0xff]
  %v1174 = vld [vmem:[%s1 + $0x7c] sm:$0xff]
  %v1175 = vld [vmem:[%s1 + $0x84] sm:$0xff]
  %v1176 = vld [vmem:[%s1 + $0x8c] sm:$0xf]
  %v1177 = vld [vmem:[%s1 + $0x90] sm:$0xff]
  %v1178 = vld [vmem:[%s1 + $0x98] sm:$0xff]
  %v1179 = vld [vmem:[%s1 + $0xa0] sm:$0xff]
  %v1180 = vld [vmem:[%s1 + $0xa8] sm:$0xff]
  %v1181 = vld [vmem:[%s1 + $0xb0] sm:$0xf]
  %v1182 = vld [vmem:[%s1 + $0xb4] sm:$0xff]
  %v1183 = vld [vmem:[%s1 + $0xbc] sm:$0xff]
  %v1184 = vld [vmem:[%s1 + $0xc4] sm:$0xff]
  %v1185 = vld [vmem:[%s1 + $0xcc] sm:$0xff]
  %v1186 = vld [vmem:[%s1 + $0xd4] sm:$0xf]
  %v1187 = vld [vmem:[%s1 + $0xd8] sm:$0xff]
  %v1188 = vld [vmem:[%s1 + $0xe0] sm:$0xff]
  %v1189 = vld [vmem:[%s1 + $0xe8] sm:$0xff]
  %v1190 = vld [vmem:[%s1 + $0xf0] sm:$0xff]
  %v1191 = vld [vmem:[%s1 + $0xf8] sm:$0xf]
  %v1192 = vld [vmem:[%s1 + $0xfc] sm:$0xff]
  %v1193 = vld [vmem:[%s1 + $0x104] sm:$0xff]
  %v1194 = vld [vmem:[%s1 + $0x10c] sm:$0xff]
  %v1195 = vld [vmem:[%s1 + $0x114] sm:$0xff]
  %v1196 = vld [vmem:[%s1 + $0x11c] sm:$0xf]
  %v1197 = vld [vmem:[%s1 + $0x120] sm:$0xff]
  %v1198 = vld [vmem:[%s1 + $0x128] sm:$0xff]
  %v1199 = vld [vmem:[%s1 + $0x130] sm:$0xff]
  %v1200 = vld [vmem:[%s1 + $0x138] sm:$0xff]
  %v1201 = vld [vmem:[%s1 + $0x140] sm:$0xf]
  %v1247 = vunpack.c.l.b16 %v1157
  %v1248 = vunpack.c.h.b16 %v1157
  %v1249 = vunpack.c.l.b16 %v1158
  %v1250 = vunpack.c.h.b16 %v1158
  %v1251 = vunpack.c.l.b16 %v1159
  %v1252 = vunpack.c.h.b16 %v1159
  %v1253 = vunpack.c.l.b16 %v1160
  %v1254 = vunpack.c.h.b16 %v1160
  %v1255 = vunpack.c.l.b16 %v1161
  %v1256 = vunpack.c.l.b16 %v1162
  %v1257 = vunpack.c.h.b16 %v1162
  %v1258 = vunpack.c.l.b16 %v1163
  %v1259 = vunpack.c.h.b16 %v1163
  %v1260 = vunpack.c.l.b16 %v1164
  %v1261 = vunpack.c.h.b16 %v1164
  %v1262 = vunpack.c.l.b16 %v1165
  %v1263 = vunpack.c.h.b16 %v1165
  %v1264 = vunpack.c.l.b16 %v1166
  %v1265 = vunpack.c.l.b16 %v1167
  %v1266 = vunpack.c.h.b16 %v1167
  %v1267 = vunpack.c.l.b16 %v1168
  %v1268 = vunpack.c.h.b16 %v1168
  %v1269 = vunpack.c.l.b16 %v1169
  %v1270 = vunpack.c.h.b16 %v1169
  %v1271 = vunpack.c.l.b16 %v1170
  %v1272 = vunpack.c.h.b16 %v1170
  %v1273 = vunpack.c.l.b16 %v1171
  %v1274 = vunpack.c.l.b16 %v1172
  %v1275 = vunpack.c.h.b16 %v1172
  %v1276 = vunpack.c.l.b16 %v1173
  %v1277 = vunpack.c.h.b16 %v1173
  %v1278 = vunpack.c.l.b16 %v1174
  %v1279 = vunpack.c.h.b16 %v1174
  %v1280 = vunpack.c.l.b16 %v1175
  %v1281 = vunpack.c.h.b16 %v1175
  %v1282 = vunpack.c.l.b16 %v1176
  %v1283 = vunpack.c.l.b16 %v1177
  %v1284 = vunpack.c.h.b16 %v1177
  %v1285 = vunpack.c.l.b16 %v1178
  %v1286 = vunpack.c.h.b16 %v1178
  %v1287 = vunpack.c.l.b16 %v1179
  %v1288 = vunpack.c.h.b16 %v1179
  %v1289 = vunpack.c.l.b16 %v1180
  %v1290 = vunpack.c.h.b16 %v1180
  %v1291 = vunpack.c.l.b16 %v1181
  %v1292 = vunpack.c.l.b16 %v1182
  %v1293 = vunpack.c.h.b16 %v1182
  %v1294 = vunpack.c.l.b16 %v1183
  %v1295 = vunpack.c.h.b16 %v1183
  %v1296 = vunpack.c.l.b16 %v1184
  %v1297 = vunpack.c.h.b16 %v1184
  %v1298 = vunpack.c.l.b16 %v1185
  %v1299 = vunpack.c.h.b16 %v1185
  %v1300 = vunpack.c.l.b16 %v1186
  %v1301 = vunpack.c.l.b16 %v1187
  %v1302 = vunpack.c.h.b16 %v1187
  %v1303 = vunpack.c.l.b16 %v1188
  %v1304 = vunpack.c.h.b16 %v1188
  %v1305 = vunpack.c.l.b16 %v1189
  %v1306 = vunpack.c.h.b16 %v1189
  %v1307 = vunpack.c.l.b16 %v1190
  %v1308 = vunpack.c.h.b16 %v1190
  %v1309 = vunpack.c.l.b16 %v1191
  %v1310 = vunpack.c.l.b16 %v1192
  %v1311 = vunpack.c.h.b16 %v1192
  %v1312 = vunpack.c.l.b16 %v1193
  %v1313 = vunpack.c.h.b16 %v1193
  %v1314 = vunpack.c.l.b16 %v1194
  %v1315 = vunpack.c.h.b16 %v1194
  %v1316 = vunpack.c.l.b16 %v1195
  %v1317 = vunpack.c.h.b16 %v1195
  %v1318 = vunpack.c.l.b16 %v1196
  %v1319 = vunpack.c.l.b16 %v1197
  %v1320 = vunpack.c.h.b16 %v1197
  %v1321 = vunpack.c.l.b16 %v1198
  %v1322 = vunpack.c.h.b16 %v1198
  %v1323 = vunpack.c.l.b16 %v1199
  %v1324 = vunpack.c.h.b16 %v1199
  %v1325 = vunpack.c.l.b16 %v1200
  %v1326 = vunpack.c.h.b16 %v1200
  %v1327 = vunpack.c.l.b16 %v1201
  %v1328 = vpack.c.b16 %v1256, %v1247
  %v1329 = vpack.c.b16 %v1257, %v1248
  %v1330 = vpack.c.b16 %v1258, %v1249
  %v1331 = vpack.c.b16 %v1259, %v1250
  %v1332 = vpack.c.b16 %v1260, %v1251
  %v1333 = vpack.c.b16 %v1261, %v1252
  %v1334 = vpack.c.b16 %v1262, %v1253
  %v1335 = vpack.c.b16 %v1263, %v1254
  %v1336 = vpack.c.b16 %v1264, %v1255
  %v1337 = vpack.c.b16 %v1274, %v1265
  %v1338 = vpack.c.b16 %v1275, %v1266
  %v1339 = vpack.c.b16 %v1276, %v1267
  %v1340 = vpack.c.b16 %v1277, %v1268
  %v1341 = vpack.c.b16 %v1278, %v1269
  %v1342 = vpack.c.b16 %v1279, %v1270
  %v1343 = vpack.c.b16 %v1280, %v1271
  %v1344 = vpack.c.b16 %v1281, %v1272
  %v1345 = vpack.c.b16 %v1282, %v1273
  %v1346 = vpack.c.b16 %v1292, %v1283
  %v1347 = vpack.c.b16 %v1293, %v1284
  %v1348 = vpack.c.b16 %v1294, %v1285
  %v1349 = vpack.c.b16 %v1295, %v1286
  %v1350 = vpack.c.b16 %v1296, %v1287
  %v1351 = vpack.c.b16 %v1297, %v1288
  %v1352 = vpack.c.b16 %v1298, %v1289
  %v1353 = vpack.c.b16 %v1299, %v1290
  %v1354 = vpack.c.b16 %v1300, %v1291
  %v1355 = vpack.c.b16 %v1310, %v1301
  %v1356 = vpack.c.b16 %v1311, %v1302
  %v1357 = vpack.c.b16 %v1312, %v1303
  %v1358 = vpack.c.b16 %v1313, %v1304
  %v1359 = vpack.c.b16 %v1314, %v1305
  %v1360 = vpack.c.b16 %v1315, %v1306
  %v1361 = vpack.c.b16 %v1316, %v1307
  %v1362 = vpack.c.b16 %v1317, %v1308
  %v1363 = vpack.c.b16 %v1318, %v1309
  %v1364 = vpack.c.b16 %v1319, %v1319
  %v1365 = vpack.c.b16 %v1320, %v1320
  %v1366 = vpack.c.b16 %v1321, %v1321
  %v1367 = vpack.c.b16 %v1322, %v1322
  %v1368 = vpack.c.b16 %v1323, %v1323
  %v1369 = vpack.c.b16 %v1324, %v1324
  %v1370 = vpack.c.b16 %v1325, %v1325
  %v1371 = vpack.c.b16 %v1326, %v1326
  %v1372 = vpack.c.b16 %v1327, %v1327
  %1418 = vmatpush.bf16.msra.mxu0 %v723
  %1419 = vmatpush.bf16.msra.mxu0 %v722
  %1420 = vmatpush.bf16.msra.mxu0 %v721
  %1421 = vmatpush.bf16.msra.mxu0 %v720
  %1422 = vmatpush.bf16.msra.mxu0 %v719
  %1423 = vmatpush.bf16.msra.mxu0 %v718
  %1424 = vmatpush.bf16.msra.mxu0 %v717
  %1425 = vmatpush.bf16.msra.mxu0 %v716
  %1426 = vmatmul.bf16.gmra.mxu0 %v1328
  %v1427 = vpop.f32.mrf.mxu0
  %v1428 = vadd.f32 0.0, %v1427
  %v1429 = vpop.f32.mrf.mxu0
  %v1430 = vadd.f32 0.0, %v1429
  %1431 = vmatmul.bf16.gmra.mxu0 %v1337
  %v1432 = vpop.f32.mrf.mxu0
  %v1433 = vadd.f32 0.0, %v1432
  %v1434 = vpop.f32.mrf.mxu0
  %v1435 = vadd.f32 0.0, %v1434
  %1436 = vmatmul.bf16.gmra.mxu0 %v1346
  %v1437 = vpop.f32.mrf.mxu0
  %v1438 = vadd.f32 0.0, %v1437
  %v1439 = vpop.f32.mrf.mxu0
  %v1440 = vadd.f32 0.0, %v1439
  %1441 = vmatmul.bf16.gmra.mxu0 %v1355
  %v1442 = vpop.f32.mrf.mxu0
  %v1443 = vadd.f32 0.0, %v1442
  %v1444 = vpop.f32.mrf.mxu0
  %v1445 = vadd.f32 0.0, %v1444
  %1446 = vmatmul.bf16.gmra.mxu0 %v1364
  %v1447 = vpop.f32.mrf.mxu0
  %v1448 = vadd.f32 0.0, %v1447
  %v1449 = vpop.f32.mrf.mxu0
  %1450 = vdwg.mxu0
  %1451 = vmatpush.bf16.msra.mxu0 %v731
  %1452 = vmatpush.bf16.msra.mxu0 %v730
  %1453 = vmatpush.bf16.msra.mxu0 %v729
  %1454 = vmatpush.bf16.msra.mxu0 %v728
  %1455 = vmatpush.bf16.msra.mxu0 %v727
  %1456 = vmatpush.bf16.msra.mxu0 %v726
  %1457 = vmatpush.bf16.msra.mxu0 %v725
  %1458 = vmatpush.bf16.msra.mxu0 %v724
  %1459 = vmatmul.bf16.gmra.mxu0 %v1329
  %v1460 = vpop.f32.mrf.mxu0
  %v1461 = vadd.f32 %v1428, %v1460
  %v1462 = vpop.f32.mrf.mxu0
  %v1463 = vadd.f32 %v1430, %v1462
  %1464 = vmatmul.bf16.gmra.mxu0 %v1338
  %v1465 = vpop.f32.mrf.mxu0
  %v1466 = vadd.f32 %v1433, %v1465
  %v1467 = vpop.f32.mrf.mxu0
  %v1468 = vadd.f32 %v1435, %v1467
  %1469 = vmatmul.bf16.gmra.mxu0 %v1347
  %v1470 = vpop.f32.mrf.mxu0
  %v1471 = vadd.f32 %v1438, %v1470
  %v1472 = vpop.f32.mrf.mxu0
  %v1473 = vadd.f32 %v1440, %v1472
  %1474 = vmatmul.bf16.gmra.mxu0 %v1356
  %v1475 = vpop.f32.mrf.mxu0
  %v1476 = vadd.f32 %v1443, %v1475
  %v1477 = vpop.f32.mrf.mxu0
  %v1478 = vadd.f32 %v1445, %v1477
  %1479 = vmatmul.bf16.gmra.mxu0 %v1365
  %v1480 = vpop.f32.mrf.mxu0
  %v1481 = vadd.f32 %v1448, %v1480
  %v1482 = vpop.f32.mrf.mxu0
  %1483 = vdwg.mxu0
  %1484 = vmatpush.bf16.msra.mxu0 %v739
  %1485 = vmatpush.bf16.msra.mxu0 %v738
  %1486 = vmatpush.bf16.msra.mxu0 %v737
  %1487 = vmatpush.bf16.msra.mxu0 %v736
  %1488 = vmatpush.bf16.msra.mxu0 %v735
  %1489 = vmatpush.bf16.msra.mxu0 %v734
  %1490 = vmatpush.bf16.msra.mxu0 %v733
  %1491 = vmatpush.bf16.msra.mxu0 %v732
  %1492 = vmatmul.bf16.gmra.mxu0 %v1330
  %v1493 = vpop.f32.mrf.mxu0
  %v1494 = vadd.f32 %v1461, %v1493
  %v1495 = vpop.f32.mrf.mxu0
  %v1496 = vadd.f32 %v1463, %v1495
  %1497 = vmatmul.bf16.gmra.mxu0 %v1339
  %v1498 = vpop.f32.mrf.mxu0
  %v1499 = vadd.f32 %v1466, %v1498
  %v1500 = vpop.f32.mrf.mxu0
  %v1501 = vadd.f32 %v1468, %v1500
  %1502 = vmatmul.bf16.gmra.mxu0 %v1348
  %v1503 = vpop.f32.mrf.mxu0
  %v1504 = vadd.f32 %v1471, %v1503
  %v1505 = vpop.f32.mrf.mxu0
  %v1506 = vadd.f32 %v1473, %v1505
  %1507 = vmatmul.bf16.gmra.mxu0 %v1357
  %v1508 = vpop.f32.mrf.mxu0
  %v1509 = vadd.f32 %v1476, %v1508
  %v1510 = vpop.f32.mrf.mxu0
  %v1511 = vadd.f32 %v1478, %v1510
  %1512 = vmatmul.bf16.gmra.mxu0 %v1366
  %v1513 = vpop.f32.mrf.mxu0
  %v1514 = vadd.f32 %v1481, %v1513
  %v1515 = vpop.f32.mrf.mxu0
  %1516 = vdwg.mxu0
  %1517 = vmatpush.bf16.msra.mxu0 %v747
  %1518 = vmatpush.bf16.msra.mxu0 %v746
  %1519 = vmatpush.bf16.msra.mxu0 %v745
  %1520 = vmatpush.bf16.msra.mxu0 %v744
  %1521 = vmatpush.bf16.msra.mxu0 %v743
  %1522 = vmatpush.bf16.msra.mxu0 %v742
  %1523 = vmatpush.bf16.msra.mxu0 %v741
  %1524 = vmatpush.bf16.msra.mxu0 %v740
  %1525 = vmatmul.bf16.gmra.mxu0 %v1331
  %v1526 = vpop.f32.mrf.mxu0
  %v1527 = vadd.f32 %v1494, %v1526
  %v1528 = vpop.f32.mrf.mxu0
  %v1529 = vadd.f32 %v1496, %v1528
  %1530 = vmatmul.bf16.gmra.mxu0 %v1340
  %v1531 = vpop.f32.mrf.mxu0
  %v1532 = vadd.f32 %v1499, %v1531
  %v1533 = vpop.f32.mrf.mxu0
  %v1534 = vadd.f32 %v1501, %v1533
  %1535 = vmatmul.bf16.gmra.mxu0 %v1349
  %v1536 = vpop.f32.mrf.mxu0
  %v1537 = vadd.f32 %v1504, %v1536
  %v1538 = vpop.f32.mrf.mxu0
  %v1539 = vadd.f32 %v1506, %v1538
  %1540 = vmatmul.bf16.gmra.mxu0 %v1358
  %v1541 = vpop.f32.mrf.mxu0
  %v1542 = vadd.f32 %v1509, %v1541
  %v1543 = vpop.f32.mrf.mxu0
  %v1544 = vadd.f32 %v1511, %v1543
  %1545 = vmatmul.bf16.gmra.mxu0 %v1367
  %v1546 = vpop.f32.mrf.mxu0
  %v1547 = vadd.f32 %v1514, %v1546
  %v1548 = vpop.f32.mrf.mxu0
  %1549 = vdwg.mxu0
  %1550 = vmatpush.bf16.msra.mxu0 %v755
  %1551 = vmatpush.bf16.msra.mxu0 %v754
  %1552 = vmatpush.bf16.msra.mxu0 %v753
  %1553 = vmatpush.bf16.msra.mxu0 %v752
  %1554 = vmatpush.bf16.msra.mxu0 %v751
  %1555 = vmatpush.bf16.msra.mxu0 %v750
  %1556 = vmatpush.bf16.msra.mxu0 %v749
  %1557 = vmatpush.bf16.msra.mxu0 %v748
  %1558 = vmatmul.bf16.gmra.mxu0 %v1332
  %v1559 = vpop.f32.mrf.mxu0
  %v1560 = vadd.f32 %v1527, %v1559
  %v1561 = vpop.f32.mrf.mxu0
  %v1562 = vadd.f32 %v1529, %v1561
  %1563 = vmatmul.bf16.gmra.mxu0 %v1341
  %v1564 = vpop.f32.mrf.mxu0
  %v1565 = vadd.f32 %v1532, %v1564
  %v1566 = vpop.f32.mrf.mxu0
  %v1567 = vadd.f32 %v1534, %v1566
  %1568 = vmatmul.bf16.gmra.mxu0 %v1350
  %v1569 = vpop.f32.mrf.mxu0
  %v1570 = vadd.f32 %v1537, %v1569
  %v1571 = vpop.f32.mrf.mxu0
  %v1572 = vadd.f32 %v1539, %v1571
  %1573 = vmatmul.bf16.gmra.mxu0 %v1359
  %v1574 = vpop.f32.mrf.mxu0
  %v1575 = vadd.f32 %v1542, %v1574
  %v1576 = vpop.f32.mrf.mxu0
  %v1577 = vadd.f32 %v1544, %v1576
  %1578 = vmatmul.bf16.gmra.mxu0 %v1368
  %v1579 = vpop.f32.mrf.mxu0
  %v1580 = vadd.f32 %v1547, %v1579
  %v1581 = vpop.f32.mrf.mxu0
  %1582 = vdwg.mxu0
  %1583 = vmatpush.bf16.msra.mxu0 %v763
  %1584 = vmatpush.bf16.msra.mxu0 %v762
  %1585 = vmatpush.bf16.msra.mxu0 %v761
  %1586 = vmatpush.bf16.msra.mxu0 %v760
  %1587 = vmatpush.bf16.msra.mxu0 %v759
  %1588 = vmatpush.bf16.msra.mxu0 %v758
  %1589 = vmatpush.bf16.msra.mxu0 %v757
  %1590 = vmatpush.bf16.msra.mxu0 %v756
  %1591 = vmatmul.bf16.gmra.mxu0 %v1333
  %v1592 = vpop.f32.mrf.mxu0
  %v1593 = vadd.f32 %v1560, %v1592
  %v1594 = vpop.f32.mrf.mxu0
  %v1595 = vadd.f32 %v1562, %v1594
  %1596 = vmatmul.bf16.gmra.mxu0 %v1342
  %v1597 = vpop.f32.mrf.mxu0
  %v1598 = vadd.f32 %v1565, %v1597
  %v1599 = vpop.f32.mrf.mxu0
  %v1600 = vadd.f32 %v1567, %v1599
  %1601 = vmatmul.bf16.gmra.mxu0 %v1351
  %v1602 = vpop.f32.mrf.mxu0
  %v1603 = vadd.f32 %v1570, %v1602
  %v1604 = vpop.f32.mrf.mxu0
  %v1605 = vadd.f32 %v1572, %v1604
  %1606 = vmatmul.bf16.gmra.mxu0 %v1360
  %v1607 = vpop.f32.mrf.mxu0
  %v1608 = vadd.f32 %v1575, %v1607
  %v1609 = vpop.f32.mrf.mxu0
  %v1610 = vadd.f32 %v1577, %v1609
  %1611 = vmatmul.bf16.gmra.mxu0 %v1369
  %v1612 = vpop.f32.mrf.mxu0
  %v1613 = vadd.f32 %v1580, %v1612
  %v1614 = vpop.f32.mrf.mxu0
  %1615 = vdwg.mxu0
  %1616 = vmatpush.bf16.msra.mxu0 %v771
  %1617 = vmatpush.bf16.msra.mxu0 %v770
  %1618 = vmatpush.bf16.msra.mxu0 %v769
  %1619 = vmatpush.bf16.msra.mxu0 %v768
  %1620 = vmatpush.bf16.msra.mxu0 %v767
  %1621 = vmatpush.bf16.msra.mxu0 %v766
  %1622 = vmatpush.bf16.msra.mxu0 %v765
  %1623 = vmatpush.bf16.msra.mxu0 %v764
  %1624 = vmatmul.bf16.gmra.mxu0 %v1334
  %v1625 = vpop.f32.mrf.mxu0
  %v1626 = vadd.f32 %v1593, %v1625
  %v1627 = vpop.f32.mrf.mxu0
  %v1628 = vadd.f32 %v1595, %v1627
  %1629 = vmatmul.bf16.gmra.mxu0 %v1343
  %v1630 = vpop.f32.mrf.mxu0
  %v1631 = vadd.f32 %v1598, %v1630
  %v1632 = vpop.f32.mrf.mxu0
  %v1633 = vadd.f32 %v1600, %v1632
  %1634 = vmatmul.bf16.gmra.mxu0 %v1352
  %v1635 = vpop.f32.mrf.mxu0
  %v1636 = vadd.f32 %v1603, %v1635
  %v1637 = vpop.f32.mrf.mxu0
  %v1638 = vadd.f32 %v1605, %v1637
  %1639 = vmatmul.bf16.gmra.mxu0 %v1361
  %v1640 = vpop.f32.mrf.mxu0
  %v1641 = vadd.f32 %v1608, %v1640
  %v1642 = vpop.f32.mrf.mxu0
  %v1643 = vadd.f32 %v1610, %v1642
  %1644 = vmatmul.bf16.gmra.mxu0 %v1370
  %v1645 = vpop.f32.mrf.mxu0
  %v1646 = vadd.f32 %v1613, %v1645
  %v1647 = vpop.f32.mrf.mxu0
  %1648 = vdwg.mxu0
  %1649 = vmatpush.bf16.msra.mxu0 %v779
  %1650 = vmatpush.bf16.msra.mxu0 %v778
  %1651 = vmatpush.bf16.msra.mxu0 %v777
  %1652 = vmatpush.bf16.msra.mxu0 %v776
  %1653 = vmatpush.bf16.msra.mxu0 %v775
  %1654 = vmatpush.bf16.msra.mxu0 %v774
  %1655 = vmatpush.bf16.msra.mxu0 %v773
  %1656 = vmatpush.bf16.msra.mxu0 %v772
  %1657 = vmatmul.bf16.gmra.mxu0 %v1335
  %v1658 = vpop.f32.mrf.mxu0
  %v1659 = vadd.f32 %v1626, %v1658
  %v1660 = vpop.f32.mrf.mxu0
  %v1661 = vadd.f32 %v1628, %v1660
  %1662 = vmatmul.bf16.gmra.mxu0 %v1344
  %v1663 = vpop.f32.mrf.mxu0
  %v1664 = vadd.f32 %v1631, %v1663
  %v1665 = vpop.f32.mrf.mxu0
  %v1666 = vadd.f32 %v1633, %v1665
  %1667 = vmatmul.bf16.gmra.mxu0 %v1353
  %v1668 = vpop.f32.mrf.mxu0
  %v1669 = vadd.f32 %v1636, %v1668
  %v1670 = vpop.f32.mrf.mxu0
  %v1671 = vadd.f32 %v1638, %v1670
  %1672 = vmatmul.bf16.gmra.mxu0 %v1362
  %v1673 = vpop.f32.mrf.mxu0
  %v1674 = vadd.f32 %v1641, %v1673
  %v1675 = vpop.f32.mrf.mxu0
  %v1676 = vadd.f32 %v1643, %v1675
  %1677 = vmatmul.bf16.gmra.mxu0 %v1371
  %v1678 = vpop.f32.mrf.mxu0
  %v1679 = vadd.f32 %v1646, %v1678
  %v1680 = vpop.f32.mrf.mxu0
  %1681 = vdwg.mxu0
  %1682 = vmatpush.bf16.msra.mxu0 %v787
  %1683 = vmatpush.bf16.msra.mxu0 %v786
  %1684 = vmatpush.bf16.msra.mxu0 %v785
  %1685 = vmatpush.bf16.msra.mxu0 %v784
  %1686 = vmatpush.bf16.msra.mxu0 %v783
  %1687 = vmatpush.bf16.msra.mxu0 %v782
  %1688 = vmatpush.bf16.msra.mxu0 %v781
  %1689 = vmatpush.bf16.msra.mxu0 %v780
  %1690 = vmatmul.bf16.gmra.mxu0 %v1336
  %v1691 = vpop.f32.mrf.mxu0
  %v1692 = vadd.f32 %v1659, %v1691
  %v1693 = vpop.f32.mrf.mxu0
  %v1694 = vadd.f32 %v1661, %v1693
  %1695 = vmatmul.bf16.gmra.mxu0 %v1345
  %v1696 = vpop.f32.mrf.mxu0
  %v1697 = vadd.f32 %v1664, %v1696
  %v1698 = vpop.f32.mrf.mxu0
  %v1699 = vadd.f32 %v1666, %v1698
  %1700 = vmatmul.bf16.gmra.mxu0 %v1354
  %v1701 = vpop.f32.mrf.mxu0
  %v1702 = vadd.f32 %v1669, %v1701
  %v1703 = vpop.f32.mrf.mxu0
  %v1704 = vadd.f32 %v1671, %v1703
  %1705 = vmatmul.bf16.gmra.mxu0 %v1363
  %v1706 = vpop.f32.mrf.mxu0
  %v1707 = vadd.f32 %v1674, %v1706
  %v1708 = vpop.f32.mrf.mxu0
  %v1709 = vadd.f32 %v1676, %v1708
  %1710 = vmatmul.bf16.gmra.mxu0 %v1372
  %v1711 = vpop.f32.mrf.mxu0
  %v1712 = vadd.f32 %v1679, %v1711
  %v1713 = vpop.f32.mrf.mxu0
  %1714 = vdwg.mxu0
  %v1715 = vld [vmem:[%s2] sm:$0xff]
  %v1716 = vld [vmem:[%s2 + $0x8] sm:$0xff]
  %v1717 = vld [vmem:[%s2 + $0x10] sm:$0xff]
  %v1718 = vld [vmem:[%s2 + $0x18] sm:$0xff]
  %v1719 = vld [vmem:[%s2 + $0x20] sm:$0xf]
  %v1720 = vld [vmem:[%s2 + $0x24] sm:$0xff]
  %v1721 = vld [vmem:[%s2 + $0x2c] sm:$0xff]
  %v1722 = vld [vmem:[%s2 + $0x34] sm:$0xff]
  %v1723 = vld [vmem:[%s2 + $0x3c] sm:$0xff]
  %v1724 = vld [vmem:[%s2 + $0x44] sm:$0xf]
  %v1725 = vld [vmem:[%s2 + $0x48] sm:$0xff]
  %v1726 = vld [vmem:[%s2 + $0x50] sm:$0xff]
  %v1727 = vld [vmem:[%s2 + $0x58] sm:$0xff]
  %v1728 = vld [vmem:[%s2 + $0x60] sm:$0xff]
  %v1729 = vld [vmem:[%s2 + $0x68] sm:$0xf]
  %v1730 = vld [vmem:[%s2 + $0x6c] sm:$0xff]
  %v1731 = vld [vmem:[%s2 + $0x74] sm:$0xff]
  %v1732 = vld [vmem:[%s2 + $0x7c] sm:$0xff]
  %v1733 = vld [vmem:[%s2 + $0x84] sm:$0xff]
  %v1734 = vld [vmem:[%s2 + $0x8c] sm:$0xf]
  %v1735 = vld [vmem:[%s2 + $0x90] sm:$0xff]
  %v1736 = vld [vmem:[%s2 + $0x98] sm:$0xff]
  %v1737 = vld [vmem:[%s2 + $0xa0] sm:$0xff]
  %v1738 = vld [vmem:[%s2 + $0xa8] sm:$0xff]
  %v1739 = vld [vmem:[%s2 + $0xb0] sm:$0xf]
  %v1740 = vld [vmem:[%s2 + $0xb4] sm:$0xff]
  %v1741 = vld [vmem:[%s2 + $0xbc] sm:$0xff]
  %v1742 = vld [vmem:[%s2 + $0xc4] sm:$0xff]
  %v1743 = vld [vmem:[%s2 + $0xcc] sm:$0xff]
  %v1744 = vld [vmem:[%s2 + $0xd4] sm:$0xf]
  %v1745 = vld [vmem:[%s2 + $0xd8] sm:$0xff]
  %v1746 = vld [vmem:[%s2 + $0xe0] sm:$0xff]
  %v1747 = vld [vmem:[%s2 + $0xe8] sm:$0xff]
  %v1748 = vld [vmem:[%s2 + $0xf0] sm:$0xff]
  %v1749 = vld [vmem:[%s2 + $0xf8] sm:$0xf]
  %v1750 = vld [vmem:[%s2 + $0xfc] sm:$0xff]
  %v1751 = vld [vmem:[%s2 + $0x104] sm:$0xff]
  %v1752 = vld [vmem:[%s2 + $0x10c] sm:$0xff]
  %v1753 = vld [vmem:[%s2 + $0x114] sm:$0xff]
  %v1754 = vld [vmem:[%s2 + $0x11c] sm:$0xf]
  %v1755 = vld [vmem:[%s2 + $0x120] sm:$0xff]
  %v1756 = vld [vmem:[%s2 + $0x128] sm:$0xff]
  %v1757 = vld [vmem:[%s2 + $0x130] sm:$0xff]
  %v1758 = vld [vmem:[%s2 + $0x138] sm:$0xff]
  %v1759 = vld [vmem:[%s2 + $0x140] sm:$0xf]
  %v1805 = vunpack.c.l.b16 %v1715
  %v1806 = vunpack.c.h.b16 %v1715
  %v1807 = vunpack.c.l.b16 %v1716
  %v1808 = vunpack.c.h.b16 %v1716
  %v1809 = vunpack.c.l.b16 %v1717
  %v1810 = vunpack.c.h.b16 %v1717
  %v1811 = vunpack.c.l.b16 %v1718
  %v1812 = vunpack.c.h.b16 %v1718
  %v1813 = vunpack.c.l.b16 %v1719
  %v1814 = vunpack.c.l.b16 %v1720
  %v1815 = vunpack.c.h.b16 %v1720
  %v1816 = vunpack.c.l.b16 %v1721
  %v1817 = vunpack.c.h.b16 %v1721
  %v1818 = vunpack.c.l.b16 %v1722
  %v1819 = vunpack.c.h.b16 %v1722
  %v1820 = vunpack.c.l.b16 %v1723
  %v1821 = vunpack.c.h.b16 %v1723
  %v1822 = vunpack.c.l.b16 %v1724
  %v1823 = vunpack.c.l.b16 %v1725
  %v1824 = vunpack.c.h.b16 %v1725
  %v1825 = vunpack.c.l.b16 %v1726
  %v1826 = vunpack.c.h.b16 %v1726
  %v1827 = vunpack.c.l.b16 %v1727
  %v1828 = vunpack.c.h.b16 %v1727
  %v1829 = vunpack.c.l.b16 %v1728
  %v1830 = vunpack.c.h.b16 %v1728
  %v1831 = vunpack.c.l.b16 %v1729
  %v1832 = vunpack.c.l.b16 %v1730
  %v1833 = vunpack.c.h.b16 %v1730
  %v1834 = vunpack.c.l.b16 %v1731
  %v1835 = vunpack.c.h.b16 %v1731
  %v1836 = vunpack.c.l.b16 %v1732
  %v1837 = vunpack.c.h.b16 %v1732
  %v1838 = vunpack.c.l.b16 %v1733
  %v1839 = vunpack.c.h.b16 %v1733
  %v1840 = vunpack.c.l.b16 %v1734
  %v1841 = vunpack.c.l.b16 %v1735
  %v1842 = vunpack.c.h.b16 %v1735
  %v1843 = vunpack.c.l.b16 %v1736
  %v1844 = vunpack.c.h.b16 %v1736
  %v1845 = vunpack.c.l.b16 %v1737
  %v1846 = vunpack.c.h.b16 %v1737
  %v1847 = vunpack.c.l.b16 %v1738
  %v1848 = vunpack.c.h.b16 %v1738
  %v1849 = vunpack.c.l.b16 %v1739
  %v1850 = vunpack.c.l.b16 %v1740
  %v1851 = vunpack.c.h.b16 %v1740
  %v1852 = vunpack.c.l.b16 %v1741
  %v1853 = vunpack.c.h.b16 %v1741
  %v1854 = vunpack.c.l.b16 %v1742
  %v1855 = vunpack.c.h.b16 %v1742
  %v1856 = vunpack.c.l.b16 %v1743
  %v1857 = vunpack.c.h.b16 %v1743
  %v1858 = vunpack.c.l.b16 %v1744
  %v1859 = vunpack.c.l.b16 %v1745
  %v1860 = vunpack.c.h.b16 %v1745
  %v1861 = vunpack.c.l.b16 %v1746
  %v1862 = vunpack.c.h.b16 %v1746
  %v1863 = vunpack.c.l.b16 %v1747
  %v1864 = vunpack.c.h.b16 %v1747
  %v1865 = vunpack.c.l.b16 %v1748
  %v1866 = vunpack.c.h.b16 %v1748
  %v1867 = vunpack.c.l.b16 %v1749
  %v1868 = vunpack.c.l.b16 %v1750
  %v1869 = vunpack.c.h.b16 %v1750
  %v1870 = vunpack.c.l.b16 %v1751
  %v1871 = vunpack.c.h.b16 %v1751
  %v1872 = vunpack.c.l.b16 %v1752
  %v1873 = vunpack.c.h.b16 %v1752
  %v1874 = vunpack.c.l.b16 %v1753
  %v1875 = vunpack.c.h.b16 %v1753
  %v1876 = vunpack.c.l.b16 %v1754
  %v1877 = vunpack.c.l.b16 %v1755
  %v1878 = vunpack.c.h.b16 %v1755
  %v1879 = vunpack.c.l.b16 %v1756
  %v1880 = vunpack.c.h.b16 %v1756
  %v1881 = vunpack.c.l.b16 %v1757
  %v1882 = vunpack.c.h.b16 %v1757
  %v1883 = vunpack.c.l.b16 %v1758
  %v1884 = vunpack.c.h.b16 %v1758
  %v1885 = vunpack.c.l.b16 %v1759
  %v1886 = vpack.c.b16 %v1814, %v1805
  %v1887 = vpack.c.b16 %v1815, %v1806
  %v1888 = vpack.c.b16 %v1816, %v1807
  %v1889 = vpack.c.b16 %v1817, %v1808
  %v1890 = vpack.c.b16 %v1818, %v1809
  %v1891 = vpack.c.b16 %v1819, %v1810
  %v1892 = vpack.c.b16 %v1820, %v1811
  %v1893 = vpack.c.b16 %v1821, %v1812
  %v1894 = vpack.c.b16 %v1822, %v1813
  %v1895 = vpack.c.b16 %v1832, %v1823
  %v1896 = vpack.c.b16 %v1833, %v1824
  %v1897 = vpack.c.b16 %v1834, %v1825
  %v1898 = vpack.c.b16 %v1835, %v1826
  %v1899 = vpack.c.b16 %v1836, %v1827
  %v1900 = vpack.c.b16 %v1837, %v1828
  %v1901 = vpack.c.b16 %v1838, %v1829
  %v1902 = vpack.c.b16 %v1839, %v1830
  %v1903 = vpack.c.b16 %v1840, %v1831
  %v1904 = vpack.c.b16 %v1850, %v1841
  %v1905 = vpack.c.b16 %v1851, %v1842
  %v1906 = vpack.c.b16 %v1852, %v1843
  %v1907 = vpack.c.b16 %v1853, %v1844
  %v1908 = vpack.c.b16 %v1854, %v1845
  %v1909 = vpack.c.b16 %v1855, %v1846
  %v1910 = vpack.c.b16 %v1856, %v1847
  %v1911 = vpack.c.b16 %v1857, %v1848
  %v1912 = vpack.c.b16 %v1858, %v1849
  %v1913 = vpack.c.b16 %v1868, %v1859
  %v1914 = vpack.c.b16 %v1869, %v1860
  %v1915 = vpack.c.b16 %v1870, %v1861
  %v1916 = vpack.c.b16 %v1871, %v1862
  %v1917 = vpack.c.b16 %v1872, %v1863
  %v1918 = vpack.c.b16 %v1873, %v1864
  %v1919 = vpack.c.b16 %v1874, %v1865
  %v1920 = vpack.c.b16 %v1875, %v1866
  %v1921 = vpack.c.b16 %v1876, %v1867
  %v1922 = vpack.c.b16 %v1877, %v1877
  %v1923 = vpack.c.b16 %v1878, %v1878
  %v1924 = vpack.c.b16 %v1879, %v1879
  %v1925 = vpack.c.b16 %v1880, %v1880
  %v1926 = vpack.c.b16 %v1881, %v1881
  %v1927 = vpack.c.b16 %v1882, %v1882
  %v1928 = vpack.c.b16 %v1883, %v1883
  %v1929 = vpack.c.b16 %v1884, %v1884
  %v1930 = vpack.c.b16 %v1885, %v1885
  %1976 = vmatpush.bf16.msra.mxu0 %v723
  %1977 = vmatpush.bf16.msra.mxu0 %v722
  %1978 = vmatpush.bf16.msra.mxu0 %v721
  %1979 = vmatpush.bf16.msra.mxu0 %v720
  %1980 = vmatpush.bf16.msra.mxu0 %v719
  %1981 = vmatpush.bf16.msra.mxu0 %v718
  %1982 = vmatpush.bf16.msra.mxu0 %v717
  %1983 = vmatpush.bf16.msra.mxu0 %v716
  %1984 = vmatmul.bf16.gmra.mxu0 %v1886
  %v1985 = vpop.f32.mrf.mxu0
  %v1986 = vadd.f32 0.0, %v1985
  %v1987 = vpop.f32.mrf.mxu0
  %v1988 = vadd.f32 0.0, %v1987
  %1989 = vmatmul.bf16.gmra.mxu0 %v1895
  %v1990 = vpop.f32.mrf.mxu0
  %v1991 = vadd.f32 0.0, %v1990
  %v1992 = vpop.f32.mrf.mxu0
  %v1993 = vadd.f32 0.0, %v1992
  %1994 = vmatmul.bf16.gmra.mxu0 %v1904
  %v1995 = vpop.f32.mrf.mxu0
  %v1996 = vadd.f32 0.0, %v1995
  %v1997 = vpop.f32.mrf.mxu0
  %v1998 = vadd.f32 0.0, %v1997
  %1999 = vmatmul.bf16.gmra.mxu0 %v1913
  %v2000 = vpop.f32.mrf.mxu0
  %v2001 = vadd.f32 0.0, %v2000
  %v2002 = vpop.f32.mrf.mxu0
  %v2003 = vadd.f32 0.0, %v2002
  %2004 = vmatmul.bf16.gmra.mxu0 %v1922
  %v2005 = vpop.f32.mrf.mxu0
  %v2006 = vadd.f32 0.0, %v2005
  %v2007 = vpop.f32.mrf.mxu0
  %2008 = vdwg.mxu0
  %2009 = vmatpush.bf16.msra.mxu0 %v731
  %2010 = vmatpush.bf16.msra.mxu0 %v730
  %2011 = vmatpush.bf16.msra.mxu0 %v729
  %2012 = vmatpush.bf16.msra.mxu0 %v728
  %2013 = vmatpush.bf16.msra.mxu0 %v727
  %2014 = vmatpush.bf16.msra.mxu0 %v726
  %2015 = vmatpush.bf16.msra.mxu0 %v725
  %2016 = vmatpush.bf16.msra.mxu0 %v724
  %2017 = vmatmul.bf16.gmra.mxu0 %v1887
  %v2018 = vpop.f32.mrf.mxu0
  %v2019 = vadd.f32 %v1986, %v2018
  %v2020 = vpop.f32.mrf.mxu0
  %v2021 = vadd.f32 %v1988, %v2020
  %2022 = vmatmul.bf16.gmra.mxu0 %v1896
  %v2023 = vpop.f32.mrf.mxu0
  %v2024 = vadd.f32 %v1991, %v2023
  %v2025 = vpop.f32.mrf.mxu0
  %v2026 = vadd.f32 %v1993, %v2025
  %2027 = vmatmul.bf16.gmra.mxu0 %v1905
  %v2028 = vpop.f32.mrf.mxu0
  %v2029 = vadd.f32 %v1996, %v2028
  %v2030 = vpop.f32.mrf.mxu0
  %v2031 = vadd.f32 %v1998, %v2030
  %2032 = vmatmul.bf16.gmra.mxu0 %v1914
  %v2033 = vpop.f32.mrf.mxu0
  %v2034 = vadd.f32 %v2001, %v2033
  %v2035 = vpop.f32.mrf.mxu0
  %v2036 = vadd.f32 %v2003, %v2035
  %2037 = vmatmul.bf16.gmra.mxu0 %v1923
  %v2038 = vpop.f32.mrf.mxu0
  %v2039 = vadd.f32 %v2006, %v2038
  %v2040 = vpop.f32.mrf.mxu0
  %2041 = vdwg.mxu0
  %2042 = vmatpush.bf16.msra.mxu0 %v739
  %2043 = vmatpush.bf16.msra.mxu0 %v738
  %2044 = vmatpush.bf16.msra.mxu0 %v737
  %2045 = vmatpush.bf16.msra.mxu0 %v736
  %2046 = vmatpush.bf16.msra.mxu0 %v735
  %2047 = vmatpush.bf16.msra.mxu0 %v734
  %2048 = vmatpush.bf16.msra.mxu0 %v733
  %2049 = vmatpush.bf16.msra.mxu0 %v732
  %2050 = vmatmul.bf16.gmra.mxu0 %v1888
  %v2051 = vpop.f32.mrf.mxu0
  %v2052 = vadd.f32 %v2019, %v2051
  %v2053 = vpop.f32.mrf.mxu0
  %v2054 = vadd.f32 %v2021, %v2053
  %2055 = vmatmul.bf16.gmra.mxu0 %v1897
  %v2056 = vpop.f32.mrf.mxu0
  %v2057 = vadd.f32 %v2024, %v2056
  %v2058 = vpop.f32.mrf.mxu0
  %v2059 = vadd.f32 %v2026, %v2058
  %2060 = vmatmul.bf16.gmra.mxu0 %v1906
  %v2061 = vpop.f32.mrf.mxu0
  %v2062 = vadd.f32 %v2029, %v2061
  %v2063 = vpop.f32.mrf.mxu0
  %v2064 = vadd.f32 %v2031, %v2063
  %2065 = vmatmul.bf16.gmra.mxu0 %v1915
  %v2066 = vpop.f32.mrf.mxu0
  %v2067 = vadd.f32 %v2034, %v2066
  %v2068 = vpop.f32.mrf.mxu0
  %v2069 = vadd.f32 %v2036, %v2068
  %2070 = vmatmul.bf16.gmra.mxu0 %v1924
  %v2071 = vpop.f32.mrf.mxu0
  %v2072 = vadd.f32 %v2039, %v2071
  %v2073 = vpop.f32.mrf.mxu0
  %2074 = vdwg.mxu0
  %2075 = vmatpush.bf16.msra.mxu0 %v747
  %2076 = vmatpush.bf16.msra.mxu0 %v746
  %2077 = vmatpush.bf16.msra.mxu0 %v745
  %2078 = vmatpush.bf16.msra.mxu0 %v744
  %2079 = vmatpush.bf16.msra.mxu0 %v743
  %2080 = vmatpush.bf16.msra.mxu0 %v742
  %2081 = vmatpush.bf16.msra.mxu0 %v741
  %2082 = vmatpush.bf16.msra.mxu0 %v740
  %2083 = vmatmul.bf16.gmra.mxu0 %v1889
  %v2084 = vpop.f32.mrf.mxu0
  %v2085 = vadd.f32 %v2052, %v2084
  %v2086 = vpop.f32.mrf.mxu0
  %v2087 = vadd.f32 %v2054, %v2086
  %2088 = vmatmul.bf16.gmra.mxu0 %v1898
  %v2089 = vpop.f32.mrf.mxu0
  %v2090 = vadd.f32 %v2057, %v2089
  %v2091 = vpop.f32.mrf.mxu0
  %v2092 = vadd.f32 %v2059, %v2091
  %2093 = vmatmul.bf16.gmra.mxu0 %v1907
  %v2094 = vpop.f32.mrf.mxu0
  %v2095 = vadd.f32 %v2062, %v2094
  %v2096 = vpop.f32.mrf.mxu0
  %v2097 = vadd.f32 %v2064, %v2096
  %2098 = vmatmul.bf16.gmra.mxu0 %v1916
  %v2099 = vpop.f32.mrf.mxu0
  %v2100 = vadd.f32 %v2067, %v2099
  %v2101 = vpop.f32.mrf.mxu0
  %v2102 = vadd.f32 %v2069, %v2101
  %2103 = vmatmul.bf16.gmra.mxu0 %v1925
  %v2104 = vpop.f32.mrf.mxu0
  %v2105 = vadd.f32 %v2072, %v2104
  %v2106 = vpop.f32.mrf.mxu0
  %2107 = vdwg.mxu0
  %2108 = vmatpush.bf16.msra.mxu0 %v755
  %2109 = vmatpush.bf16.msra.mxu0 %v754
  %2110 = vmatpush.bf16.msra.mxu0 %v753
  %2111 = vmatpush.bf16.msra.mxu0 %v752
  %2112 = vmatpush.bf16.msra.mxu0 %v751
  %2113 = vmatpush.bf16.msra.mxu0 %v750
  %2114 = vmatpush.bf16.msra.mxu0 %v749
  %2115 = vmatpush.bf16.msra.mxu0 %v748
  %2116 = vmatmul.bf16.gmra.mxu0 %v1890
  %v2117 = vpop.f32.mrf.mxu0
  %v2118 = vadd.f32 %v2085, %v2117
  %v2119 = vpop.f32.mrf.mxu0
  %v2120 = vadd.f32 %v2087, %v2119
  %2121 = vmatmul.bf16.gmra.mxu0 %v1899
  %v2122 = vpop.f32.mrf.mxu0
  %v2123 = vadd.f32 %v2090, %v2122
  %v2124 = vpop.f32.mrf.mxu0
  %v2125 = vadd.f32 %v2092, %v2124
  %2126 = vmatmul.bf16.gmra.mxu0 %v1908
  %v2127 = vpop.f32.mrf.mxu0
  %v2128 = vadd.f32 %v2095, %v2127
  %v2129 = vpop.f32.mrf.mxu0
  %v2130 = vadd.f32 %v2097, %v2129
  %2131 = vmatmul.bf16.gmra.mxu0 %v1917
  %v2132 = vpop.f32.mrf.mxu0
  %v2133 = vadd.f32 %v2100, %v2132
  %v2134 = vpop.f32.mrf.mxu0
  %v2135 = vadd.f32 %v2102, %v2134
  %2136 = vmatmul.bf16.gmra.mxu0 %v1926
  %v2137 = vpop.f32.mrf.mxu0
  %v2138 = vadd.f32 %v2105, %v2137
  %v2139 = vpop.f32.mrf.mxu0
  %2140 = vdwg.mxu0
  %2141 = vmatpush.bf16.msra.mxu0 %v763
  %2142 = vmatpush.bf16.msra.mxu0 %v762
  %2143 = vmatpush.bf16.msra.mxu0 %v761
  %2144 = vmatpush.bf16.msra.mxu0 %v760
  %2145 = vmatpush.bf16.msra.mxu0 %v759
  %2146 = vmatpush.bf16.msra.mxu0 %v758
  %2147 = vmatpush.bf16.msra.mxu0 %v757
  %2148 = vmatpush.bf16.msra.mxu0 %v756
  %2149 = vmatmul.bf16.gmra.mxu0 %v1891
  %v2150 = vpop.f32.mrf.mxu0
  %v2151 = vadd.f32 %v2118, %v2150
  %v2152 = vpop.f32.mrf.mxu0
  %v2153 = vadd.f32 %v2120, %v2152
  %2154 = vmatmul.bf16.gmra.mxu0 %v1900
  %v2155 = vpop.f32.mrf.mxu0
  %v2156 = vadd.f32 %v2123, %v2155
  %v2157 = vpop.f32.mrf.mxu0
  %v2158 = vadd.f32 %v2125, %v2157
  %2159 = vmatmul.bf16.gmra.mxu0 %v1909
  %v2160 = vpop.f32.mrf.mxu0
  %v2161 = vadd.f32 %v2128, %v2160
  %v2162 = vpop.f32.mrf.mxu0
  %v2163 = vadd.f32 %v2130, %v2162
  %2164 = vmatmul.bf16.gmra.mxu0 %v1918
  %v2165 = vpop.f32.mrf.mxu0
  %v2166 = vadd.f32 %v2133, %v2165
  %v2167 = vpop.f32.mrf.mxu0
  %v2168 = vadd.f32 %v2135, %v2167
  %2169 = vmatmul.bf16.gmra.mxu0 %v1927
  %v2170 = vpop.f32.mrf.mxu0
  %v2171 = vadd.f32 %v2138, %v2170
  %v2172 = vpop.f32.mrf.mxu0
  %2173 = vdwg.mxu0
  %2174 = vmatpush.bf16.msra.mxu0 %v771
  %2175 = vmatpush.bf16.msra.mxu0 %v770
  %2176 = vmatpush.bf16.msra.mxu0 %v769
  %2177 = vmatpush.bf16.msra.mxu0 %v768
  %2178 = vmatpush.bf16.msra.mxu0 %v767
  %2179 = vmatpush.bf16.msra.mxu0 %v766
  %2180 = vmatpush.bf16.msra.mxu0 %v765
  %2181 = vmatpush.bf16.msra.mxu0 %v764
  %2182 = vmatmul.bf16.gmra.mxu0 %v1892
  %v2183 = vpop.f32.mrf.mxu0
  %v2184 = vadd.f32 %v2151, %v2183
  %v2185 = vpop.f32.mrf.mxu0
  %v2186 = vadd.f32 %v2153, %v2185
  %2187 = vmatmul.bf16.gmra.mxu0 %v1901
  %v2188 = vpop.f32.mrf.mxu0
  %v2189 = vadd.f32 %v2156, %v2188
  %v2190 = vpop.f32.mrf.mxu0
  %v2191 = vadd.f32 %v2158, %v2190
  %2192 = vmatmul.bf16.gmra.mxu0 %v1910
  %v2193 = vpop.f32.mrf.mxu0
  %v2194 = vadd.f32 %v2161, %v2193
  %v2195 = vpop.f32.mrf.mxu0
  %v2196 = vadd.f32 %v2163, %v2195
  %2197 = vmatmul.bf16.gmra.mxu0 %v1919
  %v2198 = vpop.f32.mrf.mxu0
  %v2199 = vadd.f32 %v2166, %v2198
  %v2200 = vpop.f32.mrf.mxu0
  %v2201 = vadd.f32 %v2168, %v2200
  %2202 = vmatmul.bf16.gmra.mxu0 %v1928
  %v2203 = vpop.f32.mrf.mxu0
  %v2204 = vadd.f32 %v2171, %v2203
  %v2205 = vpop.f32.mrf.mxu0
  %2206 = vdwg.mxu0
  %2207 = vmatpush.bf16.msra.mxu0 %v779
  %2208 = vmatpush.bf16.msra.mxu0 %v778
  %2209 = vmatpush.bf16.msra.mxu0 %v777
  %2210 = vmatpush.bf16.msra.mxu0 %v776
  %2211 = vmatpush.bf16.msra.mxu0 %v775
  %2212 = vmatpush.bf16.msra.mxu0 %v774
  %2213 = vmatpush.bf16.msra.mxu0 %v773
  %2214 = vmatpush.bf16.msra.mxu0 %v772
  %2215 = vmatmul.bf16.gmra.mxu0 %v1893
  %v2216 = vpop.f32.mrf.mxu0
  %v2217 = vadd.f32 %v2184, %v2216
  %v2218 = vpop.f32.mrf.mxu0
  %v2219 = vadd.f32 %v2186, %v2218
  %2220 = vmatmul.bf16.gmra.mxu0 %v1902
  %v2221 = vpop.f32.mrf.mxu0
  %v2222 = vadd.f32 %v2189, %v2221
  %v2223 = vpop.f32.mrf.mxu0
  %v2224 = vadd.f32 %v2191, %v2223
  %2225 = vmatmul.bf16.gmra.mxu0 %v1911
  %v2226 = vpop.f32.mrf.mxu0
  %v2227 = vadd.f32 %v2194, %v2226
  %v2228 = vpop.f32.mrf.mxu0
  %v2229 = vadd.f32 %v2196, %v2228
  %2230 = vmatmul.bf16.gmra.mxu0 %v1920
  %v2231 = vpop.f32.mrf.mxu0
  %v2232 = vadd.f32 %v2199, %v2231
  %v2233 = vpop.f32.mrf.mxu0
  %v2234 = vadd.f32 %v2201, %v2233
  %2235 = vmatmul.bf16.gmra.mxu0 %v1929
  %v2236 = vpop.f32.mrf.mxu0
  %v2237 = vadd.f32 %v2204, %v2236
  %v2238 = vpop.f32.mrf.mxu0
  %2239 = vdwg.mxu0
  %2240 = vmatpush.bf16.msra.mxu0 %v787
  %2241 = vmatpush.bf16.msra.mxu0 %v786
  %2242 = vmatpush.bf16.msra.mxu0 %v785
  %2243 = vmatpush.bf16.msra.mxu0 %v784
  %2244 = vmatpush.bf16.msra.mxu0 %v783
  %2245 = vmatpush.bf16.msra.mxu0 %v782
  %2246 = vmatpush.bf16.msra.mxu0 %v781
  %2247 = vmatpush.bf16.msra.mxu0 %v780
  %2248 = vmatmul.bf16.gmra.mxu0 %v1894
  %v2249 = vpop.f32.mrf.mxu0
  %v2250 = vadd.f32 %v2217, %v2249
  %v2251 = vpop.f32.mrf.mxu0
  %v2252 = vadd.f32 %v2219, %v2251
  %2253 = vmatmul.bf16.gmra.mxu0 %v1903
  %v2254 = vpop.f32.mrf.mxu0
  %v2255 = vadd.f32 %v2222, %v2254
  %v2256 = vpop.f32.mrf.mxu0
  %v2257 = vadd.f32 %v2224, %v2256
  %2258 = vmatmul.bf16.gmra.mxu0 %v1912
  %v2259 = vpop.f32.mrf.mxu0
  %v2260 = vadd.f32 %v2227, %v2259
  %v2261 = vpop.f32.mrf.mxu0
  %v2262 = vadd.f32 %v2229, %v2261
  %2263 = vmatmul.bf16.gmra.mxu0 %v1921
  %v2264 = vpop.f32.mrf.mxu0
  %v2265 = vadd.f32 %v2232, %v2264
  %v2266 = vpop.f32.mrf.mxu0
  %v2267 = vadd.f32 %v2234, %v2266
  %2268 = vmatmul.bf16.gmra.mxu0 %v1930
  %v2269 = vpop.f32.mrf.mxu0
  %v2270 = vadd.f32 %v2237, %v2269
  %v2271 = vpop.f32.mrf.mxu0
  %2272 = vdwg.mxu0
  %v2273 = vld [vmem:[%s3] sm:$0xff]
  %v2274 = vld [vmem:[%s3 + $0x8] sm:$0xff]
  %v2275 = vld [vmem:[%s3 + $0x10] sm:$0xff]
  %v2276 = vld [vmem:[%s3 + $0x18] sm:$0xff]
  %v2277 = vld [vmem:[%s3 + $0x20] sm:$0xf]
  %v2278 = vld [vmem:[%s3 + $0x24] sm:$0xff]
  %v2279 = vld [vmem:[%s3 + $0x2c] sm:$0xff]
  %v2280 = vld [vmem:[%s3 + $0x34] sm:$0xff]
  %v2281 = vld [vmem:[%s3 + $0x3c] sm:$0xff]
  %v2282 = vld [vmem:[%s3 + $0x44] sm:$0xf]
  %v2283 = vld [vmem:[%s3 + $0x48] sm:$0xff]
  %v2284 = vld [vmem:[%s3 + $0x50] sm:$0xff]
  %v2285 = vld [vmem:[%s3 + $0x58] sm:$0xff]
  %v2286 = vld [vmem:[%s3 + $0x60] sm:$0xff]
  %v2287 = vld [vmem:[%s3 + $0x68] sm:$0xf]
  %v2288 = vld [vmem:[%s3 + $0x6c] sm:$0xff]
  %v2289 = vld [vmem:[%s3 + $0x74] sm:$0xff]
  %v2290 = vld [vmem:[%s3 + $0x7c] sm:$0xff]
  %v2291 = vld [vmem:[%s3 + $0x84] sm:$0xff]
  %v2292 = vld [vmem:[%s3 + $0x8c] sm:$0xf]
  %v2293 = vld [vmem:[%s3 + $0x90] sm:$0xff]
  %v2294 = vld [vmem:[%s3 + $0x98] sm:$0xff]
  %v2295 = vld [vmem:[%s3 + $0xa0] sm:$0xff]
  %v2296 = vld [vmem:[%s3 + $0xa8] sm:$0xff]
  %v2297 = vld [vmem:[%s3 + $0xb0] sm:$0xf]
  %v2298 = vld [vmem:[%s3 + $0xb4] sm:$0xff]
  %v2299 = vld [vmem:[%s3 + $0xbc] sm:$0xff]
  %v2300 = vld [vmem:[%s3 + $0xc4] sm:$0xff]
  %v2301 = vld [vmem:[%s3 + $0xcc] sm:$0xff]
  %v2302 = vld [vmem:[%s3 + $0xd4] sm:$0xf]
  %v2303 = vld [vmem:[%s3 + $0xd8] sm:$0xff]
  %v2304 = vld [vmem:[%s3 + $0xe0] sm:$0xff]
  %v2305 = vld [vmem:[%s3 + $0xe8] sm:$0xff]
  %v2306 = vld [vmem:[%s3 + $0xf0] sm:$0xff]
  %v2307 = vld [vmem:[%s3 + $0xf8] sm:$0xf]
  %v2308 = vld [vmem:[%s3 + $0xfc] sm:$0xff]
  %v2309 = vld [vmem:[%s3 + $0x104] sm:$0xff]
  %v2310 = vld [vmem:[%s3 + $0x10c] sm:$0xff]
  %v2311 = vld [vmem:[%s3 + $0x114] sm:$0xff]
  %v2312 = vld [vmem:[%s3 + $0x11c] sm:$0xf]
  %v2313 = vld [vmem:[%s3 + $0x120] sm:$0xff]
  %v2314 = vld [vmem:[%s3 + $0x128] sm:$0xff]
  %v2315 = vld [vmem:[%s3 + $0x130] sm:$0xff]
  %v2316 = vld [vmem:[%s3 + $0x138] sm:$0xff]
  %v2317 = vld [vmem:[%s3 + $0x140] sm:$0xf]
  %v2363 = vunpack.c.l.b16 %v2273
  %v2364 = vunpack.c.h.b16 %v2273
  %v2365 = vunpack.c.l.b16 %v2274
  %v2366 = vunpack.c.h.b16 %v2274
  %v2367 = vunpack.c.l.b16 %v2275
  %v2368 = vunpack.c.h.b16 %v2275
  %v2369 = vunpack.c.l.b16 %v2276
  %v2370 = vunpack.c.h.b16 %v2276
  %v2371 = vunpack.c.l.b16 %v2277
  %v2372 = vunpack.c.l.b16 %v2278
  %v2373 = vunpack.c.h.b16 %v2278
  %v2374 = vunpack.c.l.b16 %v2279
  %v2375 = vunpack.c.h.b16 %v2279
  %v2376 = vunpack.c.l.b16 %v2280
  %v2377 = vunpack.c.h.b16 %v2280
  %v2378 = vunpack.c.l.b16 %v2281
  %v2379 = vunpack.c.h.b16 %v2281
  %v2380 = vunpack.c.l.b16 %v2282
  %v2381 = vunpack.c.l.b16 %v2283
  %v2382 = vunpack.c.h.b16 %v2283
  %v2383 = vunpack.c.l.b16 %v2284
  %v2384 = vunpack.c.h.b16 %v2284
  %v2385 = vunpack.c.l.b16 %v2285
  %v2386 = vunpack.c.h.b16 %v2285
  %v2387 = vunpack.c.l.b16 %v2286
  %v2388 = vunpack.c.h.b16 %v2286
  %v2389 = vunpack.c.l.b16 %v2287
  %v2390 = vunpack.c.l.b16 %v2288
  %v2391 = vunpack.c.h.b16 %v2288
  %v2392 = vunpack.c.l.b16 %v2289
  %v2393 = vunpack.c.h.b16 %v2289
  %v2394 = vunpack.c.l.b16 %v2290
  %v2395 = vunpack.c.h.b16 %v2290
  %v2396 = vunpack.c.l.b16 %v2291
  %v2397 = vunpack.c.h.b16 %v2291
  %v2398 = vunpack.c.l.b16 %v2292
  %v2399 = vunpack.c.l.b16 %v2293
  %v2400 = vunpack.c.h.b16 %v2293
  %v2401 = vunpack.c.l.b16 %v2294
  %v2402 = vunpack.c.h.b16 %v2294
  %v2403 = vunpack.c.l.b16 %v2295
  %v2404 = vunpack.c.h.b16 %v2295
  %v2405 = vunpack.c.l.b16 %v2296
  %v2406 = vunpack.c.h.b16 %v2296
  %v2407 = vunpack.c.l.b16 %v2297
  %v2408 = vunpack.c.l.b16 %v2298
  %v2409 = vunpack.c.h.b16 %v2298
  %v2410 = vunpack.c.l.b16 %v2299
  %v2411 = vunpack.c.h.b16 %v2299
  %v2412 = vunpack.c.l.b16 %v2300
  %v2413 = vunpack.c.h.b16 %v2300
  %v2414 = vunpack.c.l.b16 %v2301
  %v2415 = vunpack.c.h.b16 %v2301
  %v2416 = vunpack.c.l.b16 %v2302
  %v2417 = vunpack.c.l.b16 %v2303
  %v2418 = vunpack.c.h.b16 %v2303
  %v2419 = vunpack.c.l.b16 %v2304
  %v2420 = vunpack.c.h.b16 %v2304
  %v2421 = vunpack.c.l.b16 %v2305
  %v2422 = vunpack.c.h.b16 %v2305
  %v2423 = vunpack.c.l.b16 %v2306
  %v2424 = vunpack.c.h.b16 %v2306
  %v2425 = vunpack.c.l.b16 %v2307
  %v2426 = vunpack.c.l.b16 %v2308
  %v2427 = vunpack.c.h.b16 %v2308
  %v2428 = vunpack.c.l.b16 %v2309
  %v2429 = vunpack.c.h.b16 %v2309
  %v2430 = vunpack.c.l.b16 %v2310
  %v2431 = vunpack.c.h.b16 %v2310
  %v2432 = vunpack.c.l.b16 %v2311
  %v2433 = vunpack.c.h.b16 %v2311
  %v2434 = vunpack.c.l.b16 %v2312
  %v2435 = vunpack.c.l.b16 %v2313
  %v2436 = vunpack.c.h.b16 %v2313
  %v2437 = vunpack.c.l.b16 %v2314
  %v2438 = vunpack.c.h.b16 %v2314
  %v2439 = vunpack.c.l.b16 %v2315
  %v2440 = vunpack.c.h.b16 %v2315
  %v2441 = vunpack.c.l.b16 %v2316
  %v2442 = vunpack.c.h.b16 %v2316
  %v2443 = vunpack.c.l.b16 %v2317
  %v2444 = vpack.c.b16 %v2372, %v2363
  %v2445 = vpack.c.b16 %v2373, %v2364
  %v2446 = vpack.c.b16 %v2374, %v2365
  %v2447 = vpack.c.b16 %v2375, %v2366
  %v2448 = vpack.c.b16 %v2376, %v2367
  %v2449 = vpack.c.b16 %v2377, %v2368
  %v2450 = vpack.c.b16 %v2378, %v2369
  %v2451 = vpack.c.b16 %v2379, %v2370
  %v2452 = vpack.c.b16 %v2380, %v2371
  %v2453 = vpack.c.b16 %v2390, %v2381
  %v2454 = vpack.c.b16 %v2391, %v2382
  %v2455 = vpack.c.b16 %v2392, %v2383
  %v2456 = vpack.c.b16 %v2393, %v2384
  %v2457 = vpack.c.b16 %v2394, %v2385
  %v2458 = vpack.c.b16 %v2395, %v2386
  %v2459 = vpack.c.b16 %v2396, %v2387
  %v2460 = vpack.c.b16 %v2397, %v2388
  %v2461 = vpack.c.b16 %v2398, %v2389
  %v2462 = vpack.c.b16 %v2408, %v2399
  %v2463 = vpack.c.b16 %v2409, %v2400
  %v2464 = vpack.c.b16 %v2410, %v2401
  %v2465 = vpack.c.b16 %v2411, %v2402
  %v2466 = vpack.c.b16 %v2412, %v2403
  %v2467 = vpack.c.b16 %v2413, %v2404
  %v2468 = vpack.c.b16 %v2414, %v2405
  %v2469 = vpack.c.b16 %v2415, %v2406
  %v2470 = vpack.c.b16 %v2416, %v2407
  %v2471 = vpack.c.b16 %v2426, %v2417
  %v2472 = vpack.c.b16 %v2427, %v2418
  %v2473 = vpack.c.b16 %v2428, %v2419
  %v2474 = vpack.c.b16 %v2429, %v2420
  %v2475 = vpack.c.b16 %v2430, %v2421
  %v2476 = vpack.c.b16 %v2431, %v2422
  %v2477 = vpack.c.b16 %v2432, %v2423
  %v2478 = vpack.c.b16 %v2433, %v2424
  %v2479 = vpack.c.b16 %v2434, %v2425
  %v2480 = vpack.c.b16 %v2435, %v2435
  %v2481 = vpack.c.b16 %v2436, %v2436
  %v2482 = vpack.c.b16 %v2437, %v2437
  %v2483 = vpack.c.b16 %v2438, %v2438
  %v2484 = vpack.c.b16 %v2439, %v2439
  %v2485 = vpack.c.b16 %v2440, %v2440
  %v2486 = vpack.c.b16 %v2441, %v2441
  %v2487 = vpack.c.b16 %v2442, %v2442
  %v2488 = vpack.c.b16 %v2443, %v2443
  %2534 = vmatpush.bf16.msra.mxu0 %v723
  %2535 = vmatpush.bf16.msra.mxu0 %v722
  %2536 = vmatpush.bf16.msra.mxu0 %v721
  %2537 = vmatpush.bf16.msra.mxu0 %v720
  %2538 = vmatpush.bf16.msra.mxu0 %v719
  %2539 = vmatpush.bf16.msra.mxu0 %v718
  %2540 = vmatpush.bf16.msra.mxu0 %v717
  %2541 = vmatpush.bf16.msra.mxu0 %v716
  %2542 = vmatmul.bf16.gmra.mxu0 %v2444
  %v2543 = vpop.f32.mrf.mxu0
  %v2544 = vadd.f32 0.0, %v2543
  %v2545 = vpop.f32.mrf.mxu0
  %v2546 = vadd.f32 0.0, %v2545
  %2547 = vmatmul.bf16.gmra.mxu0 %v2453
  %v2548 = vpop.f32.mrf.mxu0
  %v2549 = vadd.f32 0.0, %v2548
  %v2550 = vpop.f32.mrf.mxu0
  %v2551 = vadd.f32 0.0, %v2550
  %2552 = vmatmul.bf16.gmra.mxu0 %v2462
  %v2553 = vpop.f32.mrf.mxu0
  %v2554 = vadd.f32 0.0, %v2553
  %v2555 = vpop.f32.mrf.mxu0
  %v2556 = vadd.f32 0.0, %v2555
  %2557 = vmatmul.bf16.gmra.mxu0 %v2471
  %v2558 = vpop.f32.mrf.mxu0
  %v2559 = vadd.f32 0.0, %v2558
  %v2560 = vpop.f32.mrf.mxu0
  %v2561 = vadd.f32 0.0, %v2560
  %2562 = vmatmul.bf16.gmra.mxu0 %v2480
  %v2563 = vpop.f32.mrf.mxu0
  %v2564 = vadd.f32 0.0, %v2563
  %v2565 = vpop.f32.mrf.mxu0
  %2566 = vdwg.mxu0
  %2567 = vmatpush.bf16.msra.mxu0 %v731
  %2568 = vmatpush.bf16.msra.mxu0 %v730
  %2569 = vmatpush.bf16.msra.mxu0 %v729
  %2570 = vmatpush.bf16.msra.mxu0 %v728
  %2571 = vmatpush.bf16.msra.mxu0 %v727
  %2572 = vmatpush.bf16.msra.mxu0 %v726
  %2573 = vmatpush.bf16.msra.mxu0 %v725
  %2574 = vmatpush.bf16.msra.mxu0 %v724
  %2575 = vmatmul.bf16.gmra.mxu0 %v2445
  %v2576 = vpop.f32.mrf.mxu0
  %v2577 = vadd.f32 %v2544, %v2576
  %v2578 = vpop.f32.mrf.mxu0
  %v2579 = vadd.f32 %v2546, %v2578
  %2580 = vmatmul.bf16.gmra.mxu0 %v2454
  %v2581 = vpop.f32.mrf.mxu0
  %v2582 = vadd.f32 %v2549, %v2581
  %v2583 = vpop.f32.mrf.mxu0
  %v2584 = vadd.f32 %v2551, %v2583
  %2585 = vmatmul.bf16.gmra.mxu0 %v2463
  %v2586 = vpop.f32.mrf.mxu0
  %v2587 = vadd.f32 %v2554, %v2586
  %v2588 = vpop.f32.mrf.mxu0
  %v2589 = vadd.f32 %v2556, %v2588
  %2590 = vmatmul.bf16.gmra.mxu0 %v2472
  %v2591 = vpop.f32.mrf.mxu0
  %v2592 = vadd.f32 %v2559, %v2591
  %v2593 = vpop.f32.mrf.mxu0
  %v2594 = vadd.f32 %v2561, %v2593
  %2595 = vmatmul.bf16.gmra.mxu0 %v2481
  %v2596 = vpop.f32.mrf.mxu0
  %v2597 = vadd.f32 %v2564, %v2596
  %v2598 = vpop.f32.mrf.mxu0
  %2599 = vdwg.mxu0
  %2600 = vmatpush.bf16.msra.mxu0 %v739
  %2601 = vmatpush.bf16.msra.mxu0 %v738
  %2602 = vmatpush.bf16.msra.mxu0 %v737
  %2603 = vmatpush.bf16.msra.mxu0 %v736
  %2604 = vmatpush.bf16.msra.mxu0 %v735
  %2605 = vmatpush.bf16.msra.mxu0 %v734
  %2606 = vmatpush.bf16.msra.mxu0 %v733
  %2607 = vmatpush.bf16.msra.mxu0 %v732
  %2608 = vmatmul.bf16.gmra.mxu0 %v2446
  %v2609 = vpop.f32.mrf.mxu0
  %v2610 = vadd.f32 %v2577, %v2609
  %v2611 = vpop.f32.mrf.mxu0
  %v2612 = vadd.f32 %v2579, %v2611
  %2613 = vmatmul.bf16.gmra.mxu0 %v2455
  %v2614 = vpop.f32.mrf.mxu0
  %v2615 = vadd.f32 %v2582, %v2614
  %v2616 = vpop.f32.mrf.mxu0
  %v2617 = vadd.f32 %v2584, %v2616
  %2618 = vmatmul.bf16.gmra.mxu0 %v2464
  %v2619 = vpop.f32.mrf.mxu0
  %v2620 = vadd.f32 %v2587, %v2619
  %v2621 = vpop.f32.mrf.mxu0
  %v2622 = vadd.f32 %v2589, %v2621
  %2623 = vmatmul.bf16.gmra.mxu0 %v2473
  %v2624 = vpop.f32.mrf.mxu0
  %v2625 = vadd.f32 %v2592, %v2624
  %v2626 = vpop.f32.mrf.mxu0
  %v2627 = vadd.f32 %v2594, %v2626
  %2628 = vmatmul.bf16.gmra.mxu0 %v2482
  %v2629 = vpop.f32.mrf.mxu0
  %v2630 = vadd.f32 %v2597, %v2629
  %v2631 = vpop.f32.mrf.mxu0
  %2632 = vdwg.mxu0
  %2633 = vmatpush.bf16.msra.mxu0 %v747
  %2634 = vmatpush.bf16.msra.mxu0 %v746
  %2635 = vmatpush.bf16.msra.mxu0 %v745
  %2636 = vmatpush.bf16.msra.mxu0 %v744
  %2637 = vmatpush.bf16.msra.mxu0 %v743
  %2638 = vmatpush.bf16.msra.mxu0 %v742
  %2639 = vmatpush.bf16.msra.mxu0 %v741
  %2640 = vmatpush.bf16.msra.mxu0 %v740
  %2641 = vmatmul.bf16.gmra.mxu0 %v2447
  %v2642 = vpop.f32.mrf.mxu0
  %v2643 = vadd.f32 %v2610, %v2642
  %v2644 = vpop.f32.mrf.mxu0
  %v2645 = vadd.f32 %v2612, %v2644
  %2646 = vmatmul.bf16.gmra.mxu0 %v2456
  %v2647 = vpop.f32.mrf.mxu0
  %v2648 = vadd.f32 %v2615, %v2647
  %v2649 = vpop.f32.mrf.mxu0
  %v2650 = vadd.f32 %v2617, %v2649
  %2651 = vmatmul.bf16.gmra.mxu0 %v2465
  %v2652 = vpop.f32.mrf.mxu0
  %v2653 = vadd.f32 %v2620, %v2652
  %v2654 = vpop.f32.mrf.mxu0
  %v2655 = vadd.f32 %v2622, %v2654
  %2656 = vmatmul.bf16.gmra.mxu0 %v2474
  %v2657 = vpop.f32.mrf.mxu0
  %v2658 = vadd.f32 %v2625, %v2657
  %v2659 = vpop.f32.mrf.mxu0
  %v2660 = vadd.f32 %v2627, %v2659
  %2661 = vmatmul.bf16.gmra.mxu0 %v2483
  %v2662 = vpop.f32.mrf.mxu0
  %v2663 = vadd.f32 %v2630, %v2662
  %v2664 = vpop.f32.mrf.mxu0
  %2665 = vdwg.mxu0
  %2666 = vmatpush.bf16.msra.mxu0 %v755
  %2667 = vmatpush.bf16.msra.mxu0 %v754
  %2668 = vmatpush.bf16.msra.mxu0 %v753
  %2669 = vmatpush.bf16.msra.mxu0 %v752
  %2670 = vmatpush.bf16.msra.mxu0 %v751
  %2671 = vmatpush.bf16.msra.mxu0 %v750
  %2672 = vmatpush.bf16.msra.mxu0 %v749
  %2673 = vmatpush.bf16.msra.mxu0 %v748
  %2674 = vmatmul.bf16.gmra.mxu0 %v2448
  %v2675 = vpop.f32.mrf.mxu0
  %v2676 = vadd.f32 %v2643, %v2675
  %v2677 = vpop.f32.mrf.mxu0
  %v2678 = vadd.f32 %v2645, %v2677
  %2679 = vmatmul.bf16.gmra.mxu0 %v2457
  %v2680 = vpop.f32.mrf.mxu0
  %v2681 = vadd.f32 %v2648, %v2680
  %v2682 = vpop.f32.mrf.mxu0
  %v2683 = vadd.f32 %v2650, %v2682
  %2684 = vmatmul.bf16.gmra.mxu0 %v2466
  %v2685 = vpop.f32.mrf.mxu0
  %v2686 = vadd.f32 %v2653, %v2685
  %v2687 = vpop.f32.mrf.mxu0
  %v2688 = vadd.f32 %v2655, %v2687
  %2689 = vmatmul.bf16.gmra.mxu0 %v2475
  %v2690 = vpop.f32.mrf.mxu0
  %v2691 = vadd.f32 %v2658, %v2690
  %v2692 = vpop.f32.mrf.mxu0
  %v2693 = vadd.f32 %v2660, %v2692
  %2694 = vmatmul.bf16.gmra.mxu0 %v2484
  %v2695 = vpop.f32.mrf.mxu0
  %v2696 = vadd.f32 %v2663, %v2695
  %v2697 = vpop.f32.mrf.mxu0
  %2698 = vdwg.mxu0
  %2699 = vmatpush.bf16.msra.mxu0 %v763
  %2700 = vmatpush.bf16.msra.mxu0 %v762
  %2701 = vmatpush.bf16.msra.mxu0 %v761
  %2702 = vmatpush.bf16.msra.mxu0 %v760
  %2703 = vmatpush.bf16.msra.mxu0 %v759
  %2704 = vmatpush.bf16.msra.mxu0 %v758
  %2705 = vmatpush.bf16.msra.mxu0 %v757
  %2706 = vmatpush.bf16.msra.mxu0 %v756
  %2707 = vmatmul.bf16.gmra.mxu0 %v2449
  %v2708 = vpop.f32.mrf.mxu0
  %v2709 = vadd.f32 %v2676, %v2708
  %v2710 = vpop.f32.mrf.mxu0
  %v2711 = vadd.f32 %v2678, %v2710
  %2712 = vmatmul.bf16.gmra.mxu0 %v2458
  %v2713 = vpop.f32.mrf.mxu0
  %v2714 = vadd.f32 %v2681, %v2713
  %v2715 = vpop.f32.mrf.mxu0
  %v2716 = vadd.f32 %v2683, %v2715
  %2717 = vmatmul.bf16.gmra.mxu0 %v2467
  %v2718 = vpop.f32.mrf.mxu0
  %v2719 = vadd.f32 %v2686, %v2718
  %v2720 = vpop.f32.mrf.mxu0
  %v2721 = vadd.f32 %v2688, %v2720
  %2722 = vmatmul.bf16.gmra.mxu0 %v2476
  %v2723 = vpop.f32.mrf.mxu0
  %v2724 = vadd.f32 %v2691, %v2723
  %v2725 = vpop.f32.mrf.mxu0
  %v2726 = vadd.f32 %v2693, %v2725
  %2727 = vmatmul.bf16.gmra.mxu0 %v2485
  %v2728 = vpop.f32.mrf.mxu0
  %v2729 = vadd.f32 %v2696, %v2728
  %v2730 = vpop.f32.mrf.mxu0
  %2731 = vdwg.mxu0
  %2732 = vmatpush.bf16.msra.mxu0 %v771
  %2733 = vmatpush.bf16.msra.mxu0 %v770
  %2734 = vmatpush.bf16.msra.mxu0 %v769
  %2735 = vmatpush.bf16.msra.mxu0 %v768
  %2736 = vmatpush.bf16.msra.mxu0 %v767
  %2737 = vmatpush.bf16.msra.mxu0 %v766
  %2738 = vmatpush.bf16.msra.mxu0 %v765
  %2739 = vmatpush.bf16.msra.mxu0 %v764
  %2740 = vmatmul.bf16.gmra.mxu0 %v2450
  %v2741 = vpop.f32.mrf.mxu0
  %v2742 = vadd.f32 %v2709, %v2741
  %v2743 = vpop.f32.mrf.mxu0
  %v2744 = vadd.f32 %v2711, %v2743
  %2745 = vmatmul.bf16.gmra.mxu0 %v2459
  %v2746 = vpop.f32.mrf.mxu0
  %v2747 = vadd.f32 %v2714, %v2746
  %v2748 = vpop.f32.mrf.mxu0
  %v2749 = vadd.f32 %v2716, %v2748
  %2750 = vmatmul.bf16.gmra.mxu0 %v2468
  %v2751 = vpop.f32.mrf.mxu0
  %v2752 = vadd.f32 %v2719, %v2751
  %v2753 = vpop.f32.mrf.mxu0
  %v2754 = vadd.f32 %v2721, %v2753
  %2755 = vmatmul.bf16.gmra.mxu0 %v2477
  %v2756 = vpop.f32.mrf.mxu0
  %v2757 = vadd.f32 %v2724, %v2756
  %v2758 = vpop.f32.mrf.mxu0
  %v2759 = vadd.f32 %v2726, %v2758
  %2760 = vmatmul.bf16.gmra.mxu0 %v2486
  %v2761 = vpop.f32.mrf.mxu0
  %v2762 = vadd.f32 %v2729, %v2761
  %v2763 = vpop.f32.mrf.mxu0
  %2764 = vdwg.mxu0
  %2765 = vmatpush.bf16.msra.mxu0 %v779
  %2766 = vmatpush.bf16.msra.mxu0 %v778
  %2767 = vmatpush.bf16.msra.mxu0 %v777
  %2768 = vmatpush.bf16.msra.mxu0 %v776
  %2769 = vmatpush.bf16.msra.mxu0 %v775
  %2770 = vmatpush.bf16.msra.mxu0 %v774
  %2771 = vmatpush.bf16.msra.mxu0 %v773
  %2772 = vmatpush.bf16.msra.mxu0 %v772
  %2773 = vmatmul.bf16.gmra.mxu0 %v2451
  %v2774 = vpop.f32.mrf.mxu0
  %v2775 = vadd.f32 %v2742, %v2774
  %v2776 = vpop.f32.mrf.mxu0
  %v2777 = vadd.f32 %v2744, %v2776
  %2778 = vmatmul.bf16.gmra.mxu0 %v2460
  %v2779 = vpop.f32.mrf.mxu0
  %v2780 = vadd.f32 %v2747, %v2779
  %v2781 = vpop.f32.mrf.mxu0
  %v2782 = vadd.f32 %v2749, %v2781
  %2783 = vmatmul.bf16.gmra.mxu0 %v2469
  %v2784 = vpop.f32.mrf.mxu0
  %v2785 = vadd.f32 %v2752, %v2784
  %v2786 = vpop.f32.mrf.mxu0
  %v2787 = vadd.f32 %v2754, %v2786
  %2788 = vmatmul.bf16.gmra.mxu0 %v2478
  %v2789 = vpop.f32.mrf.mxu0
  %v2790 = vadd.f32 %v2757, %v2789
  %v2791 = vpop.f32.mrf.mxu0
  %v2792 = vadd.f32 %v2759, %v2791
  %2793 = vmatmul.bf16.gmra.mxu0 %v2487
  %v2794 = vpop.f32.mrf.mxu0
  %v2795 = vadd.f32 %v2762, %v2794
  %v2796 = vpop.f32.mrf.mxu0
  %2797 = vdwg.mxu0
  %2798 = vmatpush.bf16.msra.mxu0 %v787
  %2799 = vmatpush.bf16.msra.mxu0 %v786
  %2800 = vmatpush.bf16.msra.mxu0 %v785
  %2801 = vmatpush.bf16.msra.mxu0 %v784
  %2802 = vmatpush.bf16.msra.mxu0 %v783
  %2803 = vmatpush.bf16.msra.mxu0 %v782
  %2804 = vmatpush.bf16.msra.mxu0 %v781
  %2805 = vmatpush.bf16.msra.mxu0 %v780
  %2806 = vmatmul.bf16.gmra.mxu0 %v2452
  %v2807 = vpop.f32.mrf.mxu0
  %v2808 = vadd.f32 %v2775, %v2807
  %v2809 = vpop.f32.mrf.mxu0
  %v2810 = vadd.f32 %v2777, %v2809
  %2811 = vmatmul.bf16.gmra.mxu0 %v2461
  %v2812 = vpop.f32.mrf.mxu0
  %v2813 = vadd.f32 %v2780, %v2812
  %v2814 = vpop.f32.mrf.mxu0
  %v2815 = vadd.f32 %v2782, %v2814
  %2816 = vmatmul.bf16.gmra.mxu0 %v2470
  %v2817 = vpop.f32.mrf.mxu0
  %v2818 = vadd.f32 %v2785, %v2817
  %v2819 = vpop.f32.mrf.mxu0
  %v2820 = vadd.f32 %v2787, %v2819
  %2821 = vmatmul.bf16.gmra.mxu0 %v2479
  %v2822 = vpop.f32.mrf.mxu0
  %v2823 = vadd.f32 %v2790, %v2822
  %v2824 = vpop.f32.mrf.mxu0
  %v2825 = vadd.f32 %v2792, %v2824
  %2826 = vmatmul.bf16.gmra.mxu0 %v2488
  %v2827 = vpop.f32.mrf.mxu0
  %v2828 = vadd.f32 %v2795, %v2827
  %v2829 = vpop.f32.mrf.mxu0
  %2830 = vdwg.mxu0
  %v2831 = vmax.f32 %v1134, %v1692
  %v2832 = vmax.f32 %v1136, %v1694
  %v2833 = vmax.f32 %v1139, %v1697
  %v2834 = vmax.f32 %v1141, %v1699
  %v2835 = vmax.f32 %v1144, %v1702
  %v2836 = vmax.f32 %v1146, %v1704
  %v2837 = vmax.f32 %v1149, %v1707
  %v2838 = vmax.f32 %v1151, %v1709
  %v2839 = vmax.f32 %v1154, %v1712
  %v2840 = vmax.f32 %v2250, %v2808
  %v2841 = vmax.f32 %v2252, %v2810
  %v2842 = vmax.f32 %v2255, %v2813
  %v2843 = vmax.f32 %v2257, %v2815
  %v2844 = vmax.f32 %v2260, %v2818
  %v2845 = vmax.f32 %v2262, %v2820
  %v2846 = vmax.f32 %v2265, %v2823
  %v2847 = vmax.f32 %v2267, %v2825
  %v2848 = vmax.f32 %v2270, %v2828
  %v2849 = vmax.f32 %v2831, %v2840
  %v2850 = vmax.f32 %v2832, %v2841
  %v2851 = vmax.f32 %v2833, %v2842
  %v2852 = vmax.f32 %v2834, %v2843
  %v2853 = vmax.f32 %v2835, %v2844
  %v2854 = vmax.f32 %v2836, %v2845
  %v2855 = vmax.f32 %v2837, %v2846
  %v2856 = vmax.f32 %v2838, %v2847
  %v2857 = vmax.f32 %v2839, %v2848
  %v2858 = vld [vmem:[%s5] sm:$0x1]
  %v2860 = vperm.slane %v2858, 0
  %v2862 = vadd.f32 %v2849, %v2860
  %v2863 = vadd.f32 %v2850, %v2860
  %v2864 = vadd.f32 %v2851, %v2860
  %v2865 = vadd.f32 %v2852, %v2860
  %v2866 = vadd.f32 %v2853, %v2860
  %v2867 = vadd.f32 %v2854, %v2860
  %v2868 = vadd.f32 %v2855, %v2860
  %v2869 = vadd.f32 %v2856, %v2860
  %v2870 = vadd.f32 %v2857, %v2860
  %v2871 = vmax.f32 %v2862, 0.0
  %v2872 = vmax.f32 %v2863, 0.0
  %v2873 = vmax.f32 %v2864, 0.0
  %v2874 = vmax.f32 %v2865, 0.0
  %v2875 = vmax.f32 %v2866, 0.0
  %v2876 = vmax.f32 %v2867, 0.0
  %v2877 = vmax.f32 %v2868, 0.0
  %v2878 = vmax.f32 %v2869, 0.0
  %v2879 = vmax.f32 %v2870, 0.0
  %2880 = vst [vmem:[%s6] sm:$0xff] %v2871
  %2881 = vst [vmem:[%s6 + $0x8] sm:$0xff] %v2872
  %2882 = vst [vmem:[%s6 + $0x10] sm:$0xff] %v2873
  %2883 = vst [vmem:[%s6 + $0x18] sm:$0xff] %v2874
  %2884 = vst [vmem:[%s6 + $0x20] sm:$0xff] %v2875
  %2885 = vst [vmem:[%s6 + $0x28] sm:$0xff] %v2876
  %2886 = vst [vmem:[%s6 + $0x30] sm:$0xff] %v2877
  %2887 = vst [vmem:[%s6 + $0x38] sm:$0xff] %v2878
  %2888 = vst [vmem:[%s6 + $0x40] sm:$0xff] %v2879
  // Predicated region
  $region26: #{net_one_forward.4} parent=0 // pred_check
    _
  $region27: #{net_one_forward.4} parent=0 // pred_check_branch
    %2890 = sbr.rel (0) target = $region29
  $region28: #{net_one_forward.4} parent=0 // pred_region
    _
  $region29: #{net_one_forward.4} parent=0 // pred_fallthru
    _
  // Predicated region
  $region30: #{net_one_forward.4} parent=0 // pred_check
    _
  $region31: #{net_one_forward.4} parent=0 // pred_check_branch
    %2892 = sbr.rel (0) target = $region33
  $region32: #{net_one_forward.4} parent=0 // pred_region
    _
  $region33: #{net_one_forward.4} parent=0 // pred_fallthru
    _

// kernel: net_one_forward.5
$region0: #{net_one_forward.5}
  #allocation0 [shape = 'u32[]', space=smem, size = 0x4, offset = 0x4, fixed_abs, tag = 'smem constant byte address 0x4 - core index']
  #allocation1 [shape = 'u32[72,128]{1,0:T(1,128)}', space=vmem, size = 0x9000, scoped, tag = 'internal scratch']
  %s0 = inlined_call_operand.vmem [shape: bf16[2,4608], index: 0, kind: input, shape index: {}]
  %s1 = inlined_call_operand.vmem [shape: bf16[4608,10], index: 1, kind: input, shape index: {}]
  %s2 = inlined_call_operand.vmem [shape: f32[1,10], index: 2, kind: input, shape index: {}]
  %s3 = inlined_call_operand.hbm [shape: f32[2,10], index: 3, kind: output, shape index: {}]
  %s4 = sld [smem:[#allocation0]]
  $region22: #{net_one_forward.5} parent=0
    _
  %s6 = ssub.s32 1, %s4
  %s7 = scalar_select 0, %s6, %s4
  $region1: #{net_one_forward.5} parent=0
    #allocation2 [shape = 'u8[1024]{0}', space=vmem, size = 0x400, scoped, tag = 'output window, operand 0, single buffered']
    #allocation3 [shape = 's32[1]{0}', space=sflag, size = 0x4, scoped, tag = 'scoped memory for net_one_forward.5']
    %8 = vsyncpa [#allocation3], 0
    // Predicated region
    $region2: #{net_one_forward.5} parent=1 // pred_check
      _
    $region3: #{net_one_forward.5} parent=1 // pred_check_branch
      %10 = sbr.rel (0) target = $region5
    $region4: #{net_one_forward.5} parent=1 // pred_region
      _
    $region5: #{net_one_forward.5} parent=1 // pred_fallthru
      _
    // Predicated region
    $region6: #{net_one_forward.5} parent=1 // pred_check
      _
    $region7: #{net_one_forward.5} parent=1 // pred_check_branch
      %12 = sbr.rel (0) target = $region9
    $region8: #{net_one_forward.5} parent=1 // pred_region
      _
    $region9: #{net_one_forward.5} parent=1 // pred_fallthru
      _
    // Predicated region
    $region10: #{net_one_forward.5} parent=1 // pred_check
      _
    $region11: #{net_one_forward.5} parent=1 // pred_check_branch
      %14 = sbr.rel (0) target = $region13
    $region12: #{net_one_forward.5} parent=1 // pred_region
      _
    $region13: #{net_one_forward.5} parent=1 // pred_fallthru
      _
    %v15 = vld [vmem:[%s0] sm:$0xff]
    %v16 = vld [vmem:[%s0 + $0x8] sm:$0xff]
    %v17 = vld [vmem:[%s0 + $0x10] sm:$0xff]
    %v18 = vld [vmem:[%s0 + $0x18] sm:$0xff]
    %v19 = vld [vmem:[%s0 + $0x20] sm:$0xf]
    %v20 = vld [vmem:[%s1] sm:$0xf]
    %v21 = vld [vmem:[%s1 + $0x4] sm:$0xf]
    %v22 = vld [vmem:[%s1 + $0x8] sm:$0xf]
    %v23 = vld [vmem:[%s1 + $0xc] sm:$0xf]
    %v24 = vld [vmem:[%s1 + $0x10] sm:$0xf]
    %v25 = vld [vmem:[%s1 + $0x14] sm:$0xf]
    %v26 = vld [vmem:[%s1 + $0x18] sm:$0xf]
    %v27 = vld [vmem:[%s1 + $0x1c] sm:$0xf]
    %v28 = vld [vmem:[%s1 + $0x20] sm:$0xf]
    %v29 = vld [vmem:[%s1 + $0x24] sm:$0xf]
    %v30 = vld [vmem:[%s1 + $0x28] sm:$0xf]
    %v31 = vld [vmem:[%s1 + $0x2c] sm:$0xf]
    %v32 = vld [vmem:[%s1 + $0x30] sm:$0xf]
    %v33 = vld [vmem:[%s1 + $0x34] sm:$0xf]
    %v34 = vld [vmem:[%s1 + $0x38] sm:$0xf]
    %v35 = vld [vmem:[%s1 + $0x3c] sm:$0xf]
    %v36 = vld [vmem:[%s1 + $0x40] sm:$0xf]
    %v37 = vld [vmem:[%s1 + $0x44] sm:$0xf]
    %v38 = vld [vmem:[%s1 + $0x48] sm:$0xf]
    %v39 = vld [vmem:[%s1 + $0x4c] sm:$0xf]
    %v40 = vld [vmem:[%s1 + $0x50] sm:$0xf]
    %v41 = vld [vmem:[%s1 + $0x54] sm:$0xf]
    %v42 = vld [vmem:[%s1 + $0x58] sm:$0xf]
    %v43 = vld [vmem:[%s1 + $0x5c] sm:$0xf]
    %v44 = vld [vmem:[%s1 + $0x60] sm:$0xf]
    %v45 = vld [vmem:[%s1 + $0x64] sm:$0xf]
    %v46 = vld [vmem:[%s1 + $0x68] sm:$0xf]
    %v47 = vld [vmem:[%s1 + $0x6c] sm:$0xf]
    %v48 = vld [vmem:[%s1 + $0x70] sm:$0xf]
    %v49 = vld [vmem:[%s1 + $0x74] sm:$0xf]
    %v50 = vld [vmem:[%s1 + $0x78] sm:$0xf]
    %v51 = vld [vmem:[%s1 + $0x7c] sm:$0xf]
    %v52 = vld [vmem:[%s1 + $0x80] sm:$0xf]
    %v53 = vld [vmem:[%s1 + $0x84] sm:$0xf]
    %v54 = vld [vmem:[%s1 + $0x88] sm:$0xf]
    %v55 = vld [vmem:[%s1 + $0x8c] sm:$0xf]
    %v56 = vld [vmem:[%s1 + $0x90] sm:$0xf]
    %v57 = vld [vmem:[%s1 + $0x94] sm:$0xf]
    %v58 = vld [vmem:[%s1 + $0x98] sm:$0xf]
    %v59 = vld [vmem:[%s1 + $0x9c] sm:$0xf]
    %v60 = vld [vmem:[%s1 + $0xa0] sm:$0xf]
    %v61 = vld [vmem:[%s1 + $0xa4] sm:$0xf]
    %v62 = vld [vmem:[%s1 + $0xa8] sm:$0xf]
    %v63 = vld [vmem:[%s1 + $0xac] sm:$0xf]
    %v64 = vld [vmem:[%s1 + $0xb0] sm:$0xf]
    %v65 = vld [vmem:[%s1 + $0xb4] sm:$0xf]
    %v66 = vld [vmem:[%s1 + $0xb8] sm:$0xf]
    %v67 = vld [vmem:[%s1 + $0xbc] sm:$0xf]
    %v68 = vld [vmem:[%s1 + $0xc0] sm:$0xf]
    %v69 = vld [vmem:[%s1 + $0xc4] sm:$0xf]
    %v70 = vld [vmem:[%s1 + $0xc8] sm:$0xf]
    %v71 = vld [vmem:[%s1 + $0xcc] sm:$0xf]
    %v72 = vld [vmem:[%s1 + $0xd0] sm:$0xf]
    %v73 = vld [vmem:[%s1 + $0xd4] sm:$0xf]
    %v74 = vld [vmem:[%s1 + $0xd8] sm:$0xf]
    %v75 = vld [vmem:[%s1 + $0xdc] sm:$0xf]
    %v76 = vld [vmem:[%s1 + $0xe0] sm:$0xf]
    %v77 = vld [vmem:[%s1 + $0xe4] sm:$0xf]
    %v78 = vld [vmem:[%s1 + $0xe8] sm:$0xf]
    %v79 = vld [vmem:[%s1 + $0xec] sm:$0xf]
    %v80 = vld [vmem:[%s1 + $0xf0] sm:$0xf]
    %v81 = vld [vmem:[%s1 + $0xf4] sm:$0xf]
    %v82 = vld [vmem:[%s1 + $0xf8] sm:$0xf]
    %v83 = vld [vmem:[%s1 + $0xfc] sm:$0xf]
    %v84 = vld [vmem:[%s1 + $0x100] sm:$0xf]
    %v85 = vld [vmem:[%s1 + $0x104] sm:$0xf]
    %v86 = vld [vmem:[%s1 + $0x108] sm:$0xf]
    %v87 = vld [vmem:[%s1 + $0x10c] sm:$0xf]
    %v88 = vld [vmem:[%s1 + $0x110] sm:$0xf]
    %v89 = vld [vmem:[%s1 + $0x114] sm:$0xf]
    %v90 = vld [vmem:[%s1 + $0x118] sm:$0xf]
    %v91 = vld [vmem:[%s1 + $0x11c] sm:$0xf]
    %v92 = vld [vmem:[%s1 + $0x120] sm:$0xf]
    %v93 = vld [vmem:[%s1 + $0x124] sm:$0xf]
    %v94 = vld [vmem:[%s1 + $0x128] sm:$0xf]
    %v95 = vld [vmem:[%s1 + $0x12c] sm:$0xf]
    %v96 = vld [vmem:[%s1 + $0x130] sm:$0xf]
    %v97 = vld [vmem:[%s1 + $0x134] sm:$0xf]
    %v98 = vld [vmem:[%s1 + $0x138] sm:$0xf]
    %v99 = vld [vmem:[%s1 + $0x13c] sm:$0xf]
    %v100 = vld [vmem:[%s1 + $0x140] sm:$0xf]
    %v101 = vld [vmem:[%s1 + $0x144] sm:$0xf]
    %v102 = vld [vmem:[%s1 + $0x148] sm:$0xf]
    %v103 = vld [vmem:[%s1 + $0x14c] sm:$0xf]
    %v104 = vld [vmem:[%s1 + $0x150] sm:$0xf]
    %v105 = vld [vmem:[%s1 + $0x154] sm:$0xf]
    %v106 = vld [vmem:[%s1 + $0x158] sm:$0xf]
    %v107 = vld [vmem:[%s1 + $0x15c] sm:$0xf]
    %v108 = vld [vmem:[%s1 + $0x160] sm:$0xf]
    %v109 = vld [vmem:[%s1 + $0x164] sm:$0xf]
    %v110 = vld [vmem:[%s1 + $0x168] sm:$0xf]
    %v111 = vld [vmem:[%s1 + $0x16c] sm:$0xf]
    %v112 = vld [vmem:[%s1 + $0x170] sm:$0xf]
    %v113 = vld [vmem:[%s1 + $0x174] sm:$0xf]
    %v114 = vld [vmem:[%s1 + $0x178] sm:$0xf]
    %v115 = vld [vmem:[%s1 + $0x17c] sm:$0xf]
    %v116 = vld [vmem:[%s1 + $0x180] sm:$0xf]
    %v117 = vld [vmem:[%s1 + $0x184] sm:$0xf]
    %v118 = vld [vmem:[%s1 + $0x188] sm:$0xf]
    %v119 = vld [vmem:[%s1 + $0x18c] sm:$0xf]
    %v120 = vld [vmem:[%s1 + $0x190] sm:$0xf]
    %v121 = vld [vmem:[%s1 + $0x194] sm:$0xf]
    %v122 = vld [vmem:[%s1 + $0x198] sm:$0xf]
    %v123 = vld [vmem:[%s1 + $0x19c] sm:$0xf]
    %v124 = vld [vmem:[%s1 + $0x1a0] sm:$0xf]
    %v125 = vld [vmem:[%s1 + $0x1a4] sm:$0xf]
    %v126 = vld [vmem:[%s1 + $0x1a8] sm:$0xf]
    %v127 = vld [vmem:[%s1 + $0x1ac] sm:$0xf]
    %v128 = vld [vmem:[%s1 + $0x1b0] sm:$0xf]
    %v129 = vld [vmem:[%s1 + $0x1b4] sm:$0xf]
    %v130 = vld [vmem:[%s1 + $0x1b8] sm:$0xf]
    %v131 = vld [vmem:[%s1 + $0x1bc] sm:$0xf]
    %v132 = vld [vmem:[%s1 + $0x1c0] sm:$0xf]
    %v133 = vld [vmem:[%s1 + $0x1c4] sm:$0xf]
    %v134 = vld [vmem:[%s1 + $0x1c8] sm:$0xf]
    %v135 = vld [vmem:[%s1 + $0x1cc] sm:$0xf]
    %v136 = vld [vmem:[%s1 + $0x1d0] sm:$0xf]
    %v137 = vld [vmem:[%s1 + $0x1d4] sm:$0xf]
    %v138 = vld [vmem:[%s1 + $0x1d8] sm:$0xf]
    %v139 = vld [vmem:[%s1 + $0x1dc] sm:$0xf]
    %v140 = vld [vmem:[%s1 + $0x1e0] sm:$0xf]
    %v141 = vld [vmem:[%s1 + $0x1e4] sm:$0xf]
    %v142 = vld [vmem:[%s1 + $0x1e8] sm:$0xf]
    %v143 = vld [vmem:[%s1 + $0x1ec] sm:$0xf]
    %v144 = vld [vmem:[%s1 + $0x1f0] sm:$0xf]
    %v145 = vld [vmem:[%s1 + $0x1f4] sm:$0xf]
    %v146 = vld [vmem:[%s1 + $0x1f8] sm:$0xf]
    %v147 = vld [vmem:[%s1 + $0x1fc] sm:$0xf]
    %v148 = vld [vmem:[%s1 + $0x200] sm:$0xf]
    %v149 = vld [vmem:[%s1 + $0x204] sm:$0xf]
    %v150 = vld [vmem:[%s1 + $0x208] sm:$0xf]
    %v151 = vld [vmem:[%s1 + $0x20c] sm:$0xf]
    %v152 = vld [vmem:[%s1 + $0x210] sm:$0xf]
    %v153 = vld [vmem:[%s1 + $0x214] sm:$0xf]
    %v154 = vld [vmem:[%s1 + $0x218] sm:$0xf]
    %v155 = vld [vmem:[%s1 + $0x21c] sm:$0xf]
    %v156 = vld [vmem:[%s1 + $0x220] sm:$0xf]
    %v157 = vld [vmem:[%s1 + $0x224] sm:$0xf]
    %v158 = vld [vmem:[%s1 + $0x228] sm:$0xf]
    %v159 = vld [vmem:[%s1 + $0x22c] sm:$0xf]
    %v160 = vld [vmem:[%s1 + $0x230] sm:$0xf]
    %v161 = vld [vmem:[%s1 + $0x234] sm:$0xf]
    %v162 = vld [vmem:[%s1 + $0x238] sm:$0xf]
    %v163 = vld [vmem:[%s1 + $0x23c] sm:$0xf]
    %v164 = vld [vmem:[%s1 + $0x240] sm:$0xf]
    %v165 = vld [vmem:[%s1 + $0x244] sm:$0xf]
    %v166 = vld [vmem:[%s1 + $0x248] sm:$0xf]
    %v167 = vld [vmem:[%s1 + $0x24c] sm:$0xf]
    %v168 = vld [vmem:[%s1 + $0x250] sm:$0xf]
    %v169 = vld [vmem:[%s1 + $0x254] sm:$0xf]
    %v170 = vld [vmem:[%s1 + $0x258] sm:$0xf]
    %v171 = vld [vmem:[%s1 + $0x25c] sm:$0xf]
    %v172 = vld [vmem:[%s1 + $0x260] sm:$0xf]
    %v173 = vld [vmem:[%s1 + $0x264] sm:$0xf]
    %v174 = vld [vmem:[%s1 + $0x268] sm:$0xf]
    %v175 = vld [vmem:[%s1 + $0x26c] sm:$0xf]
    %v176 = vld [vmem:[%s1 + $0x270] sm:$0xf]
    %v177 = vld [vmem:[%s1 + $0x274] sm:$0xf]
    %v178 = vld [vmem:[%s1 + $0x278] sm:$0xf]
    %v179 = vld [vmem:[%s1 + $0x27c] sm:$0xf]
    %v180 = vld [vmem:[%s1 + $0x280] sm:$0xf]
    %v181 = vld [vmem:[%s1 + $0x284] sm:$0xf]
    %v182 = vld [vmem:[%s1 + $0x288] sm:$0xf]
    %v183 = vld [vmem:[%s1 + $0x28c] sm:$0xf]
    %v184 = vld [vmem:[%s1 + $0x290] sm:$0xf]
    %v185 = vld [vmem:[%s1 + $0x294] sm:$0xf]
    %v186 = vld [vmem:[%s1 + $0x298] sm:$0xf]
    %v187 = vld [vmem:[%s1 + $0x29c] sm:$0xf]
    %v188 = vld [vmem:[%s1 + $0x2a0] sm:$0xf]
    %v189 = vld [vmem:[%s1 + $0x2a4] sm:$0xf]
    %v190 = vld [vmem:[%s1 + $0x2a8] sm:$0xf]
    %v191 = vld [vmem:[%s1 + $0x2ac] sm:$0xf]
    %v192 = vld [vmem:[%s1 + $0x2b0] sm:$0xf]
    %v193 = vld [vmem:[%s1 + $0x2b4] sm:$0xf]
    %v194 = vld [vmem:[%s1 + $0x2b8] sm:$0xf]
    %v195 = vld [vmem:[%s1 + $0x2bc] sm:$0xf]
    %v196 = vld [vmem:[%s1 + $0x2c0] sm:$0xf]
    %v197 = vld [vmem:[%s1 + $0x2c4] sm:$0xf]
    %v198 = vld [vmem:[%s1 + $0x2c8] sm:$0xf]
    %v199 = vld [vmem:[%s1 + $0x2cc] sm:$0xf]
    %v200 = vld [vmem:[%s1 + $0x2d0] sm:$0xf]
    %v201 = vld [vmem:[%s1 + $0x2d4] sm:$0xf]
    %v202 = vld [vmem:[%s1 + $0x2d8] sm:$0xf]
    %v203 = vld [vmem:[%s1 + $0x2dc] sm:$0xf]
    %v204 = vld [vmem:[%s1 + $0x2e0] sm:$0xf]
    %v205 = vld [vmem:[%s1 + $0x2e4] sm:$0xf]
    %v206 = vld [vmem:[%s1 + $0x2e8] sm:$0xf]
    %v207 = vld [vmem:[%s1 + $0x2ec] sm:$0xf]
    %v208 = vld [vmem:[%s1 + $0x2f0] sm:$0xf]
    %v209 = vld [vmem:[%s1 + $0x2f4] sm:$0xf]
    %v210 = vld [vmem:[%s1 + $0x2f8] sm:$0xf]
    %v211 = vld [vmem:[%s1 + $0x2fc] sm:$0xf]
    %v212 = vld [vmem:[%s1 + $0x300] sm:$0xf]
    %v213 = vld [vmem:[%s1 + $0x304] sm:$0xf]
    %v214 = vld [vmem:[%s1 + $0x308] sm:$0xf]
    %v215 = vld [vmem:[%s1 + $0x30c] sm:$0xf]
    %v216 = vld [vmem:[%s1 + $0x310] sm:$0xf]
    %v217 = vld [vmem:[%s1 + $0x314] sm:$0xf]
    %v218 = vld [vmem:[%s1 + $0x318] sm:$0xf]
    %v219 = vld [vmem:[%s1 + $0x31c] sm:$0xf]
    %v220 = vld [vmem:[%s1 + $0x320] sm:$0xf]
    %v221 = vld [vmem:[%s1 + $0x324] sm:$0xf]
    %v222 = vld [vmem:[%s1 + $0x328] sm:$0xf]
    %v223 = vld [vmem:[%s1 + $0x32c] sm:$0xf]
    %v224 = vld [vmem:[%s1 + $0x330] sm:$0xf]
    %v225 = vld [vmem:[%s1 + $0x334] sm:$0xf]
    %v226 = vld [vmem:[%s1 + $0x338] sm:$0xf]
    %v227 = vld [vmem:[%s1 + $0x33c] sm:$0xf]
    %v228 = vld [vmem:[%s1 + $0x340] sm:$0xf]
    %v229 = vld [vmem:[%s1 + $0x344] sm:$0xf]
    %v230 = vld [vmem:[%s1 + $0x348] sm:$0xf]
    %v231 = vld [vmem:[%s1 + $0x34c] sm:$0xf]
    %v232 = vld [vmem:[%s1 + $0x350] sm:$0xf]
    %v233 = vld [vmem:[%s1 + $0x354] sm:$0xf]
    %v234 = vld [vmem:[%s1 + $0x358] sm:$0xf]
    %v235 = vld [vmem:[%s1 + $0x35c] sm:$0xf]
    %v236 = vld [vmem:[%s1 + $0x360] sm:$0xf]
    %v237 = vld [vmem:[%s1 + $0x364] sm:$0xf]
    %v238 = vld [vmem:[%s1 + $0x368] sm:$0xf]
    %v239 = vld [vmem:[%s1 + $0x36c] sm:$0xf]
    %v240 = vld [vmem:[%s1 + $0x370] sm:$0xf]
    %v241 = vld [vmem:[%s1 + $0x374] sm:$0xf]
    %v242 = vld [vmem:[%s1 + $0x378] sm:$0xf]
    %v243 = vld [vmem:[%s1 + $0x37c] sm:$0xf]
    %v244 = vld [vmem:[%s1 + $0x380] sm:$0xf]
    %v245 = vld [vmem:[%s1 + $0x384] sm:$0xf]
    %v246 = vld [vmem:[%s1 + $0x388] sm:$0xf]
    %v247 = vld [vmem:[%s1 + $0x38c] sm:$0xf]
    %v248 = vld [vmem:[%s1 + $0x390] sm:$0xf]
    %v249 = vld [vmem:[%s1 + $0x394] sm:$0xf]
    %v250 = vld [vmem:[%s1 + $0x398] sm:$0xf]
    %v251 = vld [vmem:[%s1 + $0x39c] sm:$0xf]
    %v252 = vld [vmem:[%s1 + $0x3a0] sm:$0xf]
    %v253 = vld [vmem:[%s1 + $0x3a4] sm:$0xf]
    %v254 = vld [vmem:[%s1 + $0x3a8] sm:$0xf]
    %v255 = vld [vmem:[%s1 + $0x3ac] sm:$0xf]
    %v256 = vld [vmem:[%s1 + $0x3b0] sm:$0xf]
    %v257 = vld [vmem:[%s1 + $0x3b4] sm:$0xf]
    %v258 = vld [vmem:[%s1 + $0x3b8] sm:$0xf]
    %v259 = vld [vmem:[%s1 + $0x3bc] sm:$0xf]
    %v260 = vld [vmem:[%s1 + $0x3c0] sm:$0xf]
    %v261 = vld [vmem:[%s1 + $0x3c4] sm:$0xf]
    %v262 = vld [vmem:[%s1 + $0x3c8] sm:$0xf]
    %v263 = vld [vmem:[%s1 + $0x3cc] sm:$0xf]
    %v264 = vld [vmem:[%s1 + $0x3d0] sm:$0xf]
    %v265 = vld [vmem:[%s1 + $0x3d4] sm:$0xf]
    %v266 = vld [vmem:[%s1 + $0x3d8] sm:$0xf]
    %v267 = vld [vmem:[%s1 + $0x3dc] sm:$0xf]
    %v268 = vld [vmem:[%s1 + $0x3e0] sm:$0xf]
    %v269 = vld [vmem:[%s1 + $0x3e4] sm:$0xf]
    %v270 = vld [vmem:[%s1 + $0x3e8] sm:$0xf]
    %v271 = vld [vmem:[%s1 + $0x3ec] sm:$0xf]
    %v272 = vld [vmem:[%s1 + $0x3f0] sm:$0xf]
    %v273 = vld [vmem:[%s1 + $0x3f4] sm:$0xf]
    %v274 = vld [vmem:[%s1 + $0x3f8] sm:$0xf]
    %v275 = vld [vmem:[%s1 + $0x3fc] sm:$0xf]
    %v276 = vld [vmem:[%s1 + $0x400] sm:$0xf]
    %v277 = vld [vmem:[%s1 + $0x404] sm:$0xf]
    %v278 = vld [vmem:[%s1 + $0x408] sm:$0xf]
    %v279 = vld [vmem:[%s1 + $0x40c] sm:$0xf]
    %v280 = vld [vmem:[%s1 + $0x410] sm:$0xf]
    %v281 = vld [vmem:[%s1 + $0x414] sm:$0xf]
    %v282 = vld [vmem:[%s1 + $0x418] sm:$0xf]
    %v283 = vld [vmem:[%s1 + $0x41c] sm:$0xf]
    %v284 = vld [vmem:[%s1 + $0x420] sm:$0xf]
    %v285 = vld [vmem:[%s1 + $0x424] sm:$0xf]
    %v286 = vld [vmem:[%s1 + $0x428] sm:$0xf]
    %v287 = vld [vmem:[%s1 + $0x42c] sm:$0xf]
    %v288 = vld [vmem:[%s1 + $0x430] sm:$0xf]
    %v289 = vld [vmem:[%s1 + $0x434] sm:$0xf]
    %v290 = vld [vmem:[%s1 + $0x438] sm:$0xf]
    %v291 = vld [vmem:[%s1 + $0x43c] sm:$0xf]
    %v292 = vld [vmem:[%s1 + $0x440] sm:$0xf]
    %v293 = vld [vmem:[%s1 + $0x444] sm:$0xf]
    %v294 = vld [vmem:[%s1 + $0x448] sm:$0xf]
    %v295 = vld [vmem:[%s1 + $0x44c] sm:$0xf]
    %v296 = vld [vmem:[%s1 + $0x450] sm:$0xf]
    %v297 = vld [vmem:[%s1 + $0x454] sm:$0xf]
    %v298 = vld [vmem:[%s1 + $0x458] sm:$0xf]
    %v299 = vld [vmem:[%s1 + $0x45c] sm:$0xf]
    %v300 = vld [vmem:[%s1 + $0x460] sm:$0xf]
    %v301 = vld [vmem:[%s1 + $0x464] sm:$0xf]
    %v302 = vld [vmem:[%s1 + $0x468] sm:$0xf]
    %v303 = vld [vmem:[%s1 + $0x46c] sm:$0xf]
    %v304 = vld [vmem:[%s1 + $0x470] sm:$0xf]
    %v305 = vld [vmem:[%s1 + $0x474] sm:$0xf]
    %v306 = vld [vmem:[%s1 + $0x478] sm:$0xf]
    %v307 = vld [vmem:[%s1 + $0x47c] sm:$0xf]
    %v308 = vld [vmem:[%s1 + $0x480] sm:$0xf]
    %v309 = vld [vmem:[%s1 + $0x484] sm:$0xf]
    %v310 = vld [vmem:[%s1 + $0x488] sm:$0xf]
    %v311 = vld [vmem:[%s1 + $0x48c] sm:$0xf]
    %v312 = vld [vmem:[%s1 + $0x490] sm:$0xf]
    %v313 = vld [vmem:[%s1 + $0x494] sm:$0xf]
    %v314 = vld [vmem:[%s1 + $0x498] sm:$0xf]
    %v315 = vld [vmem:[%s1 + $0x49c] sm:$0xf]
    %v316 = vld [vmem:[%s1 + $0x4a0] sm:$0xf]
    %v317 = vld [vmem:[%s1 + $0x4a4] sm:$0xf]
    %v318 = vld [vmem:[%s1 + $0x4a8] sm:$0xf]
    %v319 = vld [vmem:[%s1 + $0x4ac] sm:$0xf]
    %v320 = vld [vmem:[%s1 + $0x4b0] sm:$0xf]
    %v321 = vld [vmem:[%s1 + $0x4b4] sm:$0xf]
    %v322 = vld [vmem:[%s1 + $0x4b8] sm:$0xf]
    %v323 = vld [vmem:[%s1 + $0x4bc] sm:$0xf]
    %v324 = vld [vmem:[%s1 + $0x4c0] sm:$0xf]
    %v325 = vld [vmem:[%s1 + $0x4c4] sm:$0xf]
    %v326 = vld [vmem:[%s1 + $0x4c8] sm:$0xf]
    %v327 = vld [vmem:[%s1 + $0x4cc] sm:$0xf]
    %v328 = vld [vmem:[%s1 + $0x4d0] sm:$0xf]
    %v329 = vld [vmem:[%s1 + $0x4d4] sm:$0xf]
    %v330 = vld [vmem:[%s1 + $0x4d8] sm:$0xf]
    %v331 = vld [vmem:[%s1 + $0x4dc] sm:$0xf]
    %v332 = vld [vmem:[%s1 + $0x4e0] sm:$0xf]
    %v333 = vld [vmem:[%s1 + $0x4e4] sm:$0xf]
    %v334 = vld [vmem:[%s1 + $0x4e8] sm:$0xf]
    %v335 = vld [vmem:[%s1 + $0x4ec] sm:$0xf]
    %v336 = vld [vmem:[%s1 + $0x4f0] sm:$0xf]
    %v337 = vld [vmem:[%s1 + $0x4f4] sm:$0xf]
    %v338 = vld [vmem:[%s1 + $0x4f8] sm:$0xf]
    %v339 = vld [vmem:[%s1 + $0x4fc] sm:$0xf]
    %v340 = vld [vmem:[%s1 + $0x500] sm:$0xf]
    %v341 = vld [vmem:[%s1 + $0x504] sm:$0xf]
    %v342 = vld [vmem:[%s1 + $0x508] sm:$0xf]
    %v343 = vld [vmem:[%s1 + $0x50c] sm:$0xf]
    %v344 = vld [vmem:[%s1 + $0x510] sm:$0xf]
    %v345 = vld [vmem:[%s1 + $0x514] sm:$0xf]
    %v346 = vld [vmem:[%s1 + $0x518] sm:$0xf]
    %v347 = vld [vmem:[%s1 + $0x51c] sm:$0xf]
    %v348 = vld [vmem:[%s1 + $0x520] sm:$0xf]
    %v349 = vld [vmem:[%s1 + $0x524] sm:$0xf]
    %v350 = vld [vmem:[%s1 + $0x528] sm:$0xf]
    %v351 = vld [vmem:[%s1 + $0x52c] sm:$0xf]
    %v352 = vld [vmem:[%s1 + $0x530] sm:$0xf]
    %v353 = vld [vmem:[%s1 + $0x534] sm:$0xf]
    %v354 = vld [vmem:[%s1 + $0x538] sm:$0xf]
    %v355 = vld [vmem:[%s1 + $0x53c] sm:$0xf]
    %v356 = vld [vmem:[%s1 + $0x540] sm:$0xf]
    %v357 = vld [vmem:[%s1 + $0x544] sm:$0xf]
    %v358 = vld [vmem:[%s1 + $0x548] sm:$0xf]
    %v359 = vld [vmem:[%s1 + $0x54c] sm:$0xf]
    %v360 = vld [vmem:[%s1 + $0x550] sm:$0xf]
    %v361 = vld [vmem:[%s1 + $0x554] sm:$0xf]
    %v362 = vld [vmem:[%s1 + $0x558] sm:$0xf]
    %v363 = vld [vmem:[%s1 + $0x55c] sm:$0xf]
    %v364 = vld [vmem:[%s1 + $0x560] sm:$0xf]
    %v365 = vld [vmem:[%s1 + $0x564] sm:$0xf]
    %v366 = vld [vmem:[%s1 + $0x568] sm:$0xf]
    %v367 = vld [vmem:[%s1 + $0x56c] sm:$0xf]
    %v368 = vld [vmem:[%s1 + $0x570] sm:$0xf]
    %v369 = vld [vmem:[%s1 + $0x574] sm:$0xf]
    %v370 = vld [vmem:[%s1 + $0x578] sm:$0xf]
    %v371 = vld [vmem:[%s1 + $0x57c] sm:$0xf]
    %v372 = vld [vmem:[%s1 + $0x580] sm:$0xf]
    %v373 = vld [vmem:[%s1 + $0x584] sm:$0xf]
    %v374 = vld [vmem:[%s1 + $0x588] sm:$0xf]
    %v375 = vld [vmem:[%s1 + $0x58c] sm:$0xf]
    %v376 = vld [vmem:[%s1 + $0x590] sm:$0xf]
    %v377 = vld [vmem:[%s1 + $0x594] sm:$0xf]
    %v378 = vld [vmem:[%s1 + $0x598] sm:$0xf]
    %v379 = vld [vmem:[%s1 + $0x59c] sm:$0xf]
    %v380 = vld [vmem:[%s1 + $0x5a0] sm:$0xf]
    %v381 = vld [vmem:[%s1 + $0x5a4] sm:$0xf]
    %v382 = vld [vmem:[%s1 + $0x5a8] sm:$0xf]
    %v383 = vld [vmem:[%s1 + $0x5ac] sm:$0xf]
    %v384 = vld [vmem:[%s1 + $0x5b0] sm:$0xf]
    %v385 = vld [vmem:[%s1 + $0x5b4] sm:$0xf]
    %v386 = vld [vmem:[%s1 + $0x5b8] sm:$0xf]
    %v387 = vld [vmem:[%s1 + $0x5bc] sm:$0xf]
    %v388 = vld [vmem:[%s1 + $0x5c0] sm:$0xf]
    %v389 = vld [vmem:[%s1 + $0x5c4] sm:$0xf]
    %v390 = vld [vmem:[%s1 + $0x5c8] sm:$0xf]
    %v391 = vld [vmem:[%s1 + $0x5cc] sm:$0xf]
    %v392 = vld [vmem:[%s1 + $0x5d0] sm:$0xf]
    %v393 = vld [vmem:[%s1 + $0x5d4] sm:$0xf]
    %v394 = vld [vmem:[%s1 + $0x5d8] sm:$0xf]
    %v395 = vld [vmem:[%s1 + $0x5dc] sm:$0xf]
    %v396 = vld [vmem:[%s1 + $0x5e0] sm:$0xf]
    %v397 = vld [vmem:[%s1 + $0x5e4] sm:$0xf]
    %v398 = vld [vmem:[%s1 + $0x5e8] sm:$0xf]
    %v399 = vld [vmem:[%s1 + $0x5ec] sm:$0xf]
    %v400 = vld [vmem:[%s1 + $0x5f0] sm:$0xf]
    %v401 = vld [vmem:[%s1 + $0x5f4] sm:$0xf]
    %v402 = vld [vmem:[%s1 + $0x5f8] sm:$0xf]
    %v403 = vld [vmem:[%s1 + $0x5fc] sm:$0xf]
    %v404 = vld [vmem:[%s1 + $0x600] sm:$0xf]
    %v405 = vld [vmem:[%s1 + $0x604] sm:$0xf]
    %v406 = vld [vmem:[%s1 + $0x608] sm:$0xf]
    %v407 = vld [vmem:[%s1 + $0x60c] sm:$0xf]
    %v408 = vld [vmem:[%s1 + $0x610] sm:$0xf]
    %v409 = vld [vmem:[%s1 + $0x614] sm:$0xf]
    %v410 = vld [vmem:[%s1 + $0x618] sm:$0xf]
    %v411 = vld [vmem:[%s1 + $0x61c] sm:$0xf]
    %v412 = vld [vmem:[%s1 + $0x620] sm:$0xf]
    %v413 = vld [vmem:[%s1 + $0x624] sm:$0xf]
    %v414 = vld [vmem:[%s1 + $0x628] sm:$0xf]
    %v415 = vld [vmem:[%s1 + $0x62c] sm:$0xf]
    %v416 = vld [vmem:[%s1 + $0x630] sm:$0xf]
    %v417 = vld [vmem:[%s1 + $0x634] sm:$0xf]
    %v418 = vld [vmem:[%s1 + $0x638] sm:$0xf]
    %v419 = vld [vmem:[%s1 + $0x63c] sm:$0xf]
    %v420 = vld [vmem:[%s1 + $0x640] sm:$0xf]
    %v421 = vld [vmem:[%s1 + $0x644] sm:$0xf]
    %v422 = vld [vmem:[%s1 + $0x648] sm:$0xf]
    %v423 = vld [vmem:[%s1 + $0x64c] sm:$0xf]
    %v424 = vld [vmem:[%s1 + $0x650] sm:$0xf]
    %v425 = vld [vmem:[%s1 + $0x654] sm:$0xf]
    %v426 = vld [vmem:[%s1 + $0x658] sm:$0xf]
    %v427 = vld [vmem:[%s1 + $0x65c] sm:$0xf]
    %v428 = vld [vmem:[%s1 + $0x660] sm:$0xf]
    %v429 = vld [vmem:[%s1 + $0x664] sm:$0xf]
    %v430 = vld [vmem:[%s1 + $0x668] sm:$0xf]
    %v431 = vld [vmem:[%s1 + $0x66c] sm:$0xf]
    %v432 = vld [vmem:[%s1 + $0x670] sm:$0xf]
    %v433 = vld [vmem:[%s1 + $0x674] sm:$0xf]
    %v434 = vld [vmem:[%s1 + $0x678] sm:$0xf]
    %v435 = vld [vmem:[%s1 + $0x67c] sm:$0xf]
    %v436 = vld [vmem:[%s1 + $0x680] sm:$0xf]
    %v437 = vld [vmem:[%s1 + $0x684] sm:$0xf]
    %v438 = vld [vmem:[%s1 + $0x688] sm:$0xf]
    %v439 = vld [vmem:[%s1 + $0x68c] sm:$0xf]
    %v440 = vld [vmem:[%s1 + $0x690] sm:$0xf]
    %v441 = vld [vmem:[%s1 + $0x694] sm:$0xf]
    %v442 = vld [vmem:[%s1 + $0x698] sm:$0xf]
    %v443 = vld [vmem:[%s1 + $0x69c] sm:$0xf]
    %v444 = vld [vmem:[%s1 + $0x6a0] sm:$0xf]
    %v445 = vld [vmem:[%s1 + $0x6a4] sm:$0xf]
    %v446 = vld [vmem:[%s1 + $0x6a8] sm:$0xf]
    %v447 = vld [vmem:[%s1 + $0x6ac] sm:$0xf]
    %v448 = vld [vmem:[%s1 + $0x6b0] sm:$0xf]
    %v449 = vld [vmem:[%s1 + $0x6b4] sm:$0xf]
    %v450 = vld [vmem:[%s1 + $0x6b8] sm:$0xf]
    %v451 = vld [vmem:[%s1 + $0x6bc] sm:$0xf]
    %v452 = vld [vmem:[%s1 + $0x6c0] sm:$0xf]
    %v453 = vld [vmem:[%s1 + $0x6c4] sm:$0xf]
    %v454 = vld [vmem:[%s1 + $0x6c8] sm:$0xf]
    %v455 = vld [vmem:[%s1 + $0x6cc] sm:$0xf]
    %v456 = vld [vmem:[%s1 + $0x6d0] sm:$0xf]
    %v457 = vld [vmem:[%s1 + $0x6d4] sm:$0xf]
    %v458 = vld [vmem:[%s1 + $0x6d8] sm:$0xf]
    %v459 = vld [vmem:[%s1 + $0x6dc] sm:$0xf]
    %v460 = vld [vmem:[%s1 + $0x6e0] sm:$0xf]
    %v461 = vld [vmem:[%s1 + $0x6e4] sm:$0xf]
    %v462 = vld [vmem:[%s1 + $0x6e8] sm:$0xf]
    %v463 = vld [vmem:[%s1 + $0x6ec] sm:$0xf]
    %v464 = vld [vmem:[%s1 + $0x6f0] sm:$0xf]
    %v465 = vld [vmem:[%s1 + $0x6f4] sm:$0xf]
    %v466 = vld [vmem:[%s1 + $0x6f8] sm:$0xf]
    %v467 = vld [vmem:[%s1 + $0x6fc] sm:$0xf]
    %v468 = vld [vmem:[%s1 + $0x700] sm:$0xf]
    %v469 = vld [vmem:[%s1 + $0x704] sm:$0xf]
    %v470 = vld [vmem:[%s1 + $0x708] sm:$0xf]
    %v471 = vld [vmem:[%s1 + $0x70c] sm:$0xf]
    %v472 = vld [vmem:[%s1 + $0x710] sm:$0xf]
    %v473 = vld [vmem:[%s1 + $0x714] sm:$0xf]
    %v474 = vld [vmem:[%s1 + $0x718] sm:$0xf]
    %v475 = vld [vmem:[%s1 + $0x71c] sm:$0xf]
    %v476 = vld [vmem:[%s1 + $0x720] sm:$0xf]
    %v477 = vld [vmem:[%s1 + $0x724] sm:$0xf]
    %v478 = vld [vmem:[%s1 + $0x728] sm:$0xf]
    %v479 = vld [vmem:[%s1 + $0x72c] sm:$0xf]
    %v480 = vld [vmem:[%s1 + $0x730] sm:$0xf]
    %v481 = vld [vmem:[%s1 + $0x734] sm:$0xf]
    %v482 = vld [vmem:[%s1 + $0x738] sm:$0xf]
    %v483 = vld [vmem:[%s1 + $0x73c] sm:$0xf]
    %v484 = vld [vmem:[%s1 + $0x740] sm:$0xf]
    %v485 = vld [vmem:[%s1 + $0x744] sm:$0xf]
    %v486 = vld [vmem:[%s1 + $0x748] sm:$0xf]
    %v487 = vld [vmem:[%s1 + $0x74c] sm:$0xf]
    %v488 = vld [vmem:[%s1 + $0x750] sm:$0xf]
    %v489 = vld [vmem:[%s1 + $0x754] sm:$0xf]
    %v490 = vld [vmem:[%s1 + $0x758] sm:$0xf]
    %v491 = vld [vmem:[%s1 + $0x75c] sm:$0xf]
    %v492 = vld [vmem:[%s1 + $0x760] sm:$0xf]
    %v493 = vld [vmem:[%s1 + $0x764] sm:$0xf]
    %v494 = vld [vmem:[%s1 + $0x768] sm:$0xf]
    %v495 = vld [vmem:[%s1 + $0x76c] sm:$0xf]
    %v496 = vld [vmem:[%s1 + $0x770] sm:$0xf]
    %v497 = vld [vmem:[%s1 + $0x774] sm:$0xf]
    %v498 = vld [vmem:[%s1 + $0x778] sm:$0xf]
    %v499 = vld [vmem:[%s1 + $0x77c] sm:$0xf]
    %v500 = vld [vmem:[%s1 + $0x780] sm:$0xf]
    %v501 = vld [vmem:[%s1 + $0x784] sm:$0xf]
    %v502 = vld [vmem:[%s1 + $0x788] sm:$0xf]
    %v503 = vld [vmem:[%s1 + $0x78c] sm:$0xf]
    %v504 = vld [vmem:[%s1 + $0x790] sm:$0xf]
    %v505 = vld [vmem:[%s1 + $0x794] sm:$0xf]
    %v506 = vld [vmem:[%s1 + $0x798] sm:$0xf]
    %v507 = vld [vmem:[%s1 + $0x79c] sm:$0xf]
    %v508 = vld [vmem:[%s1 + $0x7a0] sm:$0xf]
    %v509 = vld [vmem:[%s1 + $0x7a4] sm:$0xf]
    %v510 = vld [vmem:[%s1 + $0x7a8] sm:$0xf]
    %v511 = vld [vmem:[%s1 + $0x7ac] sm:$0xf]
    %v512 = vld [vmem:[%s1 + $0x7b0] sm:$0xf]
    %v513 = vld [vmem:[%s1 + $0x7b4] sm:$0xf]
    %v514 = vld [vmem:[%s1 + $0x7b8] sm:$0xf]
    %v515 = vld [vmem:[%s1 + $0x7bc] sm:$0xf]
    %v516 = vld [vmem:[%s1 + $0x7c0] sm:$0xf]
    %v517 = vld [vmem:[%s1 + $0x7c4] sm:$0xf]
    %v518 = vld [vmem:[%s1 + $0x7c8] sm:$0xf]
    %v519 = vld [vmem:[%s1 + $0x7cc] sm:$0xf]
    %v520 = vld [vmem:[%s1 + $0x7d0] sm:$0xf]
    %v521 = vld [vmem:[%s1 + $0x7d4] sm:$0xf]
    %v522 = vld [vmem:[%s1 + $0x7d8] sm:$0xf]
    %v523 = vld [vmem:[%s1 + $0x7dc] sm:$0xf]
    %v524 = vld [vmem:[%s1 + $0x7e0] sm:$0xf]
    %v525 = vld [vmem:[%s1 + $0x7e4] sm:$0xf]
    %v526 = vld [vmem:[%s1 + $0x7e8] sm:$0xf]
    %v527 = vld [vmem:[%s1 + $0x7ec] sm:$0xf]
    %v528 = vld [vmem:[%s1 + $0x7f0] sm:$0xf]
    %v529 = vld [vmem:[%s1 + $0x7f4] sm:$0xf]
    %v530 = vld [vmem:[%s1 + $0x7f8] sm:$0xf]
    %v531 = vld [vmem:[%s1 + $0x7fc] sm:$0xf]
    %v532 = vld [vmem:[%s1 + $0x800] sm:$0xf]
    %v533 = vld [vmem:[%s1 + $0x804] sm:$0xf]
    %v534 = vld [vmem:[%s1 + $0x808] sm:$0xf]
    %v535 = vld [vmem:[%s1 + $0x80c] sm:$0xf]
    %v536 = vld [vmem:[%s1 + $0x810] sm:$0xf]
    %v537 = vld [vmem:[%s1 + $0x814] sm:$0xf]
    %v538 = vld [vmem:[%s1 + $0x818] sm:$0xf]
    %v539 = vld [vmem:[%s1 + $0x81c] sm:$0xf]
    %v540 = vld [vmem:[%s1 + $0x820] sm:$0xf]
    %v541 = vld [vmem:[%s1 + $0x824] sm:$0xf]
    %v542 = vld [vmem:[%s1 + $0x828] sm:$0xf]
    %v543 = vld [vmem:[%s1 + $0x82c] sm:$0xf]
    %v544 = vld [vmem:[%s1 + $0x830] sm:$0xf]
    %v545 = vld [vmem:[%s1 + $0x834] sm:$0xf]
    %v546 = vld [vmem:[%s1 + $0x838] sm:$0xf]
    %v547 = vld [vmem:[%s1 + $0x83c] sm:$0xf]
    %v548 = vld [vmem:[%s1 + $0x840] sm:$0xf]
    %v549 = vld [vmem:[%s1 + $0x844] sm:$0xf]
    %v550 = vld [vmem:[%s1 + $0x848] sm:$0xf]
    %v551 = vld [vmem:[%s1 + $0x84c] sm:$0xf]
    %v552 = vld [vmem:[%s1 + $0x850] sm:$0xf]
    %v553 = vld [vmem:[%s1 + $0x854] sm:$0xf]
    %v554 = vld [vmem:[%s1 + $0x858] sm:$0xf]
    %v555 = vld [vmem:[%s1 + $0x85c] sm:$0xf]
    %v556 = vld [vmem:[%s1 + $0x860] sm:$0xf]
    %v557 = vld [vmem:[%s1 + $0x864] sm:$0xf]
    %v558 = vld [vmem:[%s1 + $0x868] sm:$0xf]
    %v559 = vld [vmem:[%s1 + $0x86c] sm:$0xf]
    %v560 = vld [vmem:[%s1 + $0x870] sm:$0xf]
    %v561 = vld [vmem:[%s1 + $0x874] sm:$0xf]
    %v562 = vld [vmem:[%s1 + $0x878] sm:$0xf]
    %v563 = vld [vmem:[%s1 + $0x87c] sm:$0xf]
    %v564 = vld [vmem:[%s1 + $0x880] sm:$0xf]
    %v565 = vld [vmem:[%s1 + $0x884] sm:$0xf]
    %v566 = vld [vmem:[%s1 + $0x888] sm:$0xf]
    %v567 = vld [vmem:[%s1 + $0x88c] sm:$0xf]
    %v568 = vld [vmem:[%s1 + $0x890] sm:$0xf]
    %v569 = vld [vmem:[%s1 + $0x894] sm:$0xf]
    %v570 = vld [vmem:[%s1 + $0x898] sm:$0xf]
    %v571 = vld [vmem:[%s1 + $0x89c] sm:$0xf]
    %v572 = vld [vmem:[%s1 + $0x8a0] sm:$0xf]
    %v573 = vld [vmem:[%s1 + $0x8a4] sm:$0xf]
    %v574 = vld [vmem:[%s1 + $0x8a8] sm:$0xf]
    %v575 = vld [vmem:[%s1 + $0x8ac] sm:$0xf]
    %v576 = vld [vmem:[%s1 + $0x8b0] sm:$0xf]
    %v577 = vld [vmem:[%s1 + $0x8b4] sm:$0xf]
    %v578 = vld [vmem:[%s1 + $0x8b8] sm:$0xf]
    %v579 = vld [vmem:[%s1 + $0x8bc] sm:$0xf]
    %v580 = vld [vmem:[%s1 + $0x8c0] sm:$0xf]
    %v581 = vld [vmem:[%s1 + $0x8c4] sm:$0xf]
    %v582 = vld [vmem:[%s1 + $0x8c8] sm:$0xf]
    %v583 = vld [vmem:[%s1 + $0x8cc] sm:$0xf]
    %v584 = vld [vmem:[%s1 + $0x8d0] sm:$0xf]
    %v585 = vld [vmem:[%s1 + $0x8d4] sm:$0xf]
    %v586 = vld [vmem:[%s1 + $0x8d8] sm:$0xf]
    %v587 = vld [vmem:[%s1 + $0x8dc] sm:$0xf]
    %v588 = vld [vmem:[%s1 + $0x8e0] sm:$0xf]
    %v589 = vld [vmem:[%s1 + $0x8e4] sm:$0xf]
    %v590 = vld [vmem:[%s1 + $0x8e8] sm:$0xf]
    %v591 = vld [vmem:[%s1 + $0x8ec] sm:$0xf]
    %v592 = vld [vmem:[%s1 + $0x8f0] sm:$0xf]
    %v593 = vld [vmem:[%s1 + $0x8f4] sm:$0xf]
    %v594 = vld [vmem:[%s1 + $0x8f8] sm:$0xf]
    %v595 = vld [vmem:[%s1 + $0x8fc] sm:$0xf]
    %v596 = vld [vmem:[%s2] sm:$0x1]
    %v598 = vperm.slane %v596, 0
    %601 = vst [vmem:[#allocation1] ss:$9 sm:$0xff] %v15
    %v602 = vld [vmem:[#allocation1] sm:$0xff]
    %v603 = vld [vmem:[#allocation1 + $0x9] sm:$0xff]
    %v604 = vld [vmem:[#allocation1 + $0x12] sm:$0xff]
    %v605 = vld [vmem:[#allocation1 + $0x1b] sm:$0xff]
    %v606 = vld [vmem:[#allocation1 + $0x24] sm:$0xff]
    %v607 = vld [vmem:[#allocation1 + $0x2d] sm:$0xff]
    %v608 = vld [vmem:[#allocation1 + $0x36] sm:$0xff]
    %v609 = vld [vmem:[#allocation1 + $0x3f] sm:$0xff]
    %611 = vst [vmem:[#allocation1] ss:$9 sm:$0xff] %v16
    %v612 = vld [vmem:[#allocation1] sm:$0xff]
    %v613 = vld [vmem:[#allocation1 + $0x9] sm:$0xff]
    %v614 = vld [vmem:[#allocation1 + $0x12] sm:$0xff]
    %v615 = vld [vmem:[#allocation1 + $0x1b] sm:$0xff]
    %v616 = vld [vmem:[#allocation1 + $0x24] sm:$0xff]
    %v617 = vld [vmem:[#allocation1 + $0x2d] sm:$0xff]
    %v618 = vld [vmem:[#allocation1 + $0x36] sm:$0xff]
    %v619 = vld [vmem:[#allocation1 + $0x3f] sm:$0xff]
    %621 = vst [vmem:[#allocation1] ss:$9 sm:$0xff] %v17
    %v622 = vld [vmem:[#allocation1] sm:$0xff]
    %v623 = vld [vmem:[#allocation1 + $0x9] sm:$0xff]
    %v624 = vld [vmem:[#allocation1 + $0x12] sm:$0xff]
    %v625 = vld [vmem:[#allocation1 + $0x1b] sm:$0xff]
    %v626 = vld [vmem:[#allocation1 + $0x24] sm:$0xff]
    %v627 = vld [vmem:[#allocation1 + $0x2d] sm:$0xff]
    %v628 = vld [vmem:[#allocation1 + $0x36] sm:$0xff]
    %v629 = vld [vmem:[#allocation1 + $0x3f] sm:$0xff]
    %631 = vst [vmem:[#allocation1] ss:$9 sm:$0xff] %v18
    %v632 = vld [vmem:[#allocation1] sm:$0xff]
    %v633 = vld [vmem:[#allocation1 + $0x9] sm:$0xff]
    %v634 = vld [vmem:[#allocation1 + $0x12] sm:$0xff]
    %v635 = vld [vmem:[#allocation1 + $0x1b] sm:$0xff]
    %v636 = vld [vmem:[#allocation1 + $0x24] sm:$0xff]
    %v637 = vld [vmem:[#allocation1 + $0x2d] sm:$0xff]
    %v638 = vld [vmem:[#allocation1 + $0x36] sm:$0xff]
    %v639 = vld [vmem:[#allocation1 + $0x3f] sm:$0xff]
    %641 = vst [vmem:[#allocation1] ss:$9 sm:$0xff] %v19
    %v642 = vld [vmem:[#allocation1] sm:$0xff]
    %v643 = vld [vmem:[#allocation1 + $0x9] sm:$0xff]
    %v644 = vld [vmem:[#allocation1 + $0x12] sm:$0xff]
    %v645 = vld [vmem:[#allocation1 + $0x1b] sm:$0xff]
    %v1258 = vunpack.c.l.b16 %v20
    %v1259 = vunpack.c.l.b16 %v21
    %v1260 = vunpack.c.l.b16 %v22
    %v1261 = vunpack.c.l.b16 %v23
    %v1262 = vunpack.c.l.b16 %v24
    %v1263 = vunpack.c.l.b16 %v25
    %v1264 = vunpack.c.l.b16 %v26
    %v1265 = vunpack.c.l.b16 %v27
    %v1266 = vunpack.c.l.b16 %v28
    %v1267 = vunpack.c.l.b16 %v29
    %v1268 = vunpack.c.l.b16 %v30
    %v1269 = vunpack.c.l.b16 %v31
    %v1270 = vunpack.c.l.b16 %v32
    %v1271 = vunpack.c.l.b16 %v33
    %v1272 = vunpack.c.l.b16 %v34
    %v1273 = vunpack.c.l.b16 %v35
    %v1274 = vunpack.c.l.b16 %v36
    %v1275 = vunpack.c.l.b16 %v37
    %v1276 = vunpack.c.l.b16 %v38
    %v1277 = vunpack.c.l.b16 %v39
    %v1278 = vunpack.c.l.b16 %v40
    %v1279 = vunpack.c.l.b16 %v41
    %v1280 = vunpack.c.l.b16 %v42
    %v1281 = vunpack.c.l.b16 %v43
    %v1282 = vunpack.c.l.b16 %v44
    %v1283 = vunpack.c.l.b16 %v45
    %v1284 = vunpack.c.l.b16 %v46
    %v1285 = vunpack.c.l.b16 %v47
    %v1286 = vunpack.c.l.b16 %v48
    %v1287 = vunpack.c.l.b16 %v49
    %v1288 = vunpack.c.l.b16 %v50
    %v1289 = vunpack.c.l.b16 %v51
    %v1290 = vunpack.c.l.b16 %v52
    %v1291 = vunpack.c.l.b16 %v53
    %v1292 = vunpack.c.l.b16 %v54
    %v1293 = vunpack.c.l.b16 %v55
    %v1294 = vunpack.c.l.b16 %v56
    %v1295 = vunpack.c.l.b16 %v57
    %v1296 = vunpack.c.l.b16 %v58
    %v1297 = vunpack.c.l.b16 %v59
    %v1298 = vunpack.c.l.b16 %v60
    %v1299 = vunpack.c.l.b16 %v61
    %v1300 = vunpack.c.l.b16 %v62
    %v1301 = vunpack.c.l.b16 %v63
    %v1302 = vunpack.c.l.b16 %v64
    %v1303 = vunpack.c.l.b16 %v65
    %v1304 = vunpack.c.l.b16 %v66
    %v1305 = vunpack.c.l.b16 %v67
    %v1306 = vunpack.c.l.b16 %v68
    %v1307 = vunpack.c.l.b16 %v69
    %v1308 = vunpack.c.l.b16 %v70
    %v1309 = vunpack.c.l.b16 %v71
    %v1310 = vunpack.c.l.b16 %v72
    %v1311 = vunpack.c.l.b16 %v73
    %v1312 = vunpack.c.l.b16 %v74
    %v1313 = vunpack.c.l.b16 %v75
    %v1314 = vunpack.c.l.b16 %v76
    %v1315 = vunpack.c.l.b16 %v77
    %v1316 = vunpack.c.l.b16 %v78
    %v1317 = vunpack.c.l.b16 %v79
    %v1318 = vunpack.c.l.b16 %v80
    %v1319 = vunpack.c.l.b16 %v81
    %v1320 = vunpack.c.l.b16 %v82
    %v1321 = vunpack.c.l.b16 %v83
    %v1322 = vunpack.c.l.b16 %v84
    %v1323 = vunpack.c.l.b16 %v85
    %v1324 = vunpack.c.l.b16 %v86
    %v1325 = vunpack.c.l.b16 %v87
    %v1326 = vunpack.c.l.b16 %v88
    %v1327 = vunpack.c.l.b16 %v89
    %v1328 = vunpack.c.l.b16 %v90
    %v1329 = vunpack.c.l.b16 %v91
    %v1330 = vunpack.c.l.b16 %v92
    %v1331 = vunpack.c.l.b16 %v93
    %v1332 = vunpack.c.l.b16 %v94
    %v1333 = vunpack.c.l.b16 %v95
    %v1334 = vunpack.c.l.b16 %v96
    %v1335 = vunpack.c.l.b16 %v97
    %v1336 = vunpack.c.l.b16 %v98
    %v1337 = vunpack.c.l.b16 %v99
    %v1338 = vunpack.c.l.b16 %v100
    %v1339 = vunpack.c.l.b16 %v101
    %v1340 = vunpack.c.l.b16 %v102
    %v1341 = vunpack.c.l.b16 %v103
    %v1342 = vunpack.c.l.b16 %v104
    %v1343 = vunpack.c.l.b16 %v105
    %v1344 = vunpack.c.l.b16 %v106
    %v1345 = vunpack.c.l.b16 %v107
    %v1346 = vunpack.c.l.b16 %v108
    %v1347 = vunpack.c.l.b16 %v109
    %v1348 = vunpack.c.l.b16 %v110
    %v1349 = vunpack.c.l.b16 %v111
    %v1350 = vunpack.c.l.b16 %v112
    %v1351 = vunpack.c.l.b16 %v113
    %v1352 = vunpack.c.l.b16 %v114
    %v1353 = vunpack.c.l.b16 %v115
    %v1354 = vunpack.c.l.b16 %v116
    %v1355 = vunpack.c.l.b16 %v117
    %v1356 = vunpack.c.l.b16 %v118
    %v1357 = vunpack.c.l.b16 %v119
    %v1358 = vunpack.c.l.b16 %v120
    %v1359 = vunpack.c.l.b16 %v121
    %v1360 = vunpack.c.l.b16 %v122
    %v1361 = vunpack.c.l.b16 %v123
    %v1362 = vunpack.c.l.b16 %v124
    %v1363 = vunpack.c.l.b16 %v125
    %v1364 = vunpack.c.l.b16 %v126
    %v1365 = vunpack.c.l.b16 %v127
    %v1366 = vunpack.c.l.b16 %v128
    %v1367 = vunpack.c.l.b16 %v129
    %v1368 = vunpack.c.l.b16 %v130
    %v1369 = vunpack.c.l.b16 %v131
    %v1370 = vunpack.c.l.b16 %v132
    %v1371 = vunpack.c.l.b16 %v133
    %v1372 = vunpack.c.l.b16 %v134
    %v1373 = vunpack.c.l.b16 %v135
    %v1374 = vunpack.c.l.b16 %v136
    %v1375 = vunpack.c.l.b16 %v137
    %v1376 = vunpack.c.l.b16 %v138
    %v1377 = vunpack.c.l.b16 %v139
    %v1378 = vunpack.c.l.b16 %v140
    %v1379 = vunpack.c.l.b16 %v141
    %v1380 = vunpack.c.l.b16 %v142
    %v1381 = vunpack.c.l.b16 %v143
    %v1382 = vunpack.c.l.b16 %v144
    %v1383 = vunpack.c.l.b16 %v145
    %v1384 = vunpack.c.l.b16 %v146
    %v1385 = vunpack.c.l.b16 %v147
    %v1386 = vunpack.c.l.b16 %v148
    %v1387 = vunpack.c.l.b16 %v149
    %v1388 = vunpack.c.l.b16 %v150
    %v1389 = vunpack.c.l.b16 %v151
    %v1390 = vunpack.c.l.b16 %v152
    %v1391 = vunpack.c.l.b16 %v153
    %v1392 = vunpack.c.l.b16 %v154
    %v1393 = vunpack.c.l.b16 %v155
    %v1394 = vunpack.c.l.b16 %v156
    %v1395 = vunpack.c.l.b16 %v157
    %v1396 = vunpack.c.l.b16 %v158
    %v1397 = vunpack.c.l.b16 %v159
    %v1398 = vunpack.c.l.b16 %v160
    %v1399 = vunpack.c.l.b16 %v161
    %v1400 = vunpack.c.l.b16 %v162
    %v1401 = vunpack.c.l.b16 %v163
    %v1402 = vunpack.c.l.b16 %v164
    %v1403 = vunpack.c.l.b16 %v165
    %v1404 = vunpack.c.l.b16 %v166
    %v1405 = vunpack.c.l.b16 %v167
    %v1406 = vunpack.c.l.b16 %v168
    %v1407 = vunpack.c.l.b16 %v169
    %v1408 = vunpack.c.l.b16 %v170
    %v1409 = vunpack.c.l.b16 %v171
    %v1410 = vunpack.c.l.b16 %v172
    %v1411 = vunpack.c.l.b16 %v173
    %v1412 = vunpack.c.l.b16 %v174
    %v1413 = vunpack.c.l.b16 %v175
    %v1414 = vunpack.c.l.b16 %v176
    %v1415 = vunpack.c.l.b16 %v177
    %v1416 = vunpack.c.l.b16 %v178
    %v1417 = vunpack.c.l.b16 %v179
    %v1418 = vunpack.c.l.b16 %v180
    %v1419 = vunpack.c.l.b16 %v181
    %v1420 = vunpack.c.l.b16 %v182
    %v1421 = vunpack.c.l.b16 %v183
    %v1422 = vunpack.c.l.b16 %v184
    %v1423 = vunpack.c.l.b16 %v185
    %v1424 = vunpack.c.l.b16 %v186
    %v1425 = vunpack.c.l.b16 %v187
    %v1426 = vunpack.c.l.b16 %v188
    %v1427 = vunpack.c.l.b16 %v189
    %v1428 = vunpack.c.l.b16 %v190
    %v1429 = vunpack.c.l.b16 %v191
    %v1430 = vunpack.c.l.b16 %v192
    %v1431 = vunpack.c.l.b16 %v193
    %v1432 = vunpack.c.l.b16 %v194
    %v1433 = vunpack.c.l.b16 %v195
    %v1434 = vunpack.c.l.b16 %v196
    %v1435 = vunpack.c.l.b16 %v197
    %v1436 = vunpack.c.l.b16 %v198
    %v1437 = vunpack.c.l.b16 %v199
    %v1438 = vunpack.c.l.b16 %v200
    %v1439 = vunpack.c.l.b16 %v201
    %v1440 = vunpack.c.l.b16 %v202
    %v1441 = vunpack.c.l.b16 %v203
    %v1442 = vunpack.c.l.b16 %v204
    %v1443 = vunpack.c.l.b16 %v205
    %v1444 = vunpack.c.l.b16 %v206
    %v1445 = vunpack.c.l.b16 %v207
    %v1446 = vunpack.c.l.b16 %v208
    %v1447 = vunpack.c.l.b16 %v209
    %v1448 = vunpack.c.l.b16 %v210
    %v1449 = vunpack.c.l.b16 %v211
    %v1450 = vunpack.c.l.b16 %v212
    %v1451 = vunpack.c.l.b16 %v213
    %v1452 = vunpack.c.l.b16 %v214
    %v1453 = vunpack.c.l.b16 %v215
    %v1454 = vunpack.c.l.b16 %v216
    %v1455 = vunpack.c.l.b16 %v217
    %v1456 = vunpack.c.l.b16 %v218
    %v1457 = vunpack.c.l.b16 %v219
    %v1458 = vunpack.c.l.b16 %v220
    %v1459 = vunpack.c.l.b16 %v221
    %v1460 = vunpack.c.l.b16 %v222
    %v1461 = vunpack.c.l.b16 %v223
    %v1462 = vunpack.c.l.b16 %v224
    %v1463 = vunpack.c.l.b16 %v225
    %v1464 = vunpack.c.l.b16 %v226
    %v1465 = vunpack.c.l.b16 %v227
    %v1466 = vunpack.c.l.b16 %v228
    %v1467 = vunpack.c.l.b16 %v229
    %v1468 = vunpack.c.l.b16 %v230
    %v1469 = vunpack.c.l.b16 %v231
    %v1470 = vunpack.c.l.b16 %v232
    %v1471 = vunpack.c.l.b16 %v233
    %v1472 = vunpack.c.l.b16 %v234
    %v1473 = vunpack.c.l.b16 %v235
    %v1474 = vunpack.c.l.b16 %v236
    %v1475 = vunpack.c.l.b16 %v237
    %v1476 = vunpack.c.l.b16 %v238
    %v1477 = vunpack.c.l.b16 %v239
    %v1478 = vunpack.c.l.b16 %v240
    %v1479 = vunpack.c.l.b16 %v241
    %v1480 = vunpack.c.l.b16 %v242
    %v1481 = vunpack.c.l.b16 %v243
    %v1482 = vunpack.c.l.b16 %v244
    %v1483 = vunpack.c.l.b16 %v245
    %v1484 = vunpack.c.l.b16 %v246
    %v1485 = vunpack.c.l.b16 %v247
    %v1486 = vunpack.c.l.b16 %v248
    %v1487 = vunpack.c.l.b16 %v249
    %v1488 = vunpack.c.l.b16 %v250
    %v1489 = vunpack.c.l.b16 %v251
    %v1490 = vunpack.c.l.b16 %v252
    %v1491 = vunpack.c.l.b16 %v253
    %v1492 = vunpack.c.l.b16 %v254
    %v1493 = vunpack.c.l.b16 %v255
    %v1494 = vunpack.c.l.b16 %v256
    %v1495 = vunpack.c.l.b16 %v257
    %v1496 = vunpack.c.l.b16 %v258
    %v1497 = vunpack.c.l.b16 %v259
    %v1498 = vunpack.c.l.b16 %v260
    %v1499 = vunpack.c.l.b16 %v261
    %v1500 = vunpack.c.l.b16 %v262
    %v1501 = vunpack.c.l.b16 %v263
    %v1502 = vunpack.c.l.b16 %v264
    %v1503 = vunpack.c.l.b16 %v265
    %v1504 = vunpack.c.l.b16 %v266
    %v1505 = vunpack.c.l.b16 %v267
    %v1506 = vunpack.c.l.b16 %v268
    %v1507 = vunpack.c.l.b16 %v269
    %v1508 = vunpack.c.l.b16 %v270
    %v1509 = vunpack.c.l.b16 %v271
    %v1510 = vunpack.c.l.b16 %v272
    %v1511 = vunpack.c.l.b16 %v273
    %v1512 = vunpack.c.l.b16 %v274
    %v1513 = vunpack.c.l.b16 %v275
    %v1514 = vunpack.c.l.b16 %v276
    %v1515 = vunpack.c.l.b16 %v277
    %v1516 = vunpack.c.l.b16 %v278
    %v1517 = vunpack.c.l.b16 %v279
    %v1518 = vunpack.c.l.b16 %v280
    %v1519 = vunpack.c.l.b16 %v281
    %v1520 = vunpack.c.l.b16 %v282
    %v1521 = vunpack.c.l.b16 %v283
    %v1522 = vunpack.c.l.b16 %v284
    %v1523 = vunpack.c.l.b16 %v285
    %v1524 = vunpack.c.l.b16 %v286
    %v1525 = vunpack.c.l.b16 %v287
    %v1526 = vunpack.c.l.b16 %v288
    %v1527 = vunpack.c.l.b16 %v289
    %v1528 = vunpack.c.l.b16 %v290
    %v1529 = vunpack.c.l.b16 %v291
    %v1530 = vunpack.c.l.b16 %v292
    %v1531 = vunpack.c.l.b16 %v293
    %v1532 = vunpack.c.l.b16 %v294
    %v1533 = vunpack.c.l.b16 %v295
    %v1534 = vunpack.c.l.b16 %v296
    %v1535 = vunpack.c.l.b16 %v297
    %v1536 = vunpack.c.l.b16 %v298
    %v1537 = vunpack.c.l.b16 %v299
    %v1538 = vunpack.c.l.b16 %v300
    %v1539 = vunpack.c.l.b16 %v301
    %v1540 = vunpack.c.l.b16 %v302
    %v1541 = vunpack.c.l.b16 %v303
    %v1542 = vunpack.c.l.b16 %v304
    %v1543 = vunpack.c.l.b16 %v305
    %v1544 = vunpack.c.l.b16 %v306
    %v1545 = vunpack.c.l.b16 %v307
    %v1546 = vunpack.c.l.b16 %v308
    %v1547 = vunpack.c.l.b16 %v309
    %v1548 = vunpack.c.l.b16 %v310
    %v1549 = vunpack.c.l.b16 %v311
    %v1550 = vunpack.c.l.b16 %v312
    %v1551 = vunpack.c.l.b16 %v313
    %v1552 = vunpack.c.l.b16 %v314
    %v1553 = vunpack.c.l.b16 %v315
    %v1554 = vunpack.c.l.b16 %v316
    %v1555 = vunpack.c.l.b16 %v317
    %v1556 = vunpack.c.l.b16 %v318
    %v1557 = vunpack.c.l.b16 %v319
    %v1558 = vunpack.c.l.b16 %v320
    %v1559 = vunpack.c.l.b16 %v321
    %v1560 = vunpack.c.l.b16 %v322
    %v1561 = vunpack.c.l.b16 %v323
    %v1562 = vunpack.c.l.b16 %v324
    %v1563 = vunpack.c.l.b16 %v325
    %v1564 = vunpack.c.l.b16 %v326
    %v1565 = vunpack.c.l.b16 %v327
    %v1566 = vunpack.c.l.b16 %v328
    %v1567 = vunpack.c.l.b16 %v329
    %v1568 = vunpack.c.l.b16 %v330
    %v1569 = vunpack.c.l.b16 %v331
    %v1570 = vunpack.c.l.b16 %v332
    %v1571 = vunpack.c.l.b16 %v333
    %v1572 = vunpack.c.l.b16 %v334
    %v1573 = vunpack.c.l.b16 %v335
    %v1574 = vunpack.c.l.b16 %v336
    %v1575 = vunpack.c.l.b16 %v337
    %v1576 = vunpack.c.l.b16 %v338
    %v1577 = vunpack.c.l.b16 %v339
    %v1578 = vunpack.c.l.b16 %v340
    %v1579 = vunpack.c.l.b16 %v341
    %v1580 = vunpack.c.l.b16 %v342
    %v1581 = vunpack.c.l.b16 %v343
    %v1582 = vunpack.c.l.b16 %v344
    %v1583 = vunpack.c.l.b16 %v345
    %v1584 = vunpack.c.l.b16 %v346
    %v1585 = vunpack.c.l.b16 %v347
    %v1586 = vunpack.c.l.b16 %v348
    %v1587 = vunpack.c.l.b16 %v349
    %v1588 = vunpack.c.l.b16 %v350
    %v1589 = vunpack.c.l.b16 %v351
    %v1590 = vunpack.c.l.b16 %v352
    %v1591 = vunpack.c.l.b16 %v353
    %v1592 = vunpack.c.l.b16 %v354
    %v1593 = vunpack.c.l.b16 %v355
    %v1594 = vunpack.c.l.b16 %v356
    %v1595 = vunpack.c.l.b16 %v357
    %v1596 = vunpack.c.l.b16 %v358
    %v1597 = vunpack.c.l.b16 %v359
    %v1598 = vunpack.c.l.b16 %v360
    %v1599 = vunpack.c.l.b16 %v361
    %v1600 = vunpack.c.l.b16 %v362
    %v1601 = vunpack.c.l.b16 %v363
    %v1602 = vunpack.c.l.b16 %v364
    %v1603 = vunpack.c.l.b16 %v365
    %v1604 = vunpack.c.l.b16 %v366
    %v1605 = vunpack.c.l.b16 %v367
    %v1606 = vunpack.c.l.b16 %v368
    %v1607 = vunpack.c.l.b16 %v369
    %v1608 = vunpack.c.l.b16 %v370
    %v1609 = vunpack.c.l.b16 %v371
    %v1610 = vunpack.c.l.b16 %v372
    %v1611 = vunpack.c.l.b16 %v373
    %v1612 = vunpack.c.l.b16 %v374
    %v1613 = vunpack.c.l.b16 %v375
    %v1614 = vunpack.c.l.b16 %v376
    %v1615 = vunpack.c.l.b16 %v377
    %v1616 = vunpack.c.l.b16 %v378
    %v1617 = vunpack.c.l.b16 %v379
    %v1618 = vunpack.c.l.b16 %v380
    %v1619 = vunpack.c.l.b16 %v381
    %v1620 = vunpack.c.l.b16 %v382
    %v1621 = vunpack.c.l.b16 %v383
    %v1622 = vunpack.c.l.b16 %v384
    %v1623 = vunpack.c.l.b16 %v385
    %v1624 = vunpack.c.l.b16 %v386
    %v1625 = vunpack.c.l.b16 %v387
    %v1626 = vunpack.c.l.b16 %v388
    %v1627 = vunpack.c.l.b16 %v389
    %v1628 = vunpack.c.l.b16 %v390
    %v1629 = vunpack.c.l.b16 %v391
    %v1630 = vunpack.c.l.b16 %v392
    %v1631 = vunpack.c.l.b16 %v393
    %v1632 = vunpack.c.l.b16 %v394
    %v1633 = vunpack.c.l.b16 %v395
    %v1634 = vunpack.c.l.b16 %v396
    %v1635 = vunpack.c.l.b16 %v397
    %v1636 = vunpack.c.l.b16 %v398
    %v1637 = vunpack.c.l.b16 %v399
    %v1638 = vunpack.c.l.b16 %v400
    %v1639 = vunpack.c.l.b16 %v401
    %v1640 = vunpack.c.l.b16 %v402
    %v1641 = vunpack.c.l.b16 %v403
    %v1642 = vunpack.c.l.b16 %v404
    %v1643 = vunpack.c.l.b16 %v405
    %v1644 = vunpack.c.l.b16 %v406
    %v1645 = vunpack.c.l.b16 %v407
    %v1646 = vunpack.c.l.b16 %v408
    %v1647 = vunpack.c.l.b16 %v409
    %v1648 = vunpack.c.l.b16 %v410
    %v1649 = vunpack.c.l.b16 %v411
    %v1650 = vunpack.c.l.b16 %v412
    %v1651 = vunpack.c.l.b16 %v413
    %v1652 = vunpack.c.l.b16 %v414
    %v1653 = vunpack.c.l.b16 %v415
    %v1654 = vunpack.c.l.b16 %v416
    %v1655 = vunpack.c.l.b16 %v417
    %v1656 = vunpack.c.l.b16 %v418
    %v1657 = vunpack.c.l.b16 %v419
    %v1658 = vunpack.c.l.b16 %v420
    %v1659 = vunpack.c.l.b16 %v421
    %v1660 = vunpack.c.l.b16 %v422
    %v1661 = vunpack.c.l.b16 %v423
    %v1662 = vunpack.c.l.b16 %v424
    %v1663 = vunpack.c.l.b16 %v425
    %v1664 = vunpack.c.l.b16 %v426
    %v1665 = vunpack.c.l.b16 %v427
    %v1666 = vunpack.c.l.b16 %v428
    %v1667 = vunpack.c.l.b16 %v429
    %v1668 = vunpack.c.l.b16 %v430
    %v1669 = vunpack.c.l.b16 %v431
    %v1670 = vunpack.c.l.b16 %v432
    %v1671 = vunpack.c.l.b16 %v433
    %v1672 = vunpack.c.l.b16 %v434
    %v1673 = vunpack.c.l.b16 %v435
    %v1674 = vunpack.c.l.b16 %v436
    %v1675 = vunpack.c.l.b16 %v437
    %v1676 = vunpack.c.l.b16 %v438
    %v1677 = vunpack.c.l.b16 %v439
    %v1678 = vunpack.c.l.b16 %v440
    %v1679 = vunpack.c.l.b16 %v441
    %v1680 = vunpack.c.l.b16 %v442
    %v1681 = vunpack.c.l.b16 %v443
    %v1682 = vunpack.c.l.b16 %v444
    %v1683 = vunpack.c.l.b16 %v445
    %v1684 = vunpack.c.l.b16 %v446
    %v1685 = vunpack.c.l.b16 %v447
    %v1686 = vunpack.c.l.b16 %v448
    %v1687 = vunpack.c.l.b16 %v449
    %v1688 = vunpack.c.l.b16 %v450
    %v1689 = vunpack.c.l.b16 %v451
    %v1690 = vunpack.c.l.b16 %v452
    %v1691 = vunpack.c.l.b16 %v453
    %v1692 = vunpack.c.l.b16 %v454
    %v1693 = vunpack.c.l.b16 %v455
    %v1694 = vunpack.c.l.b16 %v456
    %v1695 = vunpack.c.l.b16 %v457
    %v1696 = vunpack.c.l.b16 %v458
    %v1697 = vunpack.c.l.b16 %v459
    %v1698 = vunpack.c.l.b16 %v460
    %v1699 = vunpack.c.l.b16 %v461
    %v1700 = vunpack.c.l.b16 %v462
    %v1701 = vunpack.c.l.b16 %v463
    %v1702 = vunpack.c.l.b16 %v464
    %v1703 = vunpack.c.l.b16 %v465
    %v1704 = vunpack.c.l.b16 %v466
    %v1705 = vunpack.c.l.b16 %v467
    %v1706 = vunpack.c.l.b16 %v468
    %v1707 = vunpack.c.l.b16 %v469
    %v1708 = vunpack.c.l.b16 %v470
    %v1709 = vunpack.c.l.b16 %v471
    %v1710 = vunpack.c.l.b16 %v472
    %v1711 = vunpack.c.l.b16 %v473
    %v1712 = vunpack.c.l.b16 %v474
    %v1713 = vunpack.c.l.b16 %v475
    %v1714 = vunpack.c.l.b16 %v476
    %v1715 = vunpack.c.l.b16 %v477
    %v1716 = vunpack.c.l.b16 %v478
    %v1717 = vunpack.c.l.b16 %v479
    %v1718 = vunpack.c.l.b16 %v480
    %v1719 = vunpack.c.l.b16 %v481
    %v1720 = vunpack.c.l.b16 %v482
    %v1721 = vunpack.c.l.b16 %v483
    %v1722 = vunpack.c.l.b16 %v484
    %v1723 = vunpack.c.l.b16 %v485
    %v1724 = vunpack.c.l.b16 %v486
    %v1725 = vunpack.c.l.b16 %v487
    %v1726 = vunpack.c.l.b16 %v488
    %v1727 = vunpack.c.l.b16 %v489
    %v1728 = vunpack.c.l.b16 %v490
    %v1729 = vunpack.c.l.b16 %v491
    %v1730 = vunpack.c.l.b16 %v492
    %v1731 = vunpack.c.l.b16 %v493
    %v1732 = vunpack.c.l.b16 %v494
    %v1733 = vunpack.c.l.b16 %v495
    %v1734 = vunpack.c.l.b16 %v496
    %v1735 = vunpack.c.l.b16 %v497
    %v1736 = vunpack.c.l.b16 %v498
    %v1737 = vunpack.c.l.b16 %v499
    %v1738 = vunpack.c.l.b16 %v500
    %v1739 = vunpack.c.l.b16 %v501
    %v1740 = vunpack.c.l.b16 %v502
    %v1741 = vunpack.c.l.b16 %v503
    %v1742 = vunpack.c.l.b16 %v504
    %v1743 = vunpack.c.l.b16 %v505
    %v1744 = vunpack.c.l.b16 %v506
    %v1745 = vunpack.c.l.b16 %v507
    %v1746 = vunpack.c.l.b16 %v508
    %v1747 = vunpack.c.l.b16 %v509
    %v1748 = vunpack.c.l.b16 %v510
    %v1749 = vunpack.c.l.b16 %v511
    %v1750 = vunpack.c.l.b16 %v512
    %v1751 = vunpack.c.l.b16 %v513
    %v1752 = vunpack.c.l.b16 %v514
    %v1753 = vunpack.c.l.b16 %v515
    %v1754 = vunpack.c.l.b16 %v516
    %v1755 = vunpack.c.l.b16 %v517
    %v1756 = vunpack.c.l.b16 %v518
    %v1757 = vunpack.c.l.b16 %v519
    %v1758 = vunpack.c.l.b16 %v520
    %v1759 = vunpack.c.l.b16 %v521
    %v1760 = vunpack.c.l.b16 %v522
    %v1761 = vunpack.c.l.b16 %v523
    %v1762 = vunpack.c.l.b16 %v524
    %v1763 = vunpack.c.l.b16 %v525
    %v1764 = vunpack.c.l.b16 %v526
    %v1765 = vunpack.c.l.b16 %v527
    %v1766 = vunpack.c.l.b16 %v528
    %v1767 = vunpack.c.l.b16 %v529
    %v1768 = vunpack.c.l.b16 %v530
    %v1769 = vunpack.c.l.b16 %v531
    %v1770 = vunpack.c.l.b16 %v532
    %v1771 = vunpack.c.l.b16 %v533
    %v1772 = vunpack.c.l.b16 %v534
    %v1773 = vunpack.c.l.b16 %v535
    %v1774 = vunpack.c.l.b16 %v536
    %v1775 = vunpack.c.l.b16 %v537
    %v1776 = vunpack.c.l.b16 %v538
    %v1777 = vunpack.c.l.b16 %v539
    %v1778 = vunpack.c.l.b16 %v540
    %v1779 = vunpack.c.l.b16 %v541
    %v1780 = vunpack.c.l.b16 %v542
    %v1781 = vunpack.c.l.b16 %v543
    %v1782 = vunpack.c.l.b16 %v544
    %v1783 = vunpack.c.l.b16 %v545
    %v1784 = vunpack.c.l.b16 %v546
    %v1785 = vunpack.c.l.b16 %v547
    %v1786 = vunpack.c.l.b16 %v548
    %v1787 = vunpack.c.l.b16 %v549
    %v1788 = vunpack.c.l.b16 %v550
    %v1789 = vunpack.c.l.b16 %v551
    %v1790 = vunpack.c.l.b16 %v552
    %v1791 = vunpack.c.l.b16 %v553
    %v1792 = vunpack.c.l.b16 %v554
    %v1793 = vunpack.c.l.b16 %v555
    %v1794 = vunpack.c.l.b16 %v556
    %v1795 = vunpack.c.l.b16 %v557
    %v1796 = vunpack.c.l.b16 %v558
    %v1797 = vunpack.c.l.b16 %v559
    %v1798 = vunpack.c.l.b16 %v560
    %v1799 = vunpack.c.l.b16 %v561
    %v1800 = vunpack.c.l.b16 %v562
    %v1801 = vunpack.c.l.b16 %v563
    %v1802 = vunpack.c.l.b16 %v564
    %v1803 = vunpack.c.l.b16 %v565
    %v1804 = vunpack.c.l.b16 %v566
    %v1805 = vunpack.c.l.b16 %v567
    %v1806 = vunpack.c.l.b16 %v568
    %v1807 = vunpack.c.l.b16 %v569
    %v1808 = vunpack.c.l.b16 %v570
    %v1809 = vunpack.c.l.b16 %v571
    %v1810 = vunpack.c.l.b16 %v572
    %v1811 = vunpack.c.l.b16 %v573
    %v1812 = vunpack.c.l.b16 %v574
    %v1813 = vunpack.c.l.b16 %v575
    %v1814 = vunpack.c.l.b16 %v576
    %v1815 = vunpack.c.l.b16 %v577
    %v1816 = vunpack.c.l.b16 %v578
    %v1817 = vunpack.c.l.b16 %v579
    %v1818 = vunpack.c.l.b16 %v580
    %v1819 = vunpack.c.l.b16 %v581
    %v1820 = vunpack.c.l.b16 %v582
    %v1821 = vunpack.c.l.b16 %v583
    %v1822 = vunpack.c.l.b16 %v584
    %v1823 = vunpack.c.l.b16 %v585
    %v1824 = vunpack.c.l.b16 %v586
    %v1825 = vunpack.c.l.b16 %v587
    %v1826 = vunpack.c.l.b16 %v588
    %v1827 = vunpack.c.l.b16 %v589
    %v1828 = vunpack.c.l.b16 %v590
    %v1829 = vunpack.c.l.b16 %v591
    %v1830 = vunpack.c.l.b16 %v592
    %v1831 = vunpack.c.l.b16 %v593
    %v1832 = vunpack.c.l.b16 %v594
    %v1833 = vunpack.c.l.b16 %v595
    %v1834 = vpack.c.b16 %v1259, %v1258
    %v1835 = vpack.c.b16 %v1261, %v1260
    %v1836 = vpack.c.b16 %v1263, %v1262
    %v1837 = vpack.c.b16 %v1265, %v1264
    %v1838 = vpack.c.b16 %v1267, %v1266
    %v1839 = vpack.c.b16 %v1269, %v1268
    %v1840 = vpack.c.b16 %v1271, %v1270
    %v1841 = vpack.c.b16 %v1273, %v1272
    %v1842 = vpack.c.b16 %v1275, %v1274
    %v1843 = vpack.c.b16 %v1277, %v1276
    %v1844 = vpack.c.b16 %v1279, %v1278
    %v1845 = vpack.c.b16 %v1281, %v1280
    %v1846 = vpack.c.b16 %v1283, %v1282
    %v1847 = vpack.c.b16 %v1285, %v1284
    %v1848 = vpack.c.b16 %v1287, %v1286
    %v1849 = vpack.c.b16 %v1289, %v1288
    %v1850 = vpack.c.b16 %v1291, %v1290
    %v1851 = vpack.c.b16 %v1293, %v1292
    %v1852 = vpack.c.b16 %v1295, %v1294
    %v1853 = vpack.c.b16 %v1297, %v1296
    %v1854 = vpack.c.b16 %v1299, %v1298
    %v1855 = vpack.c.b16 %v1301, %v1300
    %v1856 = vpack.c.b16 %v1303, %v1302
    %v1857 = vpack.c.b16 %v1305, %v1304
    %v1858 = vpack.c.b16 %v1307, %v1306
    %v1859 = vpack.c.b16 %v1309, %v1308
    %v1860 = vpack.c.b16 %v1311, %v1310
    %v1861 = vpack.c.b16 %v1313, %v1312
    %v1862 = vpack.c.b16 %v1315, %v1314
    %v1863 = vpack.c.b16 %v1317, %v1316
    %v1864 = vpack.c.b16 %v1319, %v1318
    %v1865 = vpack.c.b16 %v1321, %v1320
    %v1866 = vpack.c.b16 %v1323, %v1322
    %v1867 = vpack.c.b16 %v1325, %v1324
    %v1868 = vpack.c.b16 %v1327, %v1326
    %v1869 = vpack.c.b16 %v1329, %v1328
    %v1870 = vpack.c.b16 %v1331, %v1330
    %v1871 = vpack.c.b16 %v1333, %v1332
    %v1872 = vpack.c.b16 %v1335, %v1334
    %v1873 = vpack.c.b16 %v1337, %v1336
    %v1874 = vpack.c.b16 %v1339, %v1338
    %v1875 = vpack.c.b16 %v1341, %v1340
    %v1876 = vpack.c.b16 %v1343, %v1342
    %v1877 = vpack.c.b16 %v1345, %v1344
    %v1878 = vpack.c.b16 %v1347, %v1346
    %v1879 = vpack.c.b16 %v1349, %v1348
    %v1880 = vpack.c.b16 %v1351, %v1350
    %v1881 = vpack.c.b16 %v1353, %v1352
    %v1882 = vpack.c.b16 %v1355, %v1354
    %v1883 = vpack.c.b16 %v1357, %v1356
    %v1884 = vpack.c.b16 %v1359, %v1358
    %v1885 = vpack.c.b16 %v1361, %v1360
    %v1886 = vpack.c.b16 %v1363, %v1362
    %v1887 = vpack.c.b16 %v1365, %v1364
    %v1888 = vpack.c.b16 %v1367, %v1366
    %v1889 = vpack.c.b16 %v1369, %v1368
    %v1890 = vpack.c.b16 %v1371, %v1370
    %v1891 = vpack.c.b16 %v1373, %v1372
    %v1892 = vpack.c.b16 %v1375, %v1374
    %v1893 = vpack.c.b16 %v1377, %v1376
    %v1894 = vpack.c.b16 %v1379, %v1378
    %v1895 = vpack.c.b16 %v1381, %v1380
    %v1896 = vpack.c.b16 %v1383, %v1382
    %v1897 = vpack.c.b16 %v1385, %v1384
    %v1898 = vpack.c.b16 %v1387, %v1386
    %v1899 = vpack.c.b16 %v1389, %v1388
    %v1900 = vpack.c.b16 %v1391, %v1390
    %v1901 = vpack.c.b16 %v1393, %v1392
    %v1902 = vpack.c.b16 %v1395, %v1394
    %v1903 = vpack.c.b16 %v1397, %v1396
    %v1904 = vpack.c.b16 %v1399, %v1398
    %v1905 = vpack.c.b16 %v1401, %v1400
    %v1906 = vpack.c.b16 %v1403, %v1402
    %v1907 = vpack.c.b16 %v1405, %v1404
    %v1908 = vpack.c.b16 %v1407, %v1406
    %v1909 = vpack.c.b16 %v1409, %v1408
    %v1910 = vpack.c.b16 %v1411, %v1410
    %v1911 = vpack.c.b16 %v1413, %v1412
    %v1912 = vpack.c.b16 %v1415, %v1414
    %v1913 = vpack.c.b16 %v1417, %v1416
    %v1914 = vpack.c.b16 %v1419, %v1418
    %v1915 = vpack.c.b16 %v1421, %v1420
    %v1916 = vpack.c.b16 %v1423, %v1422
    %v1917 = vpack.c.b16 %v1425, %v1424
    %v1918 = vpack.c.b16 %v1427, %v1426
    %v1919 = vpack.c.b16 %v1429, %v1428
    %v1920 = vpack.c.b16 %v1431, %v1430
    %v1921 = vpack.c.b16 %v1433, %v1432
    %v1922 = vpack.c.b16 %v1435, %v1434
    %v1923 = vpack.c.b16 %v1437, %v1436
    %v1924 = vpack.c.b16 %v1439, %v1438
    %v1925 = vpack.c.b16 %v1441, %v1440
    %v1926 = vpack.c.b16 %v1443, %v1442
    %v1927 = vpack.c.b16 %v1445, %v1444
    %v1928 = vpack.c.b16 %v1447, %v1446
    %v1929 = vpack.c.b16 %v1449, %v1448
    %v1930 = vpack.c.b16 %v1451, %v1450
    %v1931 = vpack.c.b16 %v1453, %v1452
    %v1932 = vpack.c.b16 %v1455, %v1454
    %v1933 = vpack.c.b16 %v1457, %v1456
    %v1934 = vpack.c.b16 %v1459, %v1458
    %v1935 = vpack.c.b16 %v1461, %v1460
    %v1936 = vpack.c.b16 %v1463, %v1462
    %v1937 = vpack.c.b16 %v1465, %v1464
    %v1938 = vpack.c.b16 %v1467, %v1466
    %v1939 = vpack.c.b16 %v1469, %v1468
    %v1940 = vpack.c.b16 %v1471, %v1470
    %v1941 = vpack.c.b16 %v1473, %v1472
    %v1942 = vpack.c.b16 %v1475, %v1474
    %v1943 = vpack.c.b16 %v1477, %v1476
    %v1944 = vpack.c.b16 %v1479, %v1478
    %v1945 = vpack.c.b16 %v1481, %v1480
    %v1946 = vpack.c.b16 %v1483, %v1482
    %v1947 = vpack.c.b16 %v1485, %v1484
    %v1948 = vpack.c.b16 %v1487, %v1486
    %v1949 = vpack.c.b16 %v1489, %v1488
    %v1950 = vpack.c.b16 %v1491, %v1490
    %v1951 = vpack.c.b16 %v1493, %v1492
    %v1952 = vpack.c.b16 %v1495, %v1494
    %v1953 = vpack.c.b16 %v1497, %v1496
    %v1954 = vpack.c.b16 %v1499, %v1498
    %v1955 = vpack.c.b16 %v1501, %v1500
    %v1956 = vpack.c.b16 %v1503, %v1502
    %v1957 = vpack.c.b16 %v1505, %v1504
    %v1958 = vpack.c.b16 %v1507, %v1506
    %v1959 = vpack.c.b16 %v1509, %v1508
    %v1960 = vpack.c.b16 %v1511, %v1510
    %v1961 = vpack.c.b16 %v1513, %v1512
    %v1962 = vpack.c.b16 %v1515, %v1514
    %v1963 = vpack.c.b16 %v1517, %v1516
    %v1964 = vpack.c.b16 %v1519, %v1518
    %v1965 = vpack.c.b16 %v1521, %v1520
    %v1966 = vpack.c.b16 %v1523, %v1522
    %v1967 = vpack.c.b16 %v1525, %v1524
    %v1968 = vpack.c.b16 %v1527, %v1526
    %v1969 = vpack.c.b16 %v1529, %v1528
    %v1970 = vpack.c.b16 %v1531, %v1530
    %v1971 = vpack.c.b16 %v1533, %v1532
    %v1972 = vpack.c.b16 %v1535, %v1534
    %v1973 = vpack.c.b16 %v1537, %v1536
    %v1974 = vpack.c.b16 %v1539, %v1538
    %v1975 = vpack.c.b16 %v1541, %v1540
    %v1976 = vpack.c.b16 %v1543, %v1542
    %v1977 = vpack.c.b16 %v1545, %v1544
    %v1978 = vpack.c.b16 %v1547, %v1546
    %v1979 = vpack.c.b16 %v1549, %v1548
    %v1980 = vpack.c.b16 %v1551, %v1550
    %v1981 = vpack.c.b16 %v1553, %v1552
    %v1982 = vpack.c.b16 %v1555, %v1554
    %v1983 = vpack.c.b16 %v1557, %v1556
    %v1984 = vpack.c.b16 %v1559, %v1558
    %v1985 = vpack.c.b16 %v1561, %v1560
    %v1986 = vpack.c.b16 %v1563, %v1562
    %v1987 = vpack.c.b16 %v1565, %v1564
    %v1988 = vpack.c.b16 %v1567, %v1566
    %v1989 = vpack.c.b16 %v1569, %v1568
    %v1990 = vpack.c.b16 %v1571, %v1570
    %v1991 = vpack.c.b16 %v1573, %v1572
    %v1992 = vpack.c.b16 %v1575, %v1574
    %v1993 = vpack.c.b16 %v1577, %v1576
    %v1994 = vpack.c.b16 %v1579, %v1578
    %v1995 = vpack.c.b16 %v1581, %v1580
    %v1996 = vpack.c.b16 %v1583, %v1582
    %v1997 = vpack.c.b16 %v1585, %v1584
    %v1998 = vpack.c.b16 %v1587, %v1586
    %v1999 = vpack.c.b16 %v1589, %v1588
    %v2000 = vpack.c.b16 %v1591, %v1590
    %v2001 = vpack.c.b16 %v1593, %v1592
    %v2002 = vpack.c.b16 %v1595, %v1594
    %v2003 = vpack.c.b16 %v1597, %v1596
    %v2004 = vpack.c.b16 %v1599, %v1598
    %v2005 = vpack.c.b16 %v1601, %v1600
    %v2006 = vpack.c.b16 %v1603, %v1602
    %v2007 = vpack.c.b16 %v1605, %v1604
    %v2008 = vpack.c.b16 %v1607, %v1606
    %v2009 = vpack.c.b16 %v1609, %v1608
    %v2010 = vpack.c.b16 %v1611, %v1610
    %v2011 = vpack.c.b16 %v1613, %v1612
    %v2012 = vpack.c.b16 %v1615, %v1614
    %v2013 = vpack.c.b16 %v1617, %v1616
    %v2014 = vpack.c.b16 %v1619, %v1618
    %v2015 = vpack.c.b16 %v1621, %v1620
    %v2016 = vpack.c.b16 %v1623, %v1622
    %v2017 = vpack.c.b16 %v1625, %v1624
    %v2018 = vpack.c.b16 %v1627, %v1626
    %v2019 = vpack.c.b16 %v1629, %v1628
    %v2020 = vpack.c.b16 %v1631, %v1630
    %v2021 = vpack.c.b16 %v1633, %v1632
    %v2022 = vpack.c.b16 %v1635, %v1634
    %v2023 = vpack.c.b16 %v1637, %v1636
    %v2024 = vpack.c.b16 %v1639, %v1638
    %v2025 = vpack.c.b16 %v1641, %v1640
    %v2026 = vpack.c.b16 %v1643, %v1642
    %v2027 = vpack.c.b16 %v1645, %v1644
    %v2028 = vpack.c.b16 %v1647, %v1646
    %v2029 = vpack.c.b16 %v1649, %v1648
    %v2030 = vpack.c.b16 %v1651, %v1650
    %v2031 = vpack.c.b16 %v1653, %v1652
    %v2032 = vpack.c.b16 %v1655, %v1654
    %v2033 = vpack.c.b16 %v1657, %v1656
    %v2034 = vpack.c.b16 %v1659, %v1658
    %v2035 = vpack.c.b16 %v1661, %v1660
    %v2036 = vpack.c.b16 %v1663, %v1662
    %v2037 = vpack.c.b16 %v1665, %v1664
    %v2038 = vpack.c.b16 %v1667, %v1666
    %v2039 = vpack.c.b16 %v1669, %v1668
    %v2040 = vpack.c.b16 %v1671, %v1670
    %v2041 = vpack.c.b16 %v1673, %v1672
    %v2042 = vpack.c.b16 %v1675, %v1674
    %v2043 = vpack.c.b16 %v1677, %v1676
    %v2044 = vpack.c.b16 %v1679, %v1678
    %v2045 = vpack.c.b16 %v1681, %v1680
    %v2046 = vpack.c.b16 %v1683, %v1682
    %v2047 = vpack.c.b16 %v1685, %v1684
    %v2048 = vpack.c.b16 %v1687, %v1686
    %v2049 = vpack.c.b16 %v1689, %v1688
    %v2050 = vpack.c.b16 %v1691, %v1690
    %v2051 = vpack.c.b16 %v1693, %v1692
    %v2052 = vpack.c.b16 %v1695, %v1694
    %v2053 = vpack.c.b16 %v1697, %v1696
    %v2054 = vpack.c.b16 %v1699, %v1698
    %v2055 = vpack.c.b16 %v1701, %v1700
    %v2056 = vpack.c.b16 %v1703, %v1702
    %v2057 = vpack.c.b16 %v1705, %v1704
    %v2058 = vpack.c.b16 %v1707, %v1706
    %v2059 = vpack.c.b16 %v1709, %v1708
    %v2060 = vpack.c.b16 %v1711, %v1710
    %v2061 = vpack.c.b16 %v1713, %v1712
    %v2062 = vpack.c.b16 %v1715, %v1714
    %v2063 = vpack.c.b16 %v1717, %v1716
    %v2064 = vpack.c.b16 %v1719, %v1718
    %v2065 = vpack.c.b16 %v1721, %v1720
    %v2066 = vpack.c.b16 %v1723, %v1722
    %v2067 = vpack.c.b16 %v1725, %v1724
    %v2068 = vpack.c.b16 %v1727, %v1726
    %v2069 = vpack.c.b16 %v1729, %v1728
    %v2070 = vpack.c.b16 %v1731, %v1730
    %v2071 = vpack.c.b16 %v1733, %v1732
    %v2072 = vpack.c.b16 %v1735, %v1734
    %v2073 = vpack.c.b16 %v1737, %v1736
    %v2074 = vpack.c.b16 %v1739, %v1738
    %v2075 = vpack.c.b16 %v1741, %v1740
    %v2076 = vpack.c.b16 %v1743, %v1742
    %v2077 = vpack.c.b16 %v1745, %v1744
    %v2078 = vpack.c.b16 %v1747, %v1746
    %v2079 = vpack.c.b16 %v1749, %v1748
    %v2080 = vpack.c.b16 %v1751, %v1750
    %v2081 = vpack.c.b16 %v1753, %v1752
    %v2082 = vpack.c.b16 %v1755, %v1754
    %v2083 = vpack.c.b16 %v1757, %v1756
    %v2084 = vpack.c.b16 %v1759, %v1758
    %v2085 = vpack.c.b16 %v1761, %v1760
    %v2086 = vpack.c.b16 %v1763, %v1762
    %v2087 = vpack.c.b16 %v1765, %v1764
    %v2088 = vpack.c.b16 %v1767, %v1766
    %v2089 = vpack.c.b16 %v1769, %v1768
    %v2090 = vpack.c.b16 %v1771, %v1770
    %v2091 = vpack.c.b16 %v1773, %v1772
    %v2092 = vpack.c.b16 %v1775, %v1774
    %v2093 = vpack.c.b16 %v1777, %v1776
    %v2094 = vpack.c.b16 %v1779, %v1778
    %v2095 = vpack.c.b16 %v1781, %v1780
    %v2096 = vpack.c.b16 %v1783, %v1782
    %v2097 = vpack.c.b16 %v1785, %v1784
    %v2098 = vpack.c.b16 %v1787, %v1786
    %v2099 = vpack.c.b16 %v1789, %v1788
    %v2100 = vpack.c.b16 %v1791, %v1790
    %v2101 = vpack.c.b16 %v1793, %v1792
    %v2102 = vpack.c.b16 %v1795, %v1794
    %v2103 = vpack.c.b16 %v1797, %v1796
    %v2104 = vpack.c.b16 %v1799, %v1798
    %v2105 = vpack.c.b16 %v1801, %v1800
    %v2106 = vpack.c.b16 %v1803, %v1802
    %v2107 = vpack.c.b16 %v1805, %v1804
    %v2108 = vpack.c.b16 %v1807, %v1806
    %v2109 = vpack.c.b16 %v1809, %v1808
    %v2110 = vpack.c.b16 %v1811, %v1810
    %v2111 = vpack.c.b16 %v1813, %v1812
    %v2112 = vpack.c.b16 %v1815, %v1814
    %v2113 = vpack.c.b16 %v1817, %v1816
    %v2114 = vpack.c.b16 %v1819, %v1818
    %v2115 = vpack.c.b16 %v1821, %v1820
    %v2116 = vpack.c.b16 %v1823, %v1822
    %v2117 = vpack.c.b16 %v1825, %v1824
    %v2118 = vpack.c.b16 %v1827, %v1826
    %v2119 = vpack.c.b16 %v1829, %v1828
    %v2120 = vpack.c.b16 %v1831, %v1830
    %v2121 = vpack.c.b16 %v1833, %v1832
    %2410 = vmatpush.bf16.msra.mxu0 %v1841
    %2411 = vmatpush.bf16.msra.mxu0 %v1840
    %2412 = vmatpush.bf16.msra.mxu0 %v1839
    %2413 = vmatpush.bf16.msra.mxu0 %v1838
    %2414 = vmatpush.bf16.msra.mxu0 %v1837
    %2415 = vmatpush.bf16.msra.mxu0 %v1836
    %2416 = vmatpush.bf16.msra.mxu0 %v1835
    %2417 = vmatpush.bf16.msra.mxu0 %v1834
    %2418 = vmatmul.bf16.gmra.mxu0 %v602
    %v2419 = vpop.f32.mrf.mxu0
    %v2420 = vadd.f32 %v598, %v2419
    %v2421 = vpop.f32.mrf.mxu0
    %2422 = vdwg.mxu0
    %2423 = vmatpush.bf16.msra.mxu0 %v1849
    %2424 = vmatpush.bf16.msra.mxu0 %v1848
    %2425 = vmatpush.bf16.msra.mxu0 %v1847
    %2426 = vmatpush.bf16.msra.mxu0 %v1846
    %2427 = vmatpush.bf16.msra.mxu0 %v1845
    %2428 = vmatpush.bf16.msra.mxu0 %v1844
    %2429 = vmatpush.bf16.msra.mxu0 %v1843
    %2430 = vmatpush.bf16.msra.mxu0 %v1842
    %2431 = vmatmul.bf16.gmra.mxu0 %v603
    %v2432 = vpop.f32.mrf.mxu0
    %v2433 = vadd.f32 %v2420, %v2432
    %v2434 = vpop.f32.mrf.mxu0
    %2435 = vdwg.mxu0
    %2436 = vmatpush.bf16.msra.mxu0 %v1857
    %2437 = vmatpush.bf16.msra.mxu0 %v1856
    %2438 = vmatpush.bf16.msra.mxu0 %v1855
    %2439 = vmatpush.bf16.msra.mxu0 %v1854
    %2440 = vmatpush.bf16.msra.mxu0 %v1853
    %2441 = vmatpush.bf16.msra.mxu0 %v1852
    %2442 = vmatpush.bf16.msra.mxu0 %v1851
    %2443 = vmatpush.bf16.msra.mxu0 %v1850
    %2444 = vmatmul.bf16.gmra.mxu0 %v604
    %v2445 = vpop.f32.mrf.mxu0
    %v2446 = vadd.f32 %v2433, %v2445
    %v2447 = vpop.f32.mrf.mxu0
    %2448 = vdwg.mxu0
    %2449 = vmatpush.bf16.msra.mxu0 %v1865
    %2450 = vmatpush.bf16.msra.mxu0 %v1864
    %2451 = vmatpush.bf16.msra.mxu0 %v1863
    %2452 = vmatpush.bf16.msra.mxu0 %v1862
    %2453 = vmatpush.bf16.msra.mxu0 %v1861
    %2454 = vmatpush.bf16.msra.mxu0 %v1860
    %2455 = vmatpush.bf16.msra.mxu0 %v1859
    %2456 = vmatpush.bf16.msra.mxu0 %v1858
    %2457 = vmatmul.bf16.gmra.mxu0 %v605
    %v2458 = vpop.f32.mrf.mxu0
    %v2459 = vadd.f32 %v2446, %v2458
    %v2460 = vpop.f32.mrf.mxu0
    %2461 = vdwg.mxu0
    %2462 = vmatpush.bf16.msra.mxu0 %v1873
    %2463 = vmatpush.bf16.msra.mxu0 %v1872
    %2464 = vmatpush.bf16.msra.mxu0 %v1871
    %2465 = vmatpush.bf16.msra.mxu0 %v1870
    %2466 = vmatpush.bf16.msra.mxu0 %v1869
    %2467 = vmatpush.bf16.msra.mxu0 %v1868
    %2468 = vmatpush.bf16.msra.mxu0 %v1867
    %2469 = vmatpush.bf16.msra.mxu0 %v1866
    %2470 = vmatmul.bf16.gmra.mxu0 %v606
    %v2471 = vpop.f32.mrf.mxu0
    %v2472 = vadd.f32 %v2459, %v2471
    %v2473 = vpop.f32.mrf.mxu0
    %2474 = vdwg.mxu0
    %2475 = vmatpush.bf16.msra.mxu0 %v1881
    %2476 = vmatpush.bf16.msra.mxu0 %v1880
    %2477 = vmatpush.bf16.msra.mxu0 %v1879
    %2478 = vmatpush.bf16.msra.mxu0 %v1878
    %2479 = vmatpush.bf16.msra.mxu0 %v1877
    %2480 = vmatpush.bf16.msra.mxu0 %v1876
    %2481 = vmatpush.bf16.msra.mxu0 %v1875
    %2482 = vmatpush.bf16.msra.mxu0 %v1874
    %2483 = vmatmul.bf16.gmra.mxu0 %v607
    %v2484 = vpop.f32.mrf.mxu0
    %v2485 = vadd.f32 %v2472, %v2484
    %v2486 = vpop.f32.mrf.mxu0
    %2487 = vdwg.mxu0
    %2488 = vmatpush.bf16.msra.mxu0 %v1889
    %2489 = vmatpush.bf16.msra.mxu0 %v1888
    %2490 = vmatpush.bf16.msra.mxu0 %v1887
    %2491 = vmatpush.bf16.msra.mxu0 %v1886
    %2492 = vmatpush.bf16.msra.mxu0 %v1885
    %2493 = vmatpush.bf16.msra.mxu0 %v1884
    %2494 = vmatpush.bf16.msra.mxu0 %v1883
    %2495 = vmatpush.bf16.msra.mxu0 %v1882
    %2496 = vmatmul.bf16.gmra.mxu0 %v608
    %v2497 = vpop.f32.mrf.mxu0
    %v2498 = vadd.f32 %v2485, %v2497
    %v2499 = vpop.f32.mrf.mxu0
    %2500 = vdwg.mxu0
    %2501 = vmatpush.bf16.msra.mxu0 %v1897
    %2502 = vmatpush.bf16.msra.mxu0 %v1896
    %2503 = vmatpush.bf16.msra.mxu0 %v1895
    %2504 = vmatpush.bf16.msra.mxu0 %v1894
    %2505 = vmatpush.bf16.msra.mxu0 %v1893
    %2506 = vmatpush.bf16.msra.mxu0 %v1892
    %2507 = vmatpush.bf16.msra.mxu0 %v1891
    %2508 = vmatpush.bf16.msra.mxu0 %v1890
    %2509 = vmatmul.bf16.gmra.mxu0 %v609
    %v2510 = vpop.f32.mrf.mxu0
    %v2511 = vadd.f32 %v2498, %v2510
    %v2512 = vpop.f32.mrf.mxu0
    %2513 = vdwg.mxu0
    %2514 = vmatpush.bf16.msra.mxu0 %v1905
    %2515 = vmatpush.bf16.msra.mxu0 %v1904
    %2516 = vmatpush.bf16.msra.mxu0 %v1903
    %2517 = vmatpush.bf16.msra.mxu0 %v1902
    %2518 = vmatpush.bf16.msra.mxu0 %v1901
    %2519 = vmatpush.bf16.msra.mxu0 %v1900
    %2520 = vmatpush.bf16.msra.mxu0 %v1899
    %2521 = vmatpush.bf16.msra.mxu0 %v1898
    %2522 = vmatmul.bf16.gmra.mxu0 %v612
    %v2523 = vpop.f32.mrf.mxu0
    %v2524 = vadd.f32 %v2511, %v2523
    %v2525 = vpop.f32.mrf.mxu0
    %2526 = vdwg.mxu0
    %2527 = vmatpush.bf16.msra.mxu0 %v1913
    %2528 = vmatpush.bf16.msra.mxu0 %v1912
    %2529 = vmatpush.bf16.msra.mxu0 %v1911
    %2530 = vmatpush.bf16.msra.mxu0 %v1910
    %2531 = vmatpush.bf16.msra.mxu0 %v1909
    %2532 = vmatpush.bf16.msra.mxu0 %v1908
    %2533 = vmatpush.bf16.msra.mxu0 %v1907
    %2534 = vmatpush.bf16.msra.mxu0 %v1906
    %2535 = vmatmul.bf16.gmra.mxu0 %v613
    %v2536 = vpop.f32.mrf.mxu0
    %v2537 = vadd.f32 %v2524, %v2536
    %v2538 = vpop.f32.mrf.mxu0
    %2539 = vdwg.mxu0
    %2540 = vmatpush.bf16.msra.mxu0 %v1921
    %2541 = vmatpush.bf16.msra.mxu0 %v1920
    %2542 = vmatpush.bf16.msra.mxu0 %v1919
    %2543 = vmatpush.bf16.msra.mxu0 %v1918
    %2544 = vmatpush.bf16.msra.mxu0 %v1917
    %2545 = vmatpush.bf16.msra.mxu0 %v1916
    %2546 = vmatpush.bf16.msra.mxu0 %v1915
    %2547 = vmatpush.bf16.msra.mxu0 %v1914
    %2548 = vmatmul.bf16.gmra.mxu0 %v614
    %v2549 = vpop.f32.mrf.mxu0
    %v2550 = vadd.f32 %v2537, %v2549
    %v2551 = vpop.f32.mrf.mxu0
    %2552 = vdwg.mxu0
    %2553 = vmatpush.bf16.msra.mxu0 %v1929
    %2554 = vmatpush.bf16.msra.mxu0 %v1928
    %2555 = vmatpush.bf16.msra.mxu0 %v1927
    %2556 = vmatpush.bf16.msra.mxu0 %v1926
    %2557 = vmatpush.bf16.msra.mxu0 %v1925
    %2558 = vmatpush.bf16.msra.mxu0 %v1924
    %2559 = vmatpush.bf16.msra.mxu0 %v1923
    %2560 = vmatpush.bf16.msra.mxu0 %v1922
    %2561 = vmatmul.bf16.gmra.mxu0 %v615
    %v2562 = vpop.f32.mrf.mxu0
    %v2563 = vadd.f32 %v2550, %v2562
    %v2564 = vpop.f32.mrf.mxu0
    %2565 = vdwg.mxu0
    %2566 = vmatpush.bf16.msra.mxu0 %v1937
    %2567 = vmatpush.bf16.msra.mxu0 %v1936
    %2568 = vmatpush.bf16.msra.mxu0 %v1935
    %2569 = vmatpush.bf16.msra.mxu0 %v1934
    %2570 = vmatpush.bf16.msra.mxu0 %v1933
    %2571 = vmatpush.bf16.msra.mxu0 %v1932
    %2572 = vmatpush.bf16.msra.mxu0 %v1931
    %2573 = vmatpush.bf16.msra.mxu0 %v1930
    %2574 = vmatmul.bf16.gmra.mxu0 %v616
    %v2575 = vpop.f32.mrf.mxu0
    %v2576 = vadd.f32 %v2563, %v2575
    %v2577 = vpop.f32.mrf.mxu0
    %2578 = vdwg.mxu0
    %2579 = vmatpush.bf16.msra.mxu0 %v1945
    %2580 = vmatpush.bf16.msra.mxu0 %v1944
    %2581 = vmatpush.bf16.msra.mxu0 %v1943
    %2582 = vmatpush.bf16.msra.mxu0 %v1942
    %2583 = vmatpush.bf16.msra.mxu0 %v1941
    %2584 = vmatpush.bf16.msra.mxu0 %v1940
    %2585 = vmatpush.bf16.msra.mxu0 %v1939
    %2586 = vmatpush.bf16.msra.mxu0 %v1938
    %2587 = vmatmul.bf16.gmra.mxu0 %v617
    %v2588 = vpop.f32.mrf.mxu0
    %v2589 = vadd.f32 %v2576, %v2588
    %v2590 = vpop.f32.mrf.mxu0
    %2591 = vdwg.mxu0
    %2592 = vmatpush.bf16.msra.mxu0 %v1953
    %2593 = vmatpush.bf16.msra.mxu0 %v1952
    %2594 = vmatpush.bf16.msra.mxu0 %v1951
    %2595 = vmatpush.bf16.msra.mxu0 %v1950
    %2596 = vmatpush.bf16.msra.mxu0 %v1949
    %2597 = vmatpush.bf16.msra.mxu0 %v1948
    %2598 = vmatpush.bf16.msra.mxu0 %v1947
    %2599 = vmatpush.bf16.msra.mxu0 %v1946
    %2600 = vmatmul.bf16.gmra.mxu0 %v618
    %v2601 = vpop.f32.mrf.mxu0
    %v2602 = vadd.f32 %v2589, %v2601
    %v2603 = vpop.f32.mrf.mxu0
    %2604 = vdwg.mxu0
    %2605 = vmatpush.bf16.msra.mxu0 %v1961
    %2606 = vmatpush.bf16.msra.mxu0 %v1960
    %2607 = vmatpush.bf16.msra.mxu0 %v1959
    %2608 = vmatpush.bf16.msra.mxu0 %v1958
    %2609 = vmatpush.bf16.msra.mxu0 %v1957
    %2610 = vmatpush.bf16.msra.mxu0 %v1956
    %2611 = vmatpush.bf16.msra.mxu0 %v1955
    %2612 = vmatpush.bf16.msra.mxu0 %v1954
    %2613 = vmatmul.bf16.gmra.mxu0 %v619
    %v2614 = vpop.f32.mrf.mxu0
    %v2615 = vadd.f32 %v2602, %v2614
    %v2616 = vpop.f32.mrf.mxu0
    %2617 = vdwg.mxu0
    %2618 = vmatpush.bf16.msra.mxu0 %v1969
    %2619 = vmatpush.bf16.msra.mxu0 %v1968
    %2620 = vmatpush.bf16.msra.mxu0 %v1967
    %2621 = vmatpush.bf16.msra.mxu0 %v1966
    %2622 = vmatpush.bf16.msra.mxu0 %v1965
    %2623 = vmatpush.bf16.msra.mxu0 %v1964
    %2624 = vmatpush.bf16.msra.mxu0 %v1963
    %2625 = vmatpush.bf16.msra.mxu0 %v1962
    %2626 = vmatmul.bf16.gmra.mxu0 %v622
    %v2627 = vpop.f32.mrf.mxu0
    %v2628 = vadd.f32 %v2615, %v2627
    %v2629 = vpop.f32.mrf.mxu0
    %2630 = vdwg.mxu0
    %2631 = vmatpush.bf16.msra.mxu0 %v1977
    %2632 = vmatpush.bf16.msra.mxu0 %v1976
    %2633 = vmatpush.bf16.msra.mxu0 %v1975
    %2634 = vmatpush.bf16.msra.mxu0 %v1974
    %2635 = vmatpush.bf16.msra.mxu0 %v1973
    %2636 = vmatpush.bf16.msra.mxu0 %v1972
    %2637 = vmatpush.bf16.msra.mxu0 %v1971
    %2638 = vmatpush.bf16.msra.mxu0 %v1970
    %2639 = vmatmul.bf16.gmra.mxu0 %v623
    %v2640 = vpop.f32.mrf.mxu0
    %v2641 = vadd.f32 %v2628, %v2640
    %v2642 = vpop.f32.mrf.mxu0
    %2643 = vdwg.mxu0
    %2644 = vmatpush.bf16.msra.mxu0 %v1985
    %2645 = vmatpush.bf16.msra.mxu0 %v1984
    %2646 = vmatpush.bf16.msra.mxu0 %v1983
    %2647 = vmatpush.bf16.msra.mxu0 %v1982
    %2648 = vmatpush.bf16.msra.mxu0 %v1981
    %2649 = vmatpush.bf16.msra.mxu0 %v1980
    %2650 = vmatpush.bf16.msra.mxu0 %v1979
    %2651 = vmatpush.bf16.msra.mxu0 %v1978
    %2652 = vmatmul.bf16.gmra.mxu0 %v624
    %v2653 = vpop.f32.mrf.mxu0
    %v2654 = vadd.f32 %v2641, %v2653
    %v2655 = vpop.f32.mrf.mxu0
    %2656 = vdwg.mxu0
    %2657 = vmatpush.bf16.msra.mxu0 %v1993
    %2658 = vmatpush.bf16.msra.mxu0 %v1992
    %2659 = vmatpush.bf16.msra.mxu0 %v1991
    %2660 = vmatpush.bf16.msra.mxu0 %v1990
    %2661 = vmatpush.bf16.msra.mxu0 %v1989
    %2662 = vmatpush.bf16.msra.mxu0 %v1988
    %2663 = vmatpush.bf16.msra.mxu0 %v1987
    %2664 = vmatpush.bf16.msra.mxu0 %v1986
    %2665 = vmatmul.bf16.gmra.mxu0 %v625
    %v2666 = vpop.f32.mrf.mxu0
    %v2667 = vadd.f32 %v2654, %v2666
    %v2668 = vpop.f32.mrf.mxu0
    %2669 = vdwg.mxu0
    %2670 = vmatpush.bf16.msra.mxu0 %v2001
    %2671 = vmatpush.bf16.msra.mxu0 %v2000
    %2672 = vmatpush.bf16.msra.mxu0 %v1999
    %2673 = vmatpush.bf16.msra.mxu0 %v1998
    %2674 = vmatpush.bf16.msra.mxu0 %v1997
    %2675 = vmatpush.bf16.msra.mxu0 %v1996
    %2676 = vmatpush.bf16.msra.mxu0 %v1995
    %2677 = vmatpush.bf16.msra.mxu0 %v1994
    %2678 = vmatmul.bf16.gmra.mxu0 %v626
    %v2679 = vpop.f32.mrf.mxu0
    %v2680 = vadd.f32 %v2667, %v2679
    %v2681 = vpop.f32.mrf.mxu0
    %2682 = vdwg.mxu0
    %2683 = vmatpush.bf16.msra.mxu0 %v2009
    %2684 = vmatpush.bf16.msra.mxu0 %v2008
    %2685 = vmatpush.bf16.msra.mxu0 %v2007
    %2686 = vmatpush.bf16.msra.mxu0 %v2006
    %2687 = vmatpush.bf16.msra.mxu0 %v2005
    %2688 = vmatpush.bf16.msra.mxu0 %v2004
    %2689 = vmatpush.bf16.msra.mxu0 %v2003
    %2690 = vmatpush.bf16.msra.mxu0 %v2002
    %2691 = vmatmul.bf16.gmra.mxu0 %v627
    %v2692 = vpop.f32.mrf.mxu0
    %v2693 = vadd.f32 %v2680, %v2692
    %v2694 = vpop.f32.mrf.mxu0
    %2695 = vdwg.mxu0
    %2696 = vmatpush.bf16.msra.mxu0 %v2017
    %2697 = vmatpush.bf16.msra.mxu0 %v2016
    %2698 = vmatpush.bf16.msra.mxu0 %v2015
    %2699 = vmatpush.bf16.msra.mxu0 %v2014
    %2700 = vmatpush.bf16.msra.mxu0 %v2013
    %2701 = vmatpush.bf16.msra.mxu0 %v2012
    %2702 = vmatpush.bf16.msra.mxu0 %v2011
    %2703 = vmatpush.bf16.msra.mxu0 %v2010
    %2704 = vmatmul.bf16.gmra.mxu0 %v628
    %v2705 = vpop.f32.mrf.mxu0
    %v2706 = vadd.f32 %v2693, %v2705
    %v2707 = vpop.f32.mrf.mxu0
    %2708 = vdwg.mxu0
    %2709 = vmatpush.bf16.msra.mxu0 %v2025
    %2710 = vmatpush.bf16.msra.mxu0 %v2024
    %2711 = vmatpush.bf16.msra.mxu0 %v2023
    %2712 = vmatpush.bf16.msra.mxu0 %v2022
    %2713 = vmatpush.bf16.msra.mxu0 %v2021
    %2714 = vmatpush.bf16.msra.mxu0 %v2020
    %2715 = vmatpush.bf16.msra.mxu0 %v2019
    %2716 = vmatpush.bf16.msra.mxu0 %v2018
    %2717 = vmatmul.bf16.gmra.mxu0 %v629
    %v2718 = vpop.f32.mrf.mxu0
    %v2719 = vadd.f32 %v2706, %v2718
    %v2720 = vpop.f32.mrf.mxu0
    %2721 = vdwg.mxu0
    %2722 = vmatpush.bf16.msra.mxu0 %v2033
    %2723 = vmatpush.bf16.msra.mxu0 %v2032
    %2724 = vmatpush.bf16.msra.mxu0 %v2031
    %2725 = vmatpush.bf16.msra.mxu0 %v2030
    %2726 = vmatpush.bf16.msra.mxu0 %v2029
    %2727 = vmatpush.bf16.msra.mxu0 %v2028
    %2728 = vmatpush.bf16.msra.mxu0 %v2027
    %2729 = vmatpush.bf16.msra.mxu0 %v2026
    %2730 = vmatmul.bf16.gmra.mxu0 %v632
    %v2731 = vpop.f32.mrf.mxu0
    %v2732 = vadd.f32 %v2719, %v2731
    %v2733 = vpop.f32.mrf.mxu0
    %2734 = vdwg.mxu0
    %2735 = vmatpush.bf16.msra.mxu0 %v2041
    %2736 = vmatpush.bf16.msra.mxu0 %v2040
    %2737 = vmatpush.bf16.msra.mxu0 %v2039
    %2738 = vmatpush.bf16.msra.mxu0 %v2038
    %2739 = vmatpush.bf16.msra.mxu0 %v2037
    %2740 = vmatpush.bf16.msra.mxu0 %v2036
    %2741 = vmatpush.bf16.msra.mxu0 %v2035
    %2742 = vmatpush.bf16.msra.mxu0 %v2034
    %2743 = vmatmul.bf16.gmra.mxu0 %v633
    %v2744 = vpop.f32.mrf.mxu0
    %v2745 = vadd.f32 %v2732, %v2744
    %v2746 = vpop.f32.mrf.mxu0
    %2747 = vdwg.mxu0
    %2748 = vmatpush.bf16.msra.mxu0 %v2049
    %2749 = vmatpush.bf16.msra.mxu0 %v2048
    %2750 = vmatpush.bf16.msra.mxu0 %v2047
    %2751 = vmatpush.bf16.msra.mxu0 %v2046
    %2752 = vmatpush.bf16.msra.mxu0 %v2045
    %2753 = vmatpush.bf16.msra.mxu0 %v2044
    %2754 = vmatpush.bf16.msra.mxu0 %v2043
    %2755 = vmatpush.bf16.msra.mxu0 %v2042
    %2756 = vmatmul.bf16.gmra.mxu0 %v634
    %v2757 = vpop.f32.mrf.mxu0
    %v2758 = vadd.f32 %v2745, %v2757
    %v2759 = vpop.f32.mrf.mxu0
    %2760 = vdwg.mxu0
    %2761 = vmatpush.bf16.msra.mxu0 %v2057
    %2762 = vmatpush.bf16.msra.mxu0 %v2056
    %2763 = vmatpush.bf16.msra.mxu0 %v2055
    %2764 = vmatpush.bf16.msra.mxu0 %v2054
    %2765 = vmatpush.bf16.msra.mxu0 %v2053
    %2766 = vmatpush.bf16.msra.mxu0 %v2052
    %2767 = vmatpush.bf16.msra.mxu0 %v2051
    %2768 = vmatpush.bf16.msra.mxu0 %v2050
    %2769 = vmatmul.bf16.gmra.mxu0 %v635
    %v2770 = vpop.f32.mrf.mxu0
    %v2771 = vadd.f32 %v2758, %v2770
    %v2772 = vpop.f32.mrf.mxu0
    %2773 = vdwg.mxu0
    %2774 = vmatpush.bf16.msra.mxu0 %v2065
    %2775 = vmatpush.bf16.msra.mxu0 %v2064
    %2776 = vmatpush.bf16.msra.mxu0 %v2063
    %2777 = vmatpush.bf16.msra.mxu0 %v2062
    %2778 = vmatpush.bf16.msra.mxu0 %v2061
    %2779 = vmatpush.bf16.msra.mxu0 %v2060
    %2780 = vmatpush.bf16.msra.mxu0 %v2059
    %2781 = vmatpush.bf16.msra.mxu0 %v2058
    %2782 = vmatmul.bf16.gmra.mxu0 %v636
    %v2783 = vpop.f32.mrf.mxu0
    %v2784 = vadd.f32 %v2771, %v2783
    %v2785 = vpop.f32.mrf.mxu0
    %2786 = vdwg.mxu0
    %2787 = vmatpush.bf16.msra.mxu0 %v2073
    %2788 = vmatpush.bf16.msra.mxu0 %v2072
    %2789 = vmatpush.bf16.msra.mxu0 %v2071
    %2790 = vmatpush.bf16.msra.mxu0 %v2070
    %2791 = vmatpush.bf16.msra.mxu0 %v2069
    %2792 = vmatpush.bf16.msra.mxu0 %v2068
    %2793 = vmatpush.bf16.msra.mxu0 %v2067
    %2794 = vmatpush.bf16.msra.mxu0 %v2066
    %2795 = vmatmul.bf16.gmra.mxu0 %v637
    %v2796 = vpop.f32.mrf.mxu0
    %v2797 = vadd.f32 %v2784, %v2796
    %v2798 = vpop.f32.mrf.mxu0
    %2799 = vdwg.mxu0
    %2800 = vmatpush.bf16.msra.mxu0 %v2081
    %2801 = vmatpush.bf16.msra.mxu0 %v2080
    %2802 = vmatpush.bf16.msra.mxu0 %v2079
    %2803 = vmatpush.bf16.msra.mxu0 %v2078
    %2804 = vmatpush.bf16.msra.mxu0 %v2077
    %2805 = vmatpush.bf16.msra.mxu0 %v2076
    %2806 = vmatpush.bf16.msra.mxu0 %v2075
    %2807 = vmatpush.bf16.msra.mxu0 %v2074
    %2808 = vmatmul.bf16.gmra.mxu0 %v638
    %v2809 = vpop.f32.mrf.mxu0
    %v2810 = vadd.f32 %v2797, %v2809
    %v2811 = vpop.f32.mrf.mxu0
    %2812 = vdwg.mxu0
    %2813 = vmatpush.bf16.msra.mxu0 %v2089
    %2814 = vmatpush.bf16.msra.mxu0 %v2088
    %2815 = vmatpush.bf16.msra.mxu0 %v2087
    %2816 = vmatpush.bf16.msra.mxu0 %v2086
    %2817 = vmatpush.bf16.msra.mxu0 %v2085
    %2818 = vmatpush.bf16.msra.mxu0 %v2084
    %2819 = vmatpush.bf16.msra.mxu0 %v2083
    %2820 = vmatpush.bf16.msra.mxu0 %v2082
    %2821 = vmatmul.bf16.gmra.mxu0 %v639
    %v2822 = vpop.f32.mrf.mxu0
    %v2823 = vadd.f32 %v2810, %v2822
    %v2824 = vpop.f32.mrf.mxu0
    %2825 = vdwg.mxu0
    %2826 = vmatpush.bf16.msra.mxu0 %v2097
    %2827 = vmatpush.bf16.msra.mxu0 %v2096
    %2828 = vmatpush.bf16.msra.mxu0 %v2095
    %2829 = vmatpush.bf16.msra.mxu0 %v2094
    %2830 = vmatpush.bf16.msra.mxu0 %v2093
    %2831 = vmatpush.bf16.msra.mxu0 %v2092
    %2832 = vmatpush.bf16.msra.mxu0 %v2091
    %2833 = vmatpush.bf16.msra.mxu0 %v2090
    %2834 = vmatmul.bf16.gmra.mxu0 %v642
    %v2835 = vpop.f32.mrf.mxu0
    %v2836 = vadd.f32 %v2823, %v2835
    %v2837 = vpop.f32.mrf.mxu0
    %2838 = vdwg.mxu0
    %2839 = vmatpush.bf16.msra.mxu0 %v2105
    %2840 = vmatpush.bf16.msra.mxu0 %v2104
    %2841 = vmatpush.bf16.msra.mxu0 %v2103
    %2842 = vmatpush.bf16.msra.mxu0 %v2102
    %2843 = vmatpush.bf16.msra.mxu0 %v2101
    %2844 = vmatpush.bf16.msra.mxu0 %v2100
    %2845 = vmatpush.bf16.msra.mxu0 %v2099
    %2846 = vmatpush.bf16.msra.mxu0 %v2098
    %2847 = vmatmul.bf16.gmra.mxu0 %v643
    %v2848 = vpop.f32.mrf.mxu0
    %v2849 = vadd.f32 %v2836, %v2848
    %v2850 = vpop.f32.mrf.mxu0
    %2851 = vdwg.mxu0
    %2852 = vmatpush.bf16.msra.mxu0 %v2113
    %2853 = vmatpush.bf16.msra.mxu0 %v2112
    %2854 = vmatpush.bf16.msra.mxu0 %v2111
    %2855 = vmatpush.bf16.msra.mxu0 %v2110
    %2856 = vmatpush.bf16.msra.mxu0 %v2109
    %2857 = vmatpush.bf16.msra.mxu0 %v2108
    %2858 = vmatpush.bf16.msra.mxu0 %v2107
    %2859 = vmatpush.bf16.msra.mxu0 %v2106
    %2860 = vmatmul.bf16.gmra.mxu0 %v644
    %v2861 = vpop.f32.mrf.mxu0
    %v2862 = vadd.f32 %v2849, %v2861
    %v2863 = vpop.f32.mrf.mxu0
    %2864 = vdwg.mxu0
    %2865 = vmatpush.bf16.msra.mxu0 %v2121
    %2866 = vmatpush.bf16.msra.mxu0 %v2120
    %2867 = vmatpush.bf16.msra.mxu0 %v2119
    %2868 = vmatpush.bf16.msra.mxu0 %v2118
    %2869 = vmatpush.bf16.msra.mxu0 %v2117
    %2870 = vmatpush.bf16.msra.mxu0 %v2116
    %2871 = vmatpush.bf16.msra.mxu0 %v2115
    %2872 = vmatpush.bf16.msra.mxu0 %v2114
    %2873 = vmatmul.bf16.gmra.mxu0 %v645
    %v2874 = vpop.f32.mrf.mxu0
    %v2875 = vadd.f32 %v2862, %v2874
    %v2876 = vpop.f32.mrf.mxu0
    %2877 = vdwg.mxu0
    %vm2878 = vcmask 74752
    %2879 = vst.msk [vmem:[#allocation2] sm:$0x3] %vm2878, %v2875
    // Predicated region
    $region14: #{net_one_forward.5} parent=1 // pred_check
      _
    $region15: #{net_one_forward.5} parent=1 // pred_check_branch
      %2881 = sbr.rel (0) target = $region17
    $region16: #{net_one_forward.5} parent=1 // pred_region
      %2883 = vsyncadd [#allocation3], 0
      %s2885 = sshll.u32 [#allocation2], 4
      %s2886 = int_to_ptr.vmem [resolvable:$true] %s2885
      %s2887 = sshll.u32 %s3, 4
      %s2888 = int_to_ptr.hbm [resolvable:$true] %s2887
      %2890 = dma.vmem_to_hbm [thread:$0]  %s2886, 32, %s2888, [#allocation3]
    $region17: #{net_one_forward.5} parent=1 // pred_fallthru
      _
    // Predicated region
    $region18: #{net_one_forward.5} parent=1 // pred_check
      _
    $region19: #{net_one_forward.5} parent=1 // pred_check_branch
      %2892 = sbr.rel (0) target = $region21
    $region20: #{net_one_forward.5} parent=1 // pred_region
      %2894 = dma.done [#allocation3], 32
    $region21: #{net_one_forward.5} parent=1 // pred_fallthru
      _
    %2895 = vsyncpa [#allocation3], 1

</llo_original>
